<compile_context>
chip_gen: v5e
topology: v5e:2x2
jax: 0.10.0
libtpu: 0.0.40
codegen_flags: <defaults>
</compile_context>

<pallas_src>
import functools

import jax
import jax.numpy as jnp
from jax import lax
from jax.experimental import pallas as pl
from jax.experimental.pallas import tpu as pltpu


# ----------------------------------------------------------------------------
# tile pickers
# ----------------------------------------------------------------------------
def _pick_kv_tile(n, candidates=(512, 256, 128, 64, 32, 16, 8)):
    """Largest candidate (multiple of 8) dividing n; fall back to full extent."""
    for c in candidates:
        if n % c == 0:
            return c
    return n


def _pick_q_tile(n, batch):
    """Largest divisor of n such that batch * (n // tile) >= 4 parallel grid steps
    (keeps both v7x TensorCores busy); otherwise the largest divisor."""
    best = None
    for c in (256, 128, 64, 32):
        if n % c == 0:
            if best is None:
                best = c
            if batch * (n // c) >= 4:
                return c
    if best is not None:
        return best
    for c in (16, 8):
        if n % c == 0:
            return c
    return n


# ----------------------------------------------------------------------------
# Fused QKV-projection + flash-attention + output-projection kernel
# ----------------------------------------------------------------------------
def _fused_attention_kernel(xq_ref, xkv_ref, wq_ref, bq_ref, wkv_ref, bkv_ref,
                            wp_ref, bp_ref, o_ref,
                            q_sc, m_sc, l_sc, acc_sc, *, num_heads, head_dim):
    # xq_ref: (1, tq, C)   xkv_ref: (1, tk, C)      weights/biases resident in VMEM
    # o_ref:  (1, tq, C)   scratch: q_sc (H, tq, hd) bf16, m/l (H, tq, 1) f32,
    #                               acc_sc (H, tq, hd) f32
    C = num_heads * head_dim
    ki = pl.program_id(2)

    @pl.when(ki == 0)
    def _():
        # Q projection (softmax scale pre-folded into wq/bq); split per head once per q-tile.
        q_full = (jnp.dot(xq_ref[0], wq_ref[...], preferred_element_type=jnp.float32)
                  + bq_ref[...]).astype(q_sc.dtype)                      # (tq, C)
        for h in range(num_heads):
            lo = h * head_dim
            q_sc[h] = q_full[:, lo:lo + head_dim]
        m_sc[...] = jnp.full_like(m_sc, -jnp.inf)
        l_sc[...] = jnp.zeros_like(l_sc)
        acc_sc[...] = jnp.zeros_like(acc_sc)

    # KV projection for this kv tile: (tk, 2C); columns are [k | v], each head-major.
    kv = (jnp.dot(xkv_ref[0], wkv_ref[...], preferred_element_type=jnp.float32)
          + bkv_ref[...]).astype(jnp.bfloat16)

    # Online softmax over the kv axis, all heads handled inside this grid step.
    for h in range(num_heads):
        lo = h * head_dim
        k_h = kv[:, lo:lo + head_dim]                      # (tk, hd) bf16
        v_h = kv[:, C + lo:C + lo + head_dim]              # (tk, hd) bf16
        q_h = q_sc[h]                                      # (tq, hd) bf16

        # q @ k^T via transposed-RHS contraction on the MXU, f32 accumulation.
        s = lax.dot_general(q_h, k_h, (((1,), (1,)), ((), ())),
                            preferred_element_type=jnp.float32)          # (tq, tk)

        m_prev = m_sc[h]                                                 # (tq, 1)
        m_new = jnp.maximum(m_prev, s.max(axis=-1, keepdims=True))
        alpha = jnp.exp(m_prev - m_new)
        p = jnp.exp(s - m_new)
        l_sc[h] = alpha * l_sc[h] + p.sum(axis=-1, keepdims=True)
        acc_sc[h] = alpha * acc_sc[h] + jnp.dot(
            p.astype(jnp.bfloat16), v_h, preferred_element_type=jnp.float32)
        m_sc[h] = m_new

    @pl.when(ki == pl.num_programs(2) - 1)
    def _():
        # Normalize, merge heads back to a lane-dense (tq, C) tile, and apply the output
        # projection — all inside the kernel (no HBM merge transpose).
        parts = []
        for h in range(num_heads):
            inv_l = pl.reciprocal(l_sc[h], approx=True)                  # (tq, 1)
            parts.append(acc_sc[h] * inv_l)                              # (tq, hd) f32
        o = jnp.concatenate(parts, axis=-1).astype(jnp.bfloat16)         # (tq, C)
        out = (jnp.dot(o, wp_ref[...], preferred_element_type=jnp.float32)
               + bp_ref[...])
        o_ref[0] = out.astype(o_ref.dtype)


def fused_attention(x, prepped, *, num_heads):
    """x: (B, N, C); prepped: dict of prepared (scaled / bf16) weights. Returns (B, N, C)."""
    B, N, C = x.shape
    assert C % num_heads == 0
    head_dim = C // num_heads

    xb = x.astype(jnp.bfloat16)
    tq = _pick_q_tile(N, B)
    tk = _pick_kv_tile(N)
    grid = (B, N // tq, N // tk)          # reduction (kv) axis last
    nq_tiles = N // tq

    out_itemsize = jnp.dtype(x.dtype).itemsize
    cost = pl.CostEstimate(
        flops=int(2 * B * N * C * C                      # q projection
                  + 2 * B * N * 2 * C * C * nq_tiles     # kv projection (recomputed per q-tile)
                  + 4 * B * N * N * C                    # q k^T  +  p v
                  + 2 * B * N * C * C),                  # output projection
        transcendentals=int(B * num_heads * N * N),
        bytes_accessed=int(B * N * C * 2 * (1 + nq_tiles)                      # x for q + kv
                           + (prepped["w_q"].size + prepped["w_kv"].size
                              + prepped["w_proj"].size) * 2
                           + B * N * C * out_itemsize),
    )

    kernel = functools.partial(_fused_attention_kernel,
                               num_heads=num_heads, head_dim=head_dim)

    return pl.pallas_call(
        kernel,
        out_shape=jax.ShapeDtypeStruct((B, N, C), x.dtype),
        grid_spec=pltpu.PrefetchScalarGridSpec(
            num_scalar_prefetch=0,
            grid=grid,
            in_specs=[
                pl.BlockSpec((1, tq, C), lambda b, qi, ki: (b, qi, 0)),    # x (q rows)
                pl.BlockSpec((1, tk, C), lambda b, qi, ki: (b, ki, 0)),    # x (kv rows)
                pl.BlockSpec((C, C), lambda b, qi, ki: (0, 0)),            # w_q (scale folded)
                pl.BlockSpec((1, C), lambda b, qi, ki: (0, 0)),            # b_q (scale folded)
                pl.BlockSpec((C, 2 * C), lambda b, qi, ki: (0, 0)),        # w_kv
                pl.BlockSpec((1, 2 * C), lambda b, qi, ki: (0, 0)),        # b_kv
                pl.BlockSpec((C, C), lambda b, qi, ki: (0, 0)),            # w_proj
                pl.BlockSpec((1, C), lambda b, qi, ki: (0, 0)),            # b_proj
            ],
            out_specs=pl.BlockSpec((1, tq, C), lambda b, qi, ki: (b, qi, 0)),
            scratch_shapes=[
                pltpu.VMEM((num_heads, tq, head_dim), jnp.bfloat16),   # per-head q
                pltpu.VMEM((num_heads, tq, 1), jnp.float32),           # running max
                pltpu.VMEM((num_heads, tq, 1), jnp.float32),           # running sum
                pltpu.VMEM((num_heads, tq, head_dim), jnp.float32),    # output accumulator
            ],
        ),
        compiler_params=pltpu.CompilerParams(
            dimension_semantics=("parallel", "parallel", "arbitrary")),
        cost_estimate=cost,
    )(xb, xb,
      prepped["w_q"], prepped["b_q"],
      prepped["w_kv"], prepped["b_kv"],
      prepped["w_proj"], prepped["b_proj"])


# ----------------------------------------------------------------------------
# Module forward (sr_ratio == 1 path)
# ----------------------------------------------------------------------------
def attention_forward(x, prepped, D, H, W, *, num_heads, sr_ratio=1):
    """x: (B, N, C) with N = D*H*W. Matches Attention.forward (eval, sr_ratio=1)."""
    B, N, C = x.shape
    if sr_ratio > 1:
        # TODO(synk): Conv3d(dim, dim, k=stride=sr_ratio) spatial reduction + LayerNorm
        # branch not implemented as a Pallas kernel.
        raise NotImplementedError("sr_ratio > 1 path is not implemented")
    out = fused_attention(x, prepped, num_heads=num_heads)
    return out.reshape(B, N, C)   # attn_drop / proj_drop are identity at inference


# ----------------------------------------------------------------------------
# Params (torch nn.Linear default init; weights stored as (in, out))
# ----------------------------------------------------------------------------
def init_attention_params(key, dim, qkv_bias=False, dtype=jnp.float32):
    ks = jax.random.split(key, 6)
    bound = 1.0 / (dim ** 0.5)

    def u(k, shape):
        return jax.random.uniform(k, shape, dtype, minval=-bound, maxval=bound)

    w_q = u(ks[0], (dim, dim))
    w_kv = u(ks[1], (dim, 2 * dim))
    b_q = u(ks[2], (dim,)) if qkv_bias else jnp.zeros((dim,), dtype)
    b_kv = u(ks[3], (2 * dim,)) if qkv_bias else jnp.zeros((2 * dim,), dtype)
    w_proj = u(ks[4], (dim, dim))
    b_proj = u(ks[5], (dim,))
    return dict(w_q=w_q, b_q=b_q, w_kv=w_kv, b_kv=b_kv, w_proj=w_proj, b_proj=b_proj)


def prepare_attention_params(params, num_heads, qk_scale=None):
    """One-time prep outside the forward: fold softmax scale into w_q/b_q, cast weights to
    bf16, reshape biases to (1, E) f32 rows (avoids per-call weight concat / scaling)."""
    C = params["w_q"].shape[0]
    head_dim = C // num_heads
    scale = qk_scale if qk_scale is not None else head_dim ** (-0.5)
    return dict(
        w_q=(params["w_q"].astype(jnp.float32) * scale).astype(jnp.bfloat16),
        b_q=(params["b_q"].astype(jnp.float32) * scale).reshape(1, C),
        w_kv=params["w_kv"].astype(jnp.bfloat16),
        b_kv=params["b_kv"].astype(jnp.float32).reshape(1, 2 * C),
        w_proj=params["w_proj"].astype(jnp.bfloat16),
        b_proj=params["b_proj"].astype(jnp.float32).reshape(1, C),
    )


def reference_attention(x, params, num_heads, qk_scale=None):
    """Pure-JAX f32 reference mirroring the PyTorch forward (sr_ratio=1, eval)."""
    B, N, C = x.shape
    hd = C // num_heads
    scale = qk_scale if qk_scale is not None else hd ** (-0.5)
    q = (x @ params["w_q"] + params["b_q"]).reshape(B, N, num_heads, hd).transpose(0, 2, 1, 3)
    kv = (x @ params["w_kv"] + params["b_kv"]).reshape(B, N, 2, num_heads, hd)
    kv = kv.transpose(2, 0, 3, 1, 4)
    k, v = kv[0], kv[1]
    attn = jnp.einsum("bhqd,bhkd->bhqk", q, k) * scale
    attn = jax.nn.softmax(attn, axis=-1)
    o = jnp.einsum("bhqk,bhkd->bhqd", attn, v).transpose(0, 2, 1, 3).reshape(B, N, C)
    return o @ params["w_proj"] + params["b_proj"]


if __name__ == "__main__":
    # Small shapes consistent with the module: dim=64, heads=8 (head_dim=8), D=H=W=4 -> N=64.
    B, C, heads = 2, 64, 8
    D = H = W = 4
    N = D * H * W

    key = jax.random.PRNGKey(0)
    kx, kp = jax.random.split(key)
    x = jax.random.normal(kx, (B, N, C), jnp.float32)
    params = init_attention_params(kp, C, qkv_bias=False)
    prepped = prepare_attention_params(params, num_heads=heads)

    fwd = jax.jit(attention_forward,
                  static_argnames=("D", "H", "W", "num_heads", "sr_ratio"))
    out = fwd(x, prepped, D, H, W, num_heads=heads, sr_ratio=1)
    out = jax.block_until_ready(out)

    ref = reference_attention(x, params, heads)
    assert out.shape == (B, N, C)
    # bf16 compute with f32 accumulation (+ approx reciprocal) vs f32 reference -> loose tol.
    err = float(jnp.max(jnp.abs(out - ref)))
    assert jnp.allclose(out, ref, atol=4e-2, rtol=4e-2), err

    print("KERNEL_OK")
</pallas_src>

<mosaic_0001>
module attributes {stable_mosaic.version = 11 : i64} {
  func.func @_fused_attention_kernel(%arg0: i32, %arg1: i32, %arg2: i32, %arg3: memref<1x32x64xbf16, #tpu.memory_space<vmem>>, %arg4: memref<1x64x64xbf16, #tpu.memory_space<vmem>>, %arg5: memref<64x64xbf16, #tpu.memory_space<vmem>>, %arg6: memref<1x64xf32, #tpu.memory_space<vmem>>, %arg7: memref<64x128xbf16, #tpu.memory_space<vmem>>, %arg8: memref<1x128xf32, #tpu.memory_space<vmem>>, %arg9: memref<64x64xbf16, #tpu.memory_space<vmem>>, %arg10: memref<1x64xf32, #tpu.memory_space<vmem>>, %arg11: memref<1x32x64xf32, #tpu.memory_space<vmem>>, %arg12: memref<8x32x8xbf16, #tpu.memory_space<vmem>>, %arg13: memref<8x32x1xf32, #tpu.memory_space<vmem>>, %arg14: memref<8x32x1xf32, #tpu.memory_space<vmem>>, %arg15: memref<8x32x8xf32, #tpu.memory_space<vmem>>) attributes {dimension_semantics = [#tpu.dimension_semantics<parallel>, #tpu.dimension_semantics<parallel>, #tpu.dimension_semantics<arbitrary>], iteration_bounds = array<i64: 2, 2, 1>, scalar_prefetch = 0 : i64, scratch_operands = 4 : i64, tpu.core_type = #tpu.core_type<tc>, window_params = [{transform_indices = @transform_0, window_bounds = array<i64: 1, 32, 64>}, {transform_indices = @transform_1, window_bounds = array<i64: 1, 64, 64>}, {pipeline_mode = #tpu.pipeline_mode<synchronous>, transform_indices = @transform_2, window_bounds = array<i64: 64, 64>}, {pipeline_mode = #tpu.pipeline_mode<synchronous>, transform_indices = @transform_3, window_bounds = array<i64: 1, 64>}, {pipeline_mode = #tpu.pipeline_mode<synchronous>, transform_indices = @transform_4, window_bounds = array<i64: 64, 128>}, {pipeline_mode = #tpu.pipeline_mode<synchronous>, transform_indices = @transform_5, window_bounds = array<i64: 1, 128>}, {pipeline_mode = #tpu.pipeline_mode<synchronous>, transform_indices = @transform_6, window_bounds = array<i64: 64, 64>}, {pipeline_mode = #tpu.pipeline_mode<synchronous>, transform_indices = @transform_7, window_bounds = array<i64: 1, 64>}, {transform_indices = @transform_8, window_bounds = array<i64: 1, 32, 64>}]} {
    %c0_i32 = arith.constant 0 : i32
    %0 = arith.cmpi eq, %arg2, %c0_i32 : i32
    %1 = arith.extui %0 : i1 to i32
    %c0_i32_0 = arith.constant 0 : i32
    %2 = arith.cmpi ne, %1, %c0_i32_0 : i32
    scf.if %2 {
      %c0_202 = arith.constant 0 : index
      %c0_203 = arith.constant 0 : index
      %c0_204 = arith.constant 0 : index
      %310 = vector.load %arg3[%c0_202, %c0_203, %c0_204] : memref<1x32x64xbf16, #tpu.memory_space<vmem>>, vector<1x32x64xbf16>
      %311 = vector.shape_cast %310 : vector<1x32x64xbf16> to vector<32x64xbf16>
      %c0_205 = arith.constant 0 : index
      %c0_206 = arith.constant 0 : index
      %312 = vector.load %arg5[%c0_205, %c0_206] : memref<64x64xbf16, #tpu.memory_space<vmem>>, vector<64x64xbf16>
      %cst_207 = arith.constant dense<0.000000e+00> : vector<32x64xf32>
      %313 = tpu.matmul %311, %312, %cst_207 {dimension_numbers = #tpu.dot_dimension_numbers<[1], [0], [0], [1], [0, 0, 1, 1], [], []>} : vector<32x64xbf16>, vector<64x64xbf16>, vector<32x64xf32> -> vector<32x64xf32>
      %c0_208 = arith.constant 0 : index
      %c0_209 = arith.constant 0 : index
      %314 = vector.load %arg6[%c0_208, %c0_209] : memref<1x64xf32, #tpu.memory_space<vmem>>, vector<1x64xf32>
      %315 = vector.broadcast %314 : vector<1x64xf32> to vector<32x64xf32>
      %316 = arith.addf %313, %315 : vector<32x64xf32>
      %317 = arith.truncf %316 : vector<32x64xf32> to vector<32x64xbf16>
      %318 = vector.extract_strided_slice %317 {offsets = [0, 0], sizes = [32, 8], strides = [1, 1]} : vector<32x64xbf16> to vector<32x8xbf16>
      %c0_210 = arith.constant 0 : index
      %c0_211 = arith.constant 0 : index
      %c0_212 = arith.constant 0 : index
      %319 = vector.load %arg12[%c0_210, %c0_211, %c0_212] : memref<8x32x8xbf16, #tpu.memory_space<vmem>>, vector<1x32x8xbf16>
      %320 = vector.shape_cast %319 : vector<1x32x8xbf16> to vector<32x8xbf16>
      %321 = vector.shape_cast %318 : vector<32x8xbf16> to vector<1x32x8xbf16>
      tpu.vector_store %arg12[%c0_210, %c0_211, %c0_212], %321 {strides = array<i32>} : memref<8x32x8xbf16, #tpu.memory_space<vmem>>, vector<1x32x8xbf16>,
      %322 = vector.extract_strided_slice %317 {offsets = [0, 8], sizes = [32, 8], strides = [1, 1]} : vector<32x64xbf16> to vector<32x8xbf16>
      %c1_213 = arith.constant 1 : index
      %c0_214 = arith.constant 0 : index
      %c0_215 = arith.constant 0 : index
      %323 = vector.load %arg12[%c1_213, %c0_214, %c0_215] : memref<8x32x8xbf16, #tpu.memory_space<vmem>>, vector<1x32x8xbf16>
      %324 = vector.shape_cast %323 : vector<1x32x8xbf16> to vector<32x8xbf16>
      %325 = vector.shape_cast %322 : vector<32x8xbf16> to vector<1x32x8xbf16>
      tpu.vector_store %arg12[%c1_213, %c0_214, %c0_215], %325 {strides = array<i32>} : memref<8x32x8xbf16, #tpu.memory_space<vmem>>, vector<1x32x8xbf16>,
      %326 = vector.extract_strided_slice %317 {offsets = [0, 16], sizes = [32, 8], strides = [1, 1]} : vector<32x64xbf16> to vector<32x8xbf16>
      %c2_216 = arith.constant 2 : index
      %c0_217 = arith.constant 0 : index
      %c0_218 = arith.constant 0 : index
      %327 = vector.load %arg12[%c2_216, %c0_217, %c0_218] : memref<8x32x8xbf16, #tpu.memory_space<vmem>>, vector<1x32x8xbf16>
      %328 = vector.shape_cast %327 : vector<1x32x8xbf16> to vector<32x8xbf16>
      %329 = vector.shape_cast %326 : vector<32x8xbf16> to vector<1x32x8xbf16>
      tpu.vector_store %arg12[%c2_216, %c0_217, %c0_218], %329 {strides = array<i32>} : memref<8x32x8xbf16, #tpu.memory_space<vmem>>, vector<1x32x8xbf16>,
      %330 = vector.extract_strided_slice %317 {offsets = [0, 24], sizes = [32, 8], strides = [1, 1]} : vector<32x64xbf16> to vector<32x8xbf16>
      %c3_219 = arith.constant 3 : index
      %c0_220 = arith.constant 0 : index
      %c0_221 = arith.constant 0 : index
      %331 = vector.load %arg12[%c3_219, %c0_220, %c0_221] : memref<8x32x8xbf16, #tpu.memory_space<vmem>>, vector<1x32x8xbf16>
      %332 = vector.shape_cast %331 : vector<1x32x8xbf16> to vector<32x8xbf16>
      %333 = vector.shape_cast %330 : vector<32x8xbf16> to vector<1x32x8xbf16>
      tpu.vector_store %arg12[%c3_219, %c0_220, %c0_221], %333 {strides = array<i32>} : memref<8x32x8xbf16, #tpu.memory_space<vmem>>, vector<1x32x8xbf16>,
      %334 = vector.extract_strided_slice %317 {offsets = [0, 32], sizes = [32, 8], strides = [1, 1]} : vector<32x64xbf16> to vector<32x8xbf16>
      %c4_222 = arith.constant 4 : index
      %c0_223 = arith.constant 0 : index
      %c0_224 = arith.constant 0 : index
      %335 = vector.load %arg12[%c4_222, %c0_223, %c0_224] : memref<8x32x8xbf16, #tpu.memory_space<vmem>>, vector<1x32x8xbf16>
      %336 = vector.shape_cast %335 : vector<1x32x8xbf16> to vector<32x8xbf16>
      %337 = vector.shape_cast %334 : vector<32x8xbf16> to vector<1x32x8xbf16>
      tpu.vector_store %arg12[%c4_222, %c0_223, %c0_224], %337 {strides = array<i32>} : memref<8x32x8xbf16, #tpu.memory_space<vmem>>, vector<1x32x8xbf16>,
      %338 = vector.extract_strided_slice %317 {offsets = [0, 40], sizes = [32, 8], strides = [1, 1]} : vector<32x64xbf16> to vector<32x8xbf16>
      %c5_225 = arith.constant 5 : index
      %c0_226 = arith.constant 0 : index
      %c0_227 = arith.constant 0 : index
      %339 = vector.load %arg12[%c5_225, %c0_226, %c0_227] : memref<8x32x8xbf16, #tpu.memory_space<vmem>>, vector<1x32x8xbf16>
      %340 = vector.shape_cast %339 : vector<1x32x8xbf16> to vector<32x8xbf16>
      %341 = vector.shape_cast %338 : vector<32x8xbf16> to vector<1x32x8xbf16>
      tpu.vector_store %arg12[%c5_225, %c0_226, %c0_227], %341 {strides = array<i32>} : memref<8x32x8xbf16, #tpu.memory_space<vmem>>, vector<1x32x8xbf16>,
      %342 = vector.extract_strided_slice %317 {offsets = [0, 48], sizes = [32, 8], strides = [1, 1]} : vector<32x64xbf16> to vector<32x8xbf16>
      %c6_228 = arith.constant 6 : index
      %c0_229 = arith.constant 0 : index
      %c0_230 = arith.constant 0 : index
      %343 = vector.load %arg12[%c6_228, %c0_229, %c0_230] : memref<8x32x8xbf16, #tpu.memory_space<vmem>>, vector<1x32x8xbf16>
      %344 = vector.shape_cast %343 : vector<1x32x8xbf16> to vector<32x8xbf16>
      %345 = vector.shape_cast %342 : vector<32x8xbf16> to vector<1x32x8xbf16>
      tpu.vector_store %arg12[%c6_228, %c0_229, %c0_230], %345 {strides = array<i32>} : memref<8x32x8xbf16, #tpu.memory_space<vmem>>, vector<1x32x8xbf16>,
      %346 = vector.extract_strided_slice %317 {offsets = [0, 56], sizes = [32, 8], strides = [1, 1]} : vector<32x64xbf16> to vector<32x8xbf16>
      %c7_231 = arith.constant 7 : index
      %c0_232 = arith.constant 0 : index
      %c0_233 = arith.constant 0 : index
      %347 = vector.load %arg12[%c7_231, %c0_232, %c0_233] : memref<8x32x8xbf16, #tpu.memory_space<vmem>>, vector<1x32x8xbf16>
      %348 = vector.shape_cast %347 : vector<1x32x8xbf16> to vector<32x8xbf16>
      %349 = vector.shape_cast %346 : vector<32x8xbf16> to vector<1x32x8xbf16>
      tpu.vector_store %arg12[%c7_231, %c0_232, %c0_233], %349 {strides = array<i32>} : memref<8x32x8xbf16, #tpu.memory_space<vmem>>, vector<1x32x8xbf16>,
      %cst_234 = arith.constant 0xFF800000 : f32
      %350 = vector.broadcast %cst_234 : f32 to vector<8x32x1xf32>
      %c0_235 = arith.constant 0 : index
      %c0_236 = arith.constant 0 : index
      %c0_237 = arith.constant 0 : index
      %351 = vector.load %arg13[%c0_235, %c0_236, %c0_237] : memref<8x32x1xf32, #tpu.memory_space<vmem>>, vector<8x32x1xf32>
      tpu.vector_store %arg13[%c0_235, %c0_236, %c0_237], %350 {strides = array<i32>} : memref<8x32x1xf32, #tpu.memory_space<vmem>>, vector<8x32x1xf32>,
      %cst_238 = arith.constant 0.000000e+00 : f32
      %352 = vector.broadcast %cst_238 : f32 to vector<8x32x1xf32>
      %c0_239 = arith.constant 0 : index
      %c0_240 = arith.constant 0 : index
      %c0_241 = arith.constant 0 : index
      %353 = vector.load %arg14[%c0_239, %c0_240, %c0_241] : memref<8x32x1xf32, #tpu.memory_space<vmem>>, vector<8x32x1xf32>
      tpu.vector_store %arg14[%c0_239, %c0_240, %c0_241], %352 {strides = array<i32>} : memref<8x32x1xf32, #tpu.memory_space<vmem>>, vector<8x32x1xf32>,
      %cst_242 = arith.constant 0.000000e+00 : f32
      %354 = vector.broadcast %cst_242 : f32 to vector<8x32x8xf32>
      %c0_243 = arith.constant 0 : index
      %c0_244 = arith.constant 0 : index
      %c0_245 = arith.constant 0 : index
      %355 = vector.load %arg15[%c0_243, %c0_244, %c0_245] : memref<8x32x8xf32, #tpu.memory_space<vmem>>, vector<8x32x8xf32>
      tpu.vector_store %arg15[%c0_243, %c0_244, %c0_245], %354 {strides = array<i32>} : memref<8x32x8xf32, #tpu.memory_space<vmem>>, vector<8x32x8xf32>,
    } else {
    }
    %c0 = arith.constant 0 : index
    %c0_1 = arith.constant 0 : index
    %c0_2 = arith.constant 0 : index
    %3 = vector.load %arg4[%c0, %c0_1, %c0_2] : memref<1x64x64xbf16, #tpu.memory_space<vmem>>, vector<1x64x64xbf16>
    %4 = vector.shape_cast %3 : vector<1x64x64xbf16> to vector<64x64xbf16>
    %c0_3 = arith.constant 0 : index
    %c0_4 = arith.constant 0 : index
    %5 = vector.load %arg7[%c0_3, %c0_4] : memref<64x128xbf16, #tpu.memory_space<vmem>>, vector<64x128xbf16>
    %cst = arith.constant dense<0.000000e+00> : vector<64x128xf32>
    %6 = tpu.matmul %4, %5, %cst {dimension_numbers = #tpu.dot_dimension_numbers<[1], [0], [0], [1], [0, 0, 1, 1], [], []>} : vector<64x64xbf16>, vector<64x128xbf16>, vector<64x128xf32> -> vector<64x128xf32>
    %c0_5 = arith.constant 0 : index
    %c0_6 = arith.constant 0 : index
    %7 = vector.load %arg8[%c0_5, %c0_6] : memref<1x128xf32, #tpu.memory_space<vmem>>, vector<1x128xf32>
    %8 = vector.broadcast %7 : vector<1x128xf32> to vector<64x128xf32>
    %9 = arith.addf %6, %8 : vector<64x128xf32>
    %10 = arith.truncf %9 : vector<64x128xf32> to vector<64x128xbf16>
    %11 = vector.extract_strided_slice %10 {offsets = [0, 0], sizes = [64, 8], strides = [1, 1]} : vector<64x128xbf16> to vector<64x8xbf16>
    %12 = vector.extract_strided_slice %10 {offsets = [0, 64], sizes = [64, 8], strides = [1, 1]} : vector<64x128xbf16> to vector<64x8xbf16>
    %c0_7 = arith.constant 0 : index
    %c0_8 = arith.constant 0 : index
    %c0_9 = arith.constant 0 : index
    %13 = vector.load %arg12[%c0_7, %c0_8, %c0_9] : memref<8x32x8xbf16, #tpu.memory_space<vmem>>, vector<1x32x8xbf16>
    %14 = vector.shape_cast %13 : vector<1x32x8xbf16> to vector<32x8xbf16>
    %cst_10 = arith.constant dense<0.000000e+00> : vector<32x64xf32>
    %15 = tpu.matmul %14, %11, %cst_10 {dimension_numbers = #tpu.dot_dimension_numbers<[1], [1], [0], [0], [0, 0, 1, 0], [], []>} : vector<32x8xbf16>, vector<64x8xbf16>, vector<32x64xf32> -> vector<32x64xf32>
    %c0_11 = arith.constant 0 : index
    %c0_12 = arith.constant 0 : index
    %c0_13 = arith.constant 0 : index
    %16 = vector.load %arg13[%c0_11, %c0_12, %c0_13] : memref<8x32x1xf32, #tpu.memory_space<vmem>>, vector<1x32x1xf32>
    %17 = vector.shape_cast %16 : vector<1x32x1xf32> to vector<32x1xf32>
    %cst_14 = arith.constant dense<0xFF800000> : vector<32xf32>
    %18 = vector.multi_reduction <maximumf>, %15, %cst_14 [1] : vector<32x64xf32> to vector<32xf32>
    %19 = vector.shape_cast %18 : vector<32xf32> to vector<32x1xf32>
    %20 = arith.maximumf %17, %19 : vector<32x1xf32>
    %21 = arith.subf %17, %20 : vector<32x1xf32>
    %22 = math.exp %21 : vector<32x1xf32>
    %23 = vector.broadcast %20 : vector<32x1xf32> to vector<32x64xf32>
    %24 = arith.subf %15, %23 : vector<32x64xf32>
    %25 = math.exp %24 : vector<32x64xf32>
    %c0_15 = arith.constant 0 : index
    %c0_16 = arith.constant 0 : index
    %c0_17 = arith.constant 0 : index
    %26 = vector.load %arg14[%c0_15, %c0_16, %c0_17] : memref<8x32x1xf32, #tpu.memory_space<vmem>>, vector<1x32x1xf32>
    %27 = vector.shape_cast %26 : vector<1x32x1xf32> to vector<32x1xf32>
    %28 = arith.mulf %22, %27 : vector<32x1xf32>
    %cst_18 = arith.constant dense<0.000000e+00> : vector<32xf32>
    %29 = vector.multi_reduction <add>, %25, %cst_18 [1] : vector<32x64xf32> to vector<32xf32>
    %30 = vector.shape_cast %29 : vector<32xf32> to vector<32x1xf32>
    %31 = arith.addf %28, %30 : vector<32x1xf32>
    %c0_19 = arith.constant 0 : index
    %c0_20 = arith.constant 0 : index
    %c0_21 = arith.constant 0 : index
    %32 = vector.load %arg14[%c0_19, %c0_20, %c0_21] : memref<8x32x1xf32, #tpu.memory_space<vmem>>, vector<1x32x1xf32>
    %33 = vector.shape_cast %32 : vector<1x32x1xf32> to vector<32x1xf32>
    %34 = vector.shape_cast %31 : vector<32x1xf32> to vector<1x32x1xf32>
    tpu.vector_store %arg14[%c0_19, %c0_20, %c0_21], %34 {strides = array<i32>} : memref<8x32x1xf32, #tpu.memory_space<vmem>>, vector<1x32x1xf32>,
    %c0_22 = arith.constant 0 : index
    %c0_23 = arith.constant 0 : index
    %c0_24 = arith.constant 0 : index
    %35 = vector.load %arg15[%c0_22, %c0_23, %c0_24] : memref<8x32x8xf32, #tpu.memory_space<vmem>>, vector<1x32x8xf32>
    %36 = vector.shape_cast %35 : vector<1x32x8xf32> to vector<32x8xf32>
    %37 = vector.broadcast %22 : vector<32x1xf32> to vector<32x8xf32>
    %38 = arith.mulf %37, %36 : vector<32x8xf32>
    %39 = arith.truncf %25 : vector<32x64xf32> to vector<32x64xbf16>
    %cst_25 = arith.constant dense<0.000000e+00> : vector<32x8xf32>
    %40 = tpu.matmul %39, %12, %cst_25 {dimension_numbers = #tpu.dot_dimension_numbers<[1], [0], [0], [1], [0, 0, 1, 1], [], []>} : vector<32x64xbf16>, vector<64x8xbf16>, vector<32x8xf32> -> vector<32x8xf32>
    %41 = arith.addf %38, %40 : vector<32x8xf32>
    %c0_26 = arith.constant 0 : index
    %c0_27 = arith.constant 0 : index
    %c0_28 = arith.constant 0 : index
    %42 = vector.load %arg15[%c0_26, %c0_27, %c0_28] : memref<8x32x8xf32, #tpu.memory_space<vmem>>, vector<1x32x8xf32>
    %43 = vector.shape_cast %42 : vector<1x32x8xf32> to vector<32x8xf32>
    %44 = vector.shape_cast %41 : vector<32x8xf32> to vector<1x32x8xf32>
    tpu.vector_store %arg15[%c0_26, %c0_27, %c0_28], %44 {strides = array<i32>} : memref<8x32x8xf32, #tpu.memory_space<vmem>>, vector<1x32x8xf32>,
    %c0_29 = arith.constant 0 : index
    %c0_30 = arith.constant 0 : index
    %c0_31 = arith.constant 0 : index
    %45 = vector.load %arg13[%c0_29, %c0_30, %c0_31] : memref<8x32x1xf32, #tpu.memory_space<vmem>>, vector<1x32x1xf32>
    %46 = vector.shape_cast %45 : vector<1x32x1xf32> to vector<32x1xf32>
    %47 = vector.shape_cast %20 : vector<32x1xf32> to vector<1x32x1xf32>
    tpu.vector_store %arg13[%c0_29, %c0_30, %c0_31], %47 {strides = array<i32>} : memref<8x32x1xf32, #tpu.memory_space<vmem>>, vector<1x32x1xf32>,
    %48 = vector.extract_strided_slice %10 {offsets = [0, 8], sizes = [64, 8], strides = [1, 1]} : vector<64x128xbf16> to vector<64x8xbf16>
    %49 = vector.extract_strided_slice %10 {offsets = [0, 72], sizes = [64, 8], strides = [1, 1]} : vector<64x128xbf16> to vector<64x8xbf16>
    %c1 = arith.constant 1 : index
    %c0_32 = arith.constant 0 : index
    %c0_33 = arith.constant 0 : index
    %50 = vector.load %arg12[%c1, %c0_32, %c0_33] : memref<8x32x8xbf16, #tpu.memory_space<vmem>>, vector<1x32x8xbf16>
    %51 = vector.shape_cast %50 : vector<1x32x8xbf16> to vector<32x8xbf16>
    %cst_34 = arith.constant dense<0.000000e+00> : vector<32x64xf32>
    %52 = tpu.matmul %51, %48, %cst_34 {dimension_numbers = #tpu.dot_dimension_numbers<[1], [1], [0], [0], [0, 0, 1, 0], [], []>} : vector<32x8xbf16>, vector<64x8xbf16>, vector<32x64xf32> -> vector<32x64xf32>
    %c1_35 = arith.constant 1 : index
    %c0_36 = arith.constant 0 : index
    %c0_37 = arith.constant 0 : index
    %53 = vector.load %arg13[%c1_35, %c0_36, %c0_37] : memref<8x32x1xf32, #tpu.memory_space<vmem>>, vector<1x32x1xf32>
    %54 = vector.shape_cast %53 : vector<1x32x1xf32> to vector<32x1xf32>
    %cst_38 = arith.constant dense<0xFF800000> : vector<32xf32>
    %55 = vector.multi_reduction <maximumf>, %52, %cst_38 [1] : vector<32x64xf32> to vector<32xf32>
    %56 = vector.shape_cast %55 : vector<32xf32> to vector<32x1xf32>
    %57 = arith.maximumf %54, %56 : vector<32x1xf32>
    %58 = arith.subf %54, %57 : vector<32x1xf32>
    %59 = math.exp %58 : vector<32x1xf32>
    %60 = vector.broadcast %57 : vector<32x1xf32> to vector<32x64xf32>
    %61 = arith.subf %52, %60 : vector<32x64xf32>
    %62 = math.exp %61 : vector<32x64xf32>
    %c1_39 = arith.constant 1 : index
    %c0_40 = arith.constant 0 : index
    %c0_41 = arith.constant 0 : index
    %63 = vector.load %arg14[%c1_39, %c0_40, %c0_41] : memref<8x32x1xf32, #tpu.memory_space<vmem>>, vector<1x32x1xf32>
    %64 = vector.shape_cast %63 : vector<1x32x1xf32> to vector<32x1xf32>
    %65 = arith.mulf %59, %64 : vector<32x1xf32>
    %cst_42 = arith.constant dense<0.000000e+00> : vector<32xf32>
    %66 = vector.multi_reduction <add>, %62, %cst_42 [1] : vector<32x64xf32> to vector<32xf32>
    %67 = vector.shape_cast %66 : vector<32xf32> to vector<32x1xf32>
    %68 = arith.addf %65, %67 : vector<32x1xf32>
    %c1_43 = arith.constant 1 : index
    %c0_44 = arith.constant 0 : index
    %c0_45 = arith.constant 0 : index
    %69 = vector.load %arg14[%c1_43, %c0_44, %c0_45] : memref<8x32x1xf32, #tpu.memory_space<vmem>>, vector<1x32x1xf32>
    %70 = vector.shape_cast %69 : vector<1x32x1xf32> to vector<32x1xf32>
    %71 = vector.shape_cast %68 : vector<32x1xf32> to vector<1x32x1xf32>
    tpu.vector_store %arg14[%c1_43, %c0_44, %c0_45], %71 {strides = array<i32>} : memref<8x32x1xf32, #tpu.memory_space<vmem>>, vector<1x32x1xf32>,
    %c1_46 = arith.constant 1 : index
    %c0_47 = arith.constant 0 : index
    %c0_48 = arith.constant 0 : index
    %72 = vector.load %arg15[%c1_46, %c0_47, %c0_48] : memref<8x32x8xf32, #tpu.memory_space<vmem>>, vector<1x32x8xf32>
    %73 = vector.shape_cast %72 : vector<1x32x8xf32> to vector<32x8xf32>
    %74 = vector.broadcast %59 : vector<32x1xf32> to vector<32x8xf32>
    %75 = arith.mulf %74, %73 : vector<32x8xf32>
    %76 = arith.truncf %62 : vector<32x64xf32> to vector<32x64xbf16>
    %cst_49 = arith.constant dense<0.000000e+00> : vector<32x8xf32>
    %77 = tpu.matmul %76, %49, %cst_49 {dimension_numbers = #tpu.dot_dimension_numbers<[1], [0], [0], [1], [0, 0, 1, 1], [], []>} : vector<32x64xbf16>, vector<64x8xbf16>, vector<32x8xf32> -> vector<32x8xf32>
    %78 = arith.addf %75, %77 : vector<32x8xf32>
    %c1_50 = arith.constant 1 : index
    %c0_51 = arith.constant 0 : index
    %c0_52 = arith.constant 0 : index
    %79 = vector.load %arg15[%c1_50, %c0_51, %c0_52] : memref<8x32x8xf32, #tpu.memory_space<vmem>>, vector<1x32x8xf32>
    %80 = vector.shape_cast %79 : vector<1x32x8xf32> to vector<32x8xf32>
    %81 = vector.shape_cast %78 : vector<32x8xf32> to vector<1x32x8xf32>
    tpu.vector_store %arg15[%c1_50, %c0_51, %c0_52], %81 {strides = array<i32>} : memref<8x32x8xf32, #tpu.memory_space<vmem>>, vector<1x32x8xf32>,
    %c1_53 = arith.constant 1 : index
    %c0_54 = arith.constant 0 : index
    %c0_55 = arith.constant 0 : index
    %82 = vector.load %arg13[%c1_53, %c0_54, %c0_55] : memref<8x32x1xf32, #tpu.memory_space<vmem>>, vector<1x32x1xf32>
    %83 = vector.shape_cast %82 : vector<1x32x1xf32> to vector<32x1xf32>
    %84 = vector.shape_cast %57 : vector<32x1xf32> to vector<1x32x1xf32>
    tpu.vector_store %arg13[%c1_53, %c0_54, %c0_55], %84 {strides = array<i32>} : memref<8x32x1xf32, #tpu.memory_space<vmem>>, vector<1x32x1xf32>,
    %85 = vector.extract_strided_slice %10 {offsets = [0, 16], sizes = [64, 8], strides = [1, 1]} : vector<64x128xbf16> to vector<64x8xbf16>
    %86 = vector.extract_strided_slice %10 {offsets = [0, 80], sizes = [64, 8], strides = [1, 1]} : vector<64x128xbf16> to vector<64x8xbf16>
    %c2 = arith.constant 2 : index
    %c0_56 = arith.constant 0 : index
    %c0_57 = arith.constant 0 : index
    %87 = vector.load %arg12[%c2, %c0_56, %c0_57] : memref<8x32x8xbf16, #tpu.memory_space<vmem>>, vector<1x32x8xbf16>
    %88 = vector.shape_cast %87 : vector<1x32x8xbf16> to vector<32x8xbf16>
    %cst_58 = arith.constant dense<0.000000e+00> : vector<32x64xf32>
    %89 = tpu.matmul %88, %85, %cst_58 {dimension_numbers = #tpu.dot_dimension_numbers<[1], [1], [0], [0], [0, 0, 1, 0], [], []>} : vector<32x8xbf16>, vector<64x8xbf16>, vector<32x64xf32> -> vector<32x64xf32>
    %c2_59 = arith.constant 2 : index
    %c0_60 = arith.constant 0 : index
    %c0_61 = arith.constant 0 : index
    %90 = vector.load %arg13[%c2_59, %c0_60, %c0_61] : memref<8x32x1xf32, #tpu.memory_space<vmem>>, vector<1x32x1xf32>
    %91 = vector.shape_cast %90 : vector<1x32x1xf32> to vector<32x1xf32>
    %cst_62 = arith.constant dense<0xFF800000> : vector<32xf32>
    %92 = vector.multi_reduction <maximumf>, %89, %cst_62 [1] : vector<32x64xf32> to vector<32xf32>
    %93 = vector.shape_cast %92 : vector<32xf32> to vector<32x1xf32>
    %94 = arith.maximumf %91, %93 : vector<32x1xf32>
    %95 = arith.subf %91, %94 : vector<32x1xf32>
    %96 = math.exp %95 : vector<32x1xf32>
    %97 = vector.broadcast %94 : vector<32x1xf32> to vector<32x64xf32>
    %98 = arith.subf %89, %97 : vector<32x64xf32>
    %99 = math.exp %98 : vector<32x64xf32>
    %c2_63 = arith.constant 2 : index
    %c0_64 = arith.constant 0 : index
    %c0_65 = arith.constant 0 : index
    %100 = vector.load %arg14[%c2_63, %c0_64, %c0_65] : memref<8x32x1xf32, #tpu.memory_space<vmem>>, vector<1x32x1xf32>
    %101 = vector.shape_cast %100 : vector<1x32x1xf32> to vector<32x1xf32>
    %102 = arith.mulf %96, %101 : vector<32x1xf32>
    %cst_66 = arith.constant dense<0.000000e+00> : vector<32xf32>
    %103 = vector.multi_reduction <add>, %99, %cst_66 [1] : vector<32x64xf32> to vector<32xf32>
    %104 = vector.shape_cast %103 : vector<32xf32> to vector<32x1xf32>
    %105 = arith.addf %102, %104 : vector<32x1xf32>
    %c2_67 = arith.constant 2 : index
    %c0_68 = arith.constant 0 : index
    %c0_69 = arith.constant 0 : index
    %106 = vector.load %arg14[%c2_67, %c0_68, %c0_69] : memref<8x32x1xf32, #tpu.memory_space<vmem>>, vector<1x32x1xf32>
    %107 = vector.shape_cast %106 : vector<1x32x1xf32> to vector<32x1xf32>
    %108 = vector.shape_cast %105 : vector<32x1xf32> to vector<1x32x1xf32>
    tpu.vector_store %arg14[%c2_67, %c0_68, %c0_69], %108 {strides = array<i32>} : memref<8x32x1xf32, #tpu.memory_space<vmem>>, vector<1x32x1xf32>,
    %c2_70 = arith.constant 2 : index
    %c0_71 = arith.constant 0 : index
    %c0_72 = arith.constant 0 : index
    %109 = vector.load %arg15[%c2_70, %c0_71, %c0_72] : memref<8x32x8xf32, #tpu.memory_space<vmem>>, vector<1x32x8xf32>
    %110 = vector.shape_cast %109 : vector<1x32x8xf32> to vector<32x8xf32>
    %111 = vector.broadcast %96 : vector<32x1xf32> to vector<32x8xf32>
    %112 = arith.mulf %111, %110 : vector<32x8xf32>
    %113 = arith.truncf %99 : vector<32x64xf32> to vector<32x64xbf16>
    %cst_73 = arith.constant dense<0.000000e+00> : vector<32x8xf32>
    %114 = tpu.matmul %113, %86, %cst_73 {dimension_numbers = #tpu.dot_dimension_numbers<[1], [0], [0], [1], [0, 0, 1, 1], [], []>} : vector<32x64xbf16>, vector<64x8xbf16>, vector<32x8xf32> -> vector<32x8xf32>
    %115 = arith.addf %112, %114 : vector<32x8xf32>
    %c2_74 = arith.constant 2 : index
    %c0_75 = arith.constant 0 : index
    %c0_76 = arith.constant 0 : index
    %116 = vector.load %arg15[%c2_74, %c0_75, %c0_76] : memref<8x32x8xf32, #tpu.memory_space<vmem>>, vector<1x32x8xf32>
    %117 = vector.shape_cast %116 : vector<1x32x8xf32> to vector<32x8xf32>
    %118 = vector.shape_cast %115 : vector<32x8xf32> to vector<1x32x8xf32>
    tpu.vector_store %arg15[%c2_74, %c0_75, %c0_76], %118 {strides = array<i32>} : memref<8x32x8xf32, #tpu.memory_space<vmem>>, vector<1x32x8xf32>,
    %c2_77 = arith.constant 2 : index
    %c0_78 = arith.constant 0 : index
    %c0_79 = arith.constant 0 : index
    %119 = vector.load %arg13[%c2_77, %c0_78, %c0_79] : memref<8x32x1xf32, #tpu.memory_space<vmem>>, vector<1x32x1xf32>
    %120 = vector.shape_cast %119 : vector<1x32x1xf32> to vector<32x1xf32>
    %121 = vector.shape_cast %94 : vector<32x1xf32> to vector<1x32x1xf32>
    tpu.vector_store %arg13[%c2_77, %c0_78, %c0_79], %121 {strides = array<i32>} : memref<8x32x1xf32, #tpu.memory_space<vmem>>, vector<1x32x1xf32>,
    %122 = vector.extract_strided_slice %10 {offsets = [0, 24], sizes = [64, 8], strides = [1, 1]} : vector<64x128xbf16> to vector<64x8xbf16>
    %123 = vector.extract_strided_slice %10 {offsets = [0, 88], sizes = [64, 8], strides = [1, 1]} : vector<64x128xbf16> to vector<64x8xbf16>
    %c3 = arith.constant 3 : index
    %c0_80 = arith.constant 0 : index
    %c0_81 = arith.constant 0 : index
    %124 = vector.load %arg12[%c3, %c0_80, %c0_81] : memref<8x32x8xbf16, #tpu.memory_space<vmem>>, vector<1x32x8xbf16>
    %125 = vector.shape_cast %124 : vector<1x32x8xbf16> to vector<32x8xbf16>
    %cst_82 = arith.constant dense<0.000000e+00> : vector<32x64xf32>
    %126 = tpu.matmul %125, %122, %cst_82 {dimension_numbers = #tpu.dot_dimension_numbers<[1], [1], [0], [0], [0, 0, 1, 0], [], []>} : vector<32x8xbf16>, vector<64x8xbf16>, vector<32x64xf32> -> vector<32x64xf32>
    %c3_83 = arith.constant 3 : index
    %c0_84 = arith.constant 0 : index
    %c0_85 = arith.constant 0 : index
    %127 = vector.load %arg13[%c3_83, %c0_84, %c0_85] : memref<8x32x1xf32, #tpu.memory_space<vmem>>, vector<1x32x1xf32>
    %128 = vector.shape_cast %127 : vector<1x32x1xf32> to vector<32x1xf32>
    %cst_86 = arith.constant dense<0xFF800000> : vector<32xf32>
    %129 = vector.multi_reduction <maximumf>, %126, %cst_86 [1] : vector<32x64xf32> to vector<32xf32>
    %130 = vector.shape_cast %129 : vector<32xf32> to vector<32x1xf32>
    %131 = arith.maximumf %128, %130 : vector<32x1xf32>
    %132 = arith.subf %128, %131 : vector<32x1xf32>
    %133 = math.exp %132 : vector<32x1xf32>
    %134 = vector.broadcast %131 : vector<32x1xf32> to vector<32x64xf32>
    %135 = arith.subf %126, %134 : vector<32x64xf32>
    %136 = math.exp %135 : vector<32x64xf32>
    %c3_87 = arith.constant 3 : index
    %c0_88 = arith.constant 0 : index
    %c0_89 = arith.constant 0 : index
    %137 = vector.load %arg14[%c3_87, %c0_88, %c0_89] : memref<8x32x1xf32, #tpu.memory_space<vmem>>, vector<1x32x1xf32>
    %138 = vector.shape_cast %137 : vector<1x32x1xf32> to vector<32x1xf32>
    %139 = arith.mulf %133, %138 : vector<32x1xf32>
    %cst_90 = arith.constant dense<0.000000e+00> : vector<32xf32>
    %140 = vector.multi_reduction <add>, %136, %cst_90 [1] : vector<32x64xf32> to vector<32xf32>
    %141 = vector.shape_cast %140 : vector<32xf32> to vector<32x1xf32>
    %142 = arith.addf %139, %141 : vector<32x1xf32>
    %c3_91 = arith.constant 3 : index
    %c0_92 = arith.constant 0 : index
    %c0_93 = arith.constant 0 : index
    %143 = vector.load %arg14[%c3_91, %c0_92, %c0_93] : memref<8x32x1xf32, #tpu.memory_space<vmem>>, vector<1x32x1xf32>
    %144 = vector.shape_cast %143 : vector<1x32x1xf32> to vector<32x1xf32>
    %145 = vector.shape_cast %142 : vector<32x1xf32> to vector<1x32x1xf32>
    tpu.vector_store %arg14[%c3_91, %c0_92, %c0_93], %145 {strides = array<i32>} : memref<8x32x1xf32, #tpu.memory_space<vmem>>, vector<1x32x1xf32>,
    %c3_94 = arith.constant 3 : index
    %c0_95 = arith.constant 0 : index
    %c0_96 = arith.constant 0 : index
    %146 = vector.load %arg15[%c3_94, %c0_95, %c0_96] : memref<8x32x8xf32, #tpu.memory_space<vmem>>, vector<1x32x8xf32>
    %147 = vector.shape_cast %146 : vector<1x32x8xf32> to vector<32x8xf32>
    %148 = vector.broadcast %133 : vector<32x1xf32> to vector<32x8xf32>
    %149 = arith.mulf %148, %147 : vector<32x8xf32>
    %150 = arith.truncf %136 : vector<32x64xf32> to vector<32x64xbf16>
    %cst_97 = arith.constant dense<0.000000e+00> : vector<32x8xf32>
    %151 = tpu.matmul %150, %123, %cst_97 {dimension_numbers = #tpu.dot_dimension_numbers<[1], [0], [0], [1], [0, 0, 1, 1], [], []>} : vector<32x64xbf16>, vector<64x8xbf16>, vector<32x8xf32> -> vector<32x8xf32>
    %152 = arith.addf %149, %151 : vector<32x8xf32>
    %c3_98 = arith.constant 3 : index
    %c0_99 = arith.constant 0 : index
    %c0_100 = arith.constant 0 : index
    %153 = vector.load %arg15[%c3_98, %c0_99, %c0_100] : memref<8x32x8xf32, #tpu.memory_space<vmem>>, vector<1x32x8xf32>
    %154 = vector.shape_cast %153 : vector<1x32x8xf32> to vector<32x8xf32>
    %155 = vector.shape_cast %152 : vector<32x8xf32> to vector<1x32x8xf32>
    tpu.vector_store %arg15[%c3_98, %c0_99, %c0_100], %155 {strides = array<i32>} : memref<8x32x8xf32, #tpu.memory_space<vmem>>, vector<1x32x8xf32>,
    %c3_101 = arith.constant 3 : index
    %c0_102 = arith.constant 0 : index
    %c0_103 = arith.constant 0 : index
    %156 = vector.load %arg13[%c3_101, %c0_102, %c0_103] : memref<8x32x1xf32, #tpu.memory_space<vmem>>, vector<1x32x1xf32>
    %157 = vector.shape_cast %156 : vector<1x32x1xf32> to vector<32x1xf32>
    %158 = vector.shape_cast %131 : vector<32x1xf32> to vector<1x32x1xf32>
    tpu.vector_store %arg13[%c3_101, %c0_102, %c0_103], %158 {strides = array<i32>} : memref<8x32x1xf32, #tpu.memory_space<vmem>>, vector<1x32x1xf32>,
    %159 = vector.extract_strided_slice %10 {offsets = [0, 32], sizes = [64, 8], strides = [1, 1]} : vector<64x128xbf16> to vector<64x8xbf16>
    %160 = vector.extract_strided_slice %10 {offsets = [0, 96], sizes = [64, 8], strides = [1, 1]} : vector<64x128xbf16> to vector<64x8xbf16>
    %c4 = arith.constant 4 : index
    %c0_104 = arith.constant 0 : index
    %c0_105 = arith.constant 0 : index
    %161 = vector.load %arg12[%c4, %c0_104, %c0_105] : memref<8x32x8xbf16, #tpu.memory_space<vmem>>, vector<1x32x8xbf16>
    %162 = vector.shape_cast %161 : vector<1x32x8xbf16> to vector<32x8xbf16>
    %cst_106 = arith.constant dense<0.000000e+00> : vector<32x64xf32>
    %163 = tpu.matmul %162, %159, %cst_106 {dimension_numbers = #tpu.dot_dimension_numbers<[1], [1], [0], [0], [0, 0, 1, 0], [], []>} : vector<32x8xbf16>, vector<64x8xbf16>, vector<32x64xf32> -> vector<32x64xf32>
    %c4_107 = arith.constant 4 : index
    %c0_108 = arith.constant 0 : index
    %c0_109 = arith.constant 0 : index
    %164 = vector.load %arg13[%c4_107, %c0_108, %c0_109] : memref<8x32x1xf32, #tpu.memory_space<vmem>>, vector<1x32x1xf32>
    %165 = vector.shape_cast %164 : vector<1x32x1xf32> to vector<32x1xf32>
    %cst_110 = arith.constant dense<0xFF800000> : vector<32xf32>
    %166 = vector.multi_reduction <maximumf>, %163, %cst_110 [1] : vector<32x64xf32> to vector<32xf32>
    %167 = vector.shape_cast %166 : vector<32xf32> to vector<32x1xf32>
    %168 = arith.maximumf %165, %167 : vector<32x1xf32>
    %169 = arith.subf %165, %168 : vector<32x1xf32>
    %170 = math.exp %169 : vector<32x1xf32>
    %171 = vector.broadcast %168 : vector<32x1xf32> to vector<32x64xf32>
    %172 = arith.subf %163, %171 : vector<32x64xf32>
    %173 = math.exp %172 : vector<32x64xf32>
    %c4_111 = arith.constant 4 : index
    %c0_112 = arith.constant 0 : index
    %c0_113 = arith.constant 0 : index
    %174 = vector.load %arg14[%c4_111, %c0_112, %c0_113] : memref<8x32x1xf32, #tpu.memory_space<vmem>>, vector<1x32x1xf32>
    %175 = vector.shape_cast %174 : vector<1x32x1xf32> to vector<32x1xf32>
    %176 = arith.mulf %170, %175 : vector<32x1xf32>
    %cst_114 = arith.constant dense<0.000000e+00> : vector<32xf32>
    %177 = vector.multi_reduction <add>, %173, %cst_114 [1] : vector<32x64xf32> to vector<32xf32>
    %178 = vector.shape_cast %177 : vector<32xf32> to vector<32x1xf32>
    %179 = arith.addf %176, %178 : vector<32x1xf32>
    %c4_115 = arith.constant 4 : index
    %c0_116 = arith.constant 0 : index
    %c0_117 = arith.constant 0 : index
    %180 = vector.load %arg14[%c4_115, %c0_116, %c0_117] : memref<8x32x1xf32, #tpu.memory_space<vmem>>, vector<1x32x1xf32>
    %181 = vector.shape_cast %180 : vector<1x32x1xf32> to vector<32x1xf32>
    %182 = vector.shape_cast %179 : vector<32x1xf32> to vector<1x32x1xf32>
    tpu.vector_store %arg14[%c4_115, %c0_116, %c0_117], %182 {strides = array<i32>} : memref<8x32x1xf32, #tpu.memory_space<vmem>>, vector<1x32x1xf32>,
    %c4_118 = arith.constant 4 : index
    %c0_119 = arith.constant 0 : index
    %c0_120 = arith.constant 0 : index
    %183 = vector.load %arg15[%c4_118, %c0_119, %c0_120] : memref<8x32x8xf32, #tpu.memory_space<vmem>>, vector<1x32x8xf32>
    %184 = vector.shape_cast %183 : vector<1x32x8xf32> to vector<32x8xf32>
    %185 = vector.broadcast %170 : vector<32x1xf32> to vector<32x8xf32>
    %186 = arith.mulf %185, %184 : vector<32x8xf32>
    %187 = arith.truncf %173 : vector<32x64xf32> to vector<32x64xbf16>
    %cst_121 = arith.constant dense<0.000000e+00> : vector<32x8xf32>
    %188 = tpu.matmul %187, %160, %cst_121 {dimension_numbers = #tpu.dot_dimension_numbers<[1], [0], [0], [1], [0, 0, 1, 1], [], []>} : vector<32x64xbf16>, vector<64x8xbf16>, vector<32x8xf32> -> vector<32x8xf32>
    %189 = arith.addf %186, %188 : vector<32x8xf32>
    %c4_122 = arith.constant 4 : index
    %c0_123 = arith.constant 0 : index
    %c0_124 = arith.constant 0 : index
    %190 = vector.load %arg15[%c4_122, %c0_123, %c0_124] : memref<8x32x8xf32, #tpu.memory_space<vmem>>, vector<1x32x8xf32>
    %191 = vector.shape_cast %190 : vector<1x32x8xf32> to vector<32x8xf32>
    %192 = vector.shape_cast %189 : vector<32x8xf32> to vector<1x32x8xf32>
    tpu.vector_store %arg15[%c4_122, %c0_123, %c0_124], %192 {strides = array<i32>} : memref<8x32x8xf32, #tpu.memory_space<vmem>>, vector<1x32x8xf32>,
    %c4_125 = arith.constant 4 : index
    %c0_126 = arith.constant 0 : index
    %c0_127 = arith.constant 0 : index
    %193 = vector.load %arg13[%c4_125, %c0_126, %c0_127] : memref<8x32x1xf32, #tpu.memory_space<vmem>>, vector<1x32x1xf32>
    %194 = vector.shape_cast %193 : vector<1x32x1xf32> to vector<32x1xf32>
    %195 = vector.shape_cast %168 : vector<32x1xf32> to vector<1x32x1xf32>
    tpu.vector_store %arg13[%c4_125, %c0_126, %c0_127], %195 {strides = array<i32>} : memref<8x32x1xf32, #tpu.memory_space<vmem>>, vector<1x32x1xf32>,
    %196 = vector.extract_strided_slice %10 {offsets = [0, 40], sizes = [64, 8], strides = [1, 1]} : vector<64x128xbf16> to vector<64x8xbf16>
    %197 = vector.extract_strided_slice %10 {offsets = [0, 104], sizes = [64, 8], strides = [1, 1]} : vector<64x128xbf16> to vector<64x8xbf16>
    %c5 = arith.constant 5 : index
    %c0_128 = arith.constant 0 : index
    %c0_129 = arith.constant 0 : index
    %198 = vector.load %arg12[%c5, %c0_128, %c0_129] : memref<8x32x8xbf16, #tpu.memory_space<vmem>>, vector<1x32x8xbf16>
    %199 = vector.shape_cast %198 : vector<1x32x8xbf16> to vector<32x8xbf16>
    %cst_130 = arith.constant dense<0.000000e+00> : vector<32x64xf32>
    %200 = tpu.matmul %199, %196, %cst_130 {dimension_numbers = #tpu.dot_dimension_numbers<[1], [1], [0], [0], [0, 0, 1, 0], [], []>} : vector<32x8xbf16>, vector<64x8xbf16>, vector<32x64xf32> -> vector<32x64xf32>
    %c5_131 = arith.constant 5 : index
    %c0_132 = arith.constant 0 : index
    %c0_133 = arith.constant 0 : index
    %201 = vector.load %arg13[%c5_131, %c0_132, %c0_133] : memref<8x32x1xf32, #tpu.memory_space<vmem>>, vector<1x32x1xf32>
    %202 = vector.shape_cast %201 : vector<1x32x1xf32> to vector<32x1xf32>
    %cst_134 = arith.constant dense<0xFF800000> : vector<32xf32>
    %203 = vector.multi_reduction <maximumf>, %200, %cst_134 [1] : vector<32x64xf32> to vector<32xf32>
    %204 = vector.shape_cast %203 : vector<32xf32> to vector<32x1xf32>
    %205 = arith.maximumf %202, %204 : vector<32x1xf32>
    %206 = arith.subf %202, %205 : vector<32x1xf32>
    %207 = math.exp %206 : vector<32x1xf32>
    %208 = vector.broadcast %205 : vector<32x1xf32> to vector<32x64xf32>
    %209 = arith.subf %200, %208 : vector<32x64xf32>
    %210 = math.exp %209 : vector<32x64xf32>
    %c5_135 = arith.constant 5 : index
    %c0_136 = arith.constant 0 : index
    %c0_137 = arith.constant 0 : index
    %211 = vector.load %arg14[%c5_135, %c0_136, %c0_137] : memref<8x32x1xf32, #tpu.memory_space<vmem>>, vector<1x32x1xf32>
    %212 = vector.shape_cast %211 : vector<1x32x1xf32> to vector<32x1xf32>
    %213 = arith.mulf %207, %212 : vector<32x1xf32>
    %cst_138 = arith.constant dense<0.000000e+00> : vector<32xf32>
    %214 = vector.multi_reduction <add>, %210, %cst_138 [1] : vector<32x64xf32> to vector<32xf32>
    %215 = vector.shape_cast %214 : vector<32xf32> to vector<32x1xf32>
    %216 = arith.addf %213, %215 : vector<32x1xf32>
    %c5_139 = arith.constant 5 : index
    %c0_140 = arith.constant 0 : index
    %c0_141 = arith.constant 0 : index
    %217 = vector.load %arg14[%c5_139, %c0_140, %c0_141] : memref<8x32x1xf32, #tpu.memory_space<vmem>>, vector<1x32x1xf32>
    %218 = vector.shape_cast %217 : vector<1x32x1xf32> to vector<32x1xf32>
    %219 = vector.shape_cast %216 : vector<32x1xf32> to vector<1x32x1xf32>
    tpu.vector_store %arg14[%c5_139, %c0_140, %c0_141], %219 {strides = array<i32>} : memref<8x32x1xf32, #tpu.memory_space<vmem>>, vector<1x32x1xf32>,
    %c5_142 = arith.constant 5 : index
    %c0_143 = arith.constant 0 : index
    %c0_144 = arith.constant 0 : index
    %220 = vector.load %arg15[%c5_142, %c0_143, %c0_144] : memref<8x32x8xf32, #tpu.memory_space<vmem>>, vector<1x32x8xf32>
    %221 = vector.shape_cast %220 : vector<1x32x8xf32> to vector<32x8xf32>
    %222 = vector.broadcast %207 : vector<32x1xf32> to vector<32x8xf32>
    %223 = arith.mulf %222, %221 : vector<32x8xf32>
    %224 = arith.truncf %210 : vector<32x64xf32> to vector<32x64xbf16>
    %cst_145 = arith.constant dense<0.000000e+00> : vector<32x8xf32>
    %225 = tpu.matmul %224, %197, %cst_145 {dimension_numbers = #tpu.dot_dimension_numbers<[1], [0], [0], [1], [0, 0, 1, 1], [], []>} : vector<32x64xbf16>, vector<64x8xbf16>, vector<32x8xf32> -> vector<32x8xf32>
    %226 = arith.addf %223, %225 : vector<32x8xf32>
    %c5_146 = arith.constant 5 : index
    %c0_147 = arith.constant 0 : index
    %c0_148 = arith.constant 0 : index
    %227 = vector.load %arg15[%c5_146, %c0_147, %c0_148] : memref<8x32x8xf32, #tpu.memory_space<vmem>>, vector<1x32x8xf32>
    %228 = vector.shape_cast %227 : vector<1x32x8xf32> to vector<32x8xf32>
    %229 = vector.shape_cast %226 : vector<32x8xf32> to vector<1x32x8xf32>
    tpu.vector_store %arg15[%c5_146, %c0_147, %c0_148], %229 {strides = array<i32>} : memref<8x32x8xf32, #tpu.memory_space<vmem>>, vector<1x32x8xf32>,
    %c5_149 = arith.constant 5 : index
    %c0_150 = arith.constant 0 : index
    %c0_151 = arith.constant 0 : index
    %230 = vector.load %arg13[%c5_149, %c0_150, %c0_151] : memref<8x32x1xf32, #tpu.memory_space<vmem>>, vector<1x32x1xf32>
    %231 = vector.shape_cast %230 : vector<1x32x1xf32> to vector<32x1xf32>
    %232 = vector.shape_cast %205 : vector<32x1xf32> to vector<1x32x1xf32>
    tpu.vector_store %arg13[%c5_149, %c0_150, %c0_151], %232 {strides = array<i32>} : memref<8x32x1xf32, #tpu.memory_space<vmem>>, vector<1x32x1xf32>,
    %233 = vector.extract_strided_slice %10 {offsets = [0, 48], sizes = [64, 8], strides = [1, 1]} : vector<64x128xbf16> to vector<64x8xbf16>
    %234 = vector.extract_strided_slice %10 {offsets = [0, 112], sizes = [64, 8], strides = [1, 1]} : vector<64x128xbf16> to vector<64x8xbf16>
    %c6 = arith.constant 6 : index
    %c0_152 = arith.constant 0 : index
    %c0_153 = arith.constant 0 : index
    %235 = vector.load %arg12[%c6, %c0_152, %c0_153] : memref<8x32x8xbf16, #tpu.memory_space<vmem>>, vector<1x32x8xbf16>
    %236 = vector.shape_cast %235 : vector<1x32x8xbf16> to vector<32x8xbf16>
    %cst_154 = arith.constant dense<0.000000e+00> : vector<32x64xf32>
    %237 = tpu.matmul %236, %233, %cst_154 {dimension_numbers = #tpu.dot_dimension_numbers<[1], [1], [0], [0], [0, 0, 1, 0], [], []>} : vector<32x8xbf16>, vector<64x8xbf16>, vector<32x64xf32> -> vector<32x64xf32>
    %c6_155 = arith.constant 6 : index
    %c0_156 = arith.constant 0 : index
    %c0_157 = arith.constant 0 : index
    %238 = vector.load %arg13[%c6_155, %c0_156, %c0_157] : memref<8x32x1xf32, #tpu.memory_space<vmem>>, vector<1x32x1xf32>
    %239 = vector.shape_cast %238 : vector<1x32x1xf32> to vector<32x1xf32>
    %cst_158 = arith.constant dense<0xFF800000> : vector<32xf32>
    %240 = vector.multi_reduction <maximumf>, %237, %cst_158 [1] : vector<32x64xf32> to vector<32xf32>
    %241 = vector.shape_cast %240 : vector<32xf32> to vector<32x1xf32>
    %242 = arith.maximumf %239, %241 : vector<32x1xf32>
    %243 = arith.subf %239, %242 : vector<32x1xf32>
    %244 = math.exp %243 : vector<32x1xf32>
    %245 = vector.broadcast %242 : vector<32x1xf32> to vector<32x64xf32>
    %246 = arith.subf %237, %245 : vector<32x64xf32>
    %247 = math.exp %246 : vector<32x64xf32>
    %c6_159 = arith.constant 6 : index
    %c0_160 = arith.constant 0 : index
    %c0_161 = arith.constant 0 : index
    %248 = vector.load %arg14[%c6_159, %c0_160, %c0_161] : memref<8x32x1xf32, #tpu.memory_space<vmem>>, vector<1x32x1xf32>
    %249 = vector.shape_cast %248 : vector<1x32x1xf32> to vector<32x1xf32>
    %250 = arith.mulf %244, %249 : vector<32x1xf32>
    %cst_162 = arith.constant dense<0.000000e+00> : vector<32xf32>
    %251 = vector.multi_reduction <add>, %247, %cst_162 [1] : vector<32x64xf32> to vector<32xf32>
    %252 = vector.shape_cast %251 : vector<32xf32> to vector<32x1xf32>
    %253 = arith.addf %250, %252 : vector<32x1xf32>
    %c6_163 = arith.constant 6 : index
    %c0_164 = arith.constant 0 : index
    %c0_165 = arith.constant 0 : index
    %254 = vector.load %arg14[%c6_163, %c0_164, %c0_165] : memref<8x32x1xf32, #tpu.memory_space<vmem>>, vector<1x32x1xf32>
    %255 = vector.shape_cast %254 : vector<1x32x1xf32> to vector<32x1xf32>
    %256 = vector.shape_cast %253 : vector<32x1xf32> to vector<1x32x1xf32>
    tpu.vector_store %arg14[%c6_163, %c0_164, %c0_165], %256 {strides = array<i32>} : memref<8x32x1xf32, #tpu.memory_space<vmem>>, vector<1x32x1xf32>,
    %c6_166 = arith.constant 6 : index
    %c0_167 = arith.constant 0 : index
    %c0_168 = arith.constant 0 : index
    %257 = vector.load %arg15[%c6_166, %c0_167, %c0_168] : memref<8x32x8xf32, #tpu.memory_space<vmem>>, vector<1x32x8xf32>
    %258 = vector.shape_cast %257 : vector<1x32x8xf32> to vector<32x8xf32>
    %259 = vector.broadcast %244 : vector<32x1xf32> to vector<32x8xf32>
    %260 = arith.mulf %259, %258 : vector<32x8xf32>
    %261 = arith.truncf %247 : vector<32x64xf32> to vector<32x64xbf16>
    %cst_169 = arith.constant dense<0.000000e+00> : vector<32x8xf32>
    %262 = tpu.matmul %261, %234, %cst_169 {dimension_numbers = #tpu.dot_dimension_numbers<[1], [0], [0], [1], [0, 0, 1, 1], [], []>} : vector<32x64xbf16>, vector<64x8xbf16>, vector<32x8xf32> -> vector<32x8xf32>
    %263 = arith.addf %260, %262 : vector<32x8xf32>
    %c6_170 = arith.constant 6 : index
    %c0_171 = arith.constant 0 : index
    %c0_172 = arith.constant 0 : index
    %264 = vector.load %arg15[%c6_170, %c0_171, %c0_172] : memref<8x32x8xf32, #tpu.memory_space<vmem>>, vector<1x32x8xf32>
    %265 = vector.shape_cast %264 : vector<1x32x8xf32> to vector<32x8xf32>
    %266 = vector.shape_cast %263 : vector<32x8xf32> to vector<1x32x8xf32>
    tpu.vector_store %arg15[%c6_170, %c0_171, %c0_172], %266 {strides = array<i32>} : memref<8x32x8xf32, #tpu.memory_space<vmem>>, vector<1x32x8xf32>,
    %c6_173 = arith.constant 6 : index
    %c0_174 = arith.constant 0 : index
    %c0_175 = arith.constant 0 : index
    %267 = vector.load %arg13[%c6_173, %c0_174, %c0_175] : memref<8x32x1xf32, #tpu.memory_space<vmem>>, vector<1x32x1xf32>
    %268 = vector.shape_cast %267 : vector<1x32x1xf32> to vector<32x1xf32>
    %269 = vector.shape_cast %242 : vector<32x1xf32> to vector<1x32x1xf32>
    tpu.vector_store %arg13[%c6_173, %c0_174, %c0_175], %269 {strides = array<i32>} : memref<8x32x1xf32, #tpu.memory_space<vmem>>, vector<1x32x1xf32>,
    %270 = vector.extract_strided_slice %10 {offsets = [0, 56], sizes = [64, 8], strides = [1, 1]} : vector<64x128xbf16> to vector<64x8xbf16>
    %271 = vector.extract_strided_slice %10 {offsets = [0, 120], sizes = [64, 8], strides = [1, 1]} : vector<64x128xbf16> to vector<64x8xbf16>
    %c7 = arith.constant 7 : index
    %c0_176 = arith.constant 0 : index
    %c0_177 = arith.constant 0 : index
    %272 = vector.load %arg12[%c7, %c0_176, %c0_177] : memref<8x32x8xbf16, #tpu.memory_space<vmem>>, vector<1x32x8xbf16>
    %273 = vector.shape_cast %272 : vector<1x32x8xbf16> to vector<32x8xbf16>
    %cst_178 = arith.constant dense<0.000000e+00> : vector<32x64xf32>
    %274 = tpu.matmul %273, %270, %cst_178 {dimension_numbers = #tpu.dot_dimension_numbers<[1], [1], [0], [0], [0, 0, 1, 0], [], []>} : vector<32x8xbf16>, vector<64x8xbf16>, vector<32x64xf32> -> vector<32x64xf32>
    %c7_179 = arith.constant 7 : index
    %c0_180 = arith.constant 0 : index
    %c0_181 = arith.constant 0 : index
    %275 = vector.load %arg13[%c7_179, %c0_180, %c0_181] : memref<8x32x1xf32, #tpu.memory_space<vmem>>, vector<1x32x1xf32>
    %276 = vector.shape_cast %275 : vector<1x32x1xf32> to vector<32x1xf32>
    %cst_182 = arith.constant dense<0xFF800000> : vector<32xf32>
    %277 = vector.multi_reduction <maximumf>, %274, %cst_182 [1] : vector<32x64xf32> to vector<32xf32>
    %278 = vector.shape_cast %277 : vector<32xf32> to vector<32x1xf32>
    %279 = arith.maximumf %276, %278 : vector<32x1xf32>
    %280 = arith.subf %276, %279 : vector<32x1xf32>
    %281 = math.exp %280 : vector<32x1xf32>
    %282 = vector.broadcast %279 : vector<32x1xf32> to vector<32x64xf32>
    %283 = arith.subf %274, %282 : vector<32x64xf32>
    %284 = math.exp %283 : vector<32x64xf32>
    %c7_183 = arith.constant 7 : index
    %c0_184 = arith.constant 0 : index
    %c0_185 = arith.constant 0 : index
    %285 = vector.load %arg14[%c7_183, %c0_184, %c0_185] : memref<8x32x1xf32, #tpu.memory_space<vmem>>, vector<1x32x1xf32>
    %286 = vector.shape_cast %285 : vector<1x32x1xf32> to vector<32x1xf32>
    %287 = arith.mulf %281, %286 : vector<32x1xf32>
    %cst_186 = arith.constant dense<0.000000e+00> : vector<32xf32>
    %288 = vector.multi_reduction <add>, %284, %cst_186 [1] : vector<32x64xf32> to vector<32xf32>
    %289 = vector.shape_cast %288 : vector<32xf32> to vector<32x1xf32>
    %290 = arith.addf %287, %289 : vector<32x1xf32>
    %c7_187 = arith.constant 7 : index
    %c0_188 = arith.constant 0 : index
    %c0_189 = arith.constant 0 : index
    %291 = vector.load %arg14[%c7_187, %c0_188, %c0_189] : memref<8x32x1xf32, #tpu.memory_space<vmem>>, vector<1x32x1xf32>
    %292 = vector.shape_cast %291 : vector<1x32x1xf32> to vector<32x1xf32>
    %293 = vector.shape_cast %290 : vector<32x1xf32> to vector<1x32x1xf32>
    tpu.vector_store %arg14[%c7_187, %c0_188, %c0_189], %293 {strides = array<i32>} : memref<8x32x1xf32, #tpu.memory_space<vmem>>, vector<1x32x1xf32>,
    %c7_190 = arith.constant 7 : index
    %c0_191 = arith.constant 0 : index
    %c0_192 = arith.constant 0 : index
    %294 = vector.load %arg15[%c7_190, %c0_191, %c0_192] : memref<8x32x8xf32, #tpu.memory_space<vmem>>, vector<1x32x8xf32>
    %295 = vector.shape_cast %294 : vector<1x32x8xf32> to vector<32x8xf32>
    %296 = vector.broadcast %281 : vector<32x1xf32> to vector<32x8xf32>
    %297 = arith.mulf %296, %295 : vector<32x8xf32>
    %298 = arith.truncf %284 : vector<32x64xf32> to vector<32x64xbf16>
    %cst_193 = arith.constant dense<0.000000e+00> : vector<32x8xf32>
    %299 = tpu.matmul %298, %271, %cst_193 {dimension_numbers = #tpu.dot_dimension_numbers<[1], [0], [0], [1], [0, 0, 1, 1], [], []>} : vector<32x64xbf16>, vector<64x8xbf16>, vector<32x8xf32> -> vector<32x8xf32>
    %300 = arith.addf %297, %299 : vector<32x8xf32>
    %c7_194 = arith.constant 7 : index
    %c0_195 = arith.constant 0 : index
    %c0_196 = arith.constant 0 : index
    %301 = vector.load %arg15[%c7_194, %c0_195, %c0_196] : memref<8x32x8xf32, #tpu.memory_space<vmem>>, vector<1x32x8xf32>
    %302 = vector.shape_cast %301 : vector<1x32x8xf32> to vector<32x8xf32>
    %303 = vector.shape_cast %300 : vector<32x8xf32> to vector<1x32x8xf32>
    tpu.vector_store %arg15[%c7_194, %c0_195, %c0_196], %303 {strides = array<i32>} : memref<8x32x8xf32, #tpu.memory_space<vmem>>, vector<1x32x8xf32>,
    %c7_197 = arith.constant 7 : index
    %c0_198 = arith.constant 0 : index
    %c0_199 = arith.constant 0 : index
    %304 = vector.load %arg13[%c7_197, %c0_198, %c0_199] : memref<8x32x1xf32, #tpu.memory_space<vmem>>, vector<1x32x1xf32>
    %305 = vector.shape_cast %304 : vector<1x32x1xf32> to vector<32x1xf32>
    %306 = vector.shape_cast %279 : vector<32x1xf32> to vector<1x32x1xf32>
    tpu.vector_store %arg13[%c7_197, %c0_198, %c0_199], %306 {strides = array<i32>} : memref<8x32x1xf32, #tpu.memory_space<vmem>>, vector<1x32x1xf32>,
    %c0_i32_200 = arith.constant 0 : i32
    %307 = arith.cmpi eq, %arg2, %c0_i32_200 : i32
    %308 = arith.extui %307 : i1 to i32
    %c0_i32_201 = arith.constant 0 : i32
    %309 = arith.cmpi ne, %308, %c0_i32_201 : i32
    scf.if %309 {
      %c0_202 = arith.constant 0 : index
      %c0_203 = arith.constant 0 : index
      %c0_204 = arith.constant 0 : index
      %310 = vector.load %arg14[%c0_202, %c0_203, %c0_204] : memref<8x32x1xf32, #tpu.memory_space<vmem>>, vector<1x32x1xf32>
      %311 = vector.shape_cast %310 : vector<1x32x1xf32> to vector<32x1xf32>
      %312 = tpu.reciprocal %311 {approx = true} : vector<32x1xf32> -> vector<32x1xf32>
      %c0_205 = arith.constant 0 : index
      %c0_206 = arith.constant 0 : index
      %c0_207 = arith.constant 0 : index
      %313 = vector.load %arg15[%c0_205, %c0_206, %c0_207] : memref<8x32x8xf32, #tpu.memory_space<vmem>>, vector<1x32x8xf32>
      %314 = vector.shape_cast %313 : vector<1x32x8xf32> to vector<32x8xf32>
      %315 = vector.broadcast %312 : vector<32x1xf32> to vector<32x8xf32>
      %316 = arith.mulf %314, %315 : vector<32x8xf32>
      %c1_208 = arith.constant 1 : index
      %c0_209 = arith.constant 0 : index
      %c0_210 = arith.constant 0 : index
      %317 = vector.load %arg14[%c1_208, %c0_209, %c0_210] : memref<8x32x1xf32, #tpu.memory_space<vmem>>, vector<1x32x1xf32>
      %318 = vector.shape_cast %317 : vector<1x32x1xf32> to vector<32x1xf32>
      %319 = tpu.reciprocal %318 {approx = true} : vector<32x1xf32> -> vector<32x1xf32>
      %c1_211 = arith.constant 1 : index
      %c0_212 = arith.constant 0 : index
      %c0_213 = arith.constant 0 : index
      %320 = vector.load %arg15[%c1_211, %c0_212, %c0_213] : memref<8x32x8xf32, #tpu.memory_space<vmem>>, vector<1x32x8xf32>
      %321 = vector.shape_cast %320 : vector<1x32x8xf32> to vector<32x8xf32>
      %322 = vector.broadcast %319 : vector<32x1xf32> to vector<32x8xf32>
      %323 = arith.mulf %321, %322 : vector<32x8xf32>
      %c2_214 = arith.constant 2 : index
      %c0_215 = arith.constant 0 : index
      %c0_216 = arith.constant 0 : index
      %324 = vector.load %arg14[%c2_214, %c0_215, %c0_216] : memref<8x32x1xf32, #tpu.memory_space<vmem>>, vector<1x32x1xf32>
      %325 = vector.shape_cast %324 : vector<1x32x1xf32> to vector<32x1xf32>
      %326 = tpu.reciprocal %325 {approx = true} : vector<32x1xf32> -> vector<32x1xf32>
      %c2_217 = arith.constant 2 : index
      %c0_218 = arith.constant 0 : index
      %c0_219 = arith.constant 0 : index
      %327 = vector.load %arg15[%c2_217, %c0_218, %c0_219] : memref<8x32x8xf32, #tpu.memory_space<vmem>>, vector<1x32x8xf32>
      %328 = vector.shape_cast %327 : vector<1x32x8xf32> to vector<32x8xf32>
      %329 = vector.broadcast %326 : vector<32x1xf32> to vector<32x8xf32>
      %330 = arith.mulf %328, %329 : vector<32x8xf32>
      %c3_220 = arith.constant 3 : index
      %c0_221 = arith.constant 0 : index
      %c0_222 = arith.constant 0 : index
      %331 = vector.load %arg14[%c3_220, %c0_221, %c0_222] : memref<8x32x1xf32, #tpu.memory_space<vmem>>, vector<1x32x1xf32>
      %332 = vector.shape_cast %331 : vector<1x32x1xf32> to vector<32x1xf32>
      %333 = tpu.reciprocal %332 {approx = true} : vector<32x1xf32> -> vector<32x1xf32>
      %c3_223 = arith.constant 3 : index
      %c0_224 = arith.constant 0 : index
      %c0_225 = arith.constant 0 : index
      %334 = vector.load %arg15[%c3_223, %c0_224, %c0_225] : memref<8x32x8xf32, #tpu.memory_space<vmem>>, vector<1x32x8xf32>
      %335 = vector.shape_cast %334 : vector<1x32x8xf32> to vector<32x8xf32>
      %336 = vector.broadcast %333 : vector<32x1xf32> to vector<32x8xf32>
      %337 = arith.mulf %335, %336 : vector<32x8xf32>
      %c4_226 = arith.constant 4 : index
      %c0_227 = arith.constant 0 : index
      %c0_228 = arith.constant 0 : index
      %338 = vector.load %arg14[%c4_226, %c0_227, %c0_228] : memref<8x32x1xf32, #tpu.memory_space<vmem>>, vector<1x32x1xf32>
      %339 = vector.shape_cast %338 : vector<1x32x1xf32> to vector<32x1xf32>
      %340 = tpu.reciprocal %339 {approx = true} : vector<32x1xf32> -> vector<32x1xf32>
      %c4_229 = arith.constant 4 : index
      %c0_230 = arith.constant 0 : index
      %c0_231 = arith.constant 0 : index
      %341 = vector.load %arg15[%c4_229, %c0_230, %c0_231] : memref<8x32x8xf32, #tpu.memory_space<vmem>>, vector<1x32x8xf32>
      %342 = vector.shape_cast %341 : vector<1x32x8xf32> to vector<32x8xf32>
      %343 = vector.broadcast %340 : vector<32x1xf32> to vector<32x8xf32>
      %344 = arith.mulf %342, %343 : vector<32x8xf32>
      %c5_232 = arith.constant 5 : index
      %c0_233 = arith.constant 0 : index
      %c0_234 = arith.constant 0 : index
      %345 = vector.load %arg14[%c5_232, %c0_233, %c0_234] : memref<8x32x1xf32, #tpu.memory_space<vmem>>, vector<1x32x1xf32>
      %346 = vector.shape_cast %345 : vector<1x32x1xf32> to vector<32x1xf32>
      %347 = tpu.reciprocal %346 {approx = true} : vector<32x1xf32> -> vector<32x1xf32>
      %c5_235 = arith.constant 5 : index
      %c0_236 = arith.constant 0 : index
      %c0_237 = arith.constant 0 : index
      %348 = vector.load %arg15[%c5_235, %c0_236, %c0_237] : memref<8x32x8xf32, #tpu.memory_space<vmem>>, vector<1x32x8xf32>
      %349 = vector.shape_cast %348 : vector<1x32x8xf32> to vector<32x8xf32>
      %350 = vector.broadcast %347 : vector<32x1xf32> to vector<32x8xf32>
      %351 = arith.mulf %349, %350 : vector<32x8xf32>
      %c6_238 = arith.constant 6 : index
      %c0_239 = arith.constant 0 : index
      %c0_240 = arith.constant 0 : index
      %352 = vector.load %arg14[%c6_238, %c0_239, %c0_240] : memref<8x32x1xf32, #tpu.memory_space<vmem>>, vector<1x32x1xf32>
      %353 = vector.shape_cast %352 : vector<1x32x1xf32> to vector<32x1xf32>
      %354 = tpu.reciprocal %353 {approx = true} : vector<32x1xf32> -> vector<32x1xf32>
      %c6_241 = arith.constant 6 : index
      %c0_242 = arith.constant 0 : index
      %c0_243 = arith.constant 0 : index
      %355 = vector.load %arg15[%c6_241, %c0_242, %c0_243] : memref<8x32x8xf32, #tpu.memory_space<vmem>>, vector<1x32x8xf32>
      %356 = vector.shape_cast %355 : vector<1x32x8xf32> to vector<32x8xf32>
      %357 = vector.broadcast %354 : vector<32x1xf32> to vector<32x8xf32>
      %358 = arith.mulf %356, %357 : vector<32x8xf32>
      %c7_244 = arith.constant 7 : index
      %c0_245 = arith.constant 0 : index
      %c0_246 = arith.constant 0 : index
      %359 = vector.load %arg14[%c7_244, %c0_245, %c0_246] : memref<8x32x1xf32, #tpu.memory_space<vmem>>, vector<1x32x1xf32>
      %360 = vector.shape_cast %359 : vector<1x32x1xf32> to vector<32x1xf32>
      %361 = tpu.reciprocal %360 {approx = true} : vector<32x1xf32> -> vector<32x1xf32>
      %c7_247 = arith.constant 7 : index
      %c0_248 = arith.constant 0 : index
      %c0_249 = arith.constant 0 : index
      %362 = vector.load %arg15[%c7_247, %c0_248, %c0_249] : memref<8x32x8xf32, #tpu.memory_space<vmem>>, vector<1x32x8xf32>
      %363 = vector.shape_cast %362 : vector<1x32x8xf32> to vector<32x8xf32>
      %364 = vector.broadcast %361 : vector<32x1xf32> to vector<32x8xf32>
      %365 = arith.mulf %363, %364 : vector<32x8xf32>
      %366 = tpu.concatenate %316, %323, %330, %337, %344, %351, %358, %365 in 1 : vector<32x8xf32>, vector<32x8xf32>, vector<32x8xf32>, vector<32x8xf32>, vector<32x8xf32>, vector<32x8xf32>, vector<32x8xf32>, vector<32x8xf32> -> vector<32x64xf32>
      %367 = arith.truncf %366 : vector<32x64xf32> to vector<32x64xbf16>
      %c0_250 = arith.constant 0 : index
      %c0_251 = arith.constant 0 : index
      %368 = vector.load %arg9[%c0_250, %c0_251] : memref<64x64xbf16, #tpu.memory_space<vmem>>, vector<64x64xbf16>
      %cst_252 = arith.constant dense<0.000000e+00> : vector<32x64xf32>
      %369 = tpu.matmul %367, %368, %cst_252 {dimension_numbers = #tpu.dot_dimension_numbers<[1], [0], [0], [1], [0, 0, 1, 1], [], []>} : vector<32x64xbf16>, vector<64x64xbf16>, vector<32x64xf32> -> vector<32x64xf32>
      %c0_253 = arith.constant 0 : index
      %c0_254 = arith.constant 0 : index
      %370 = vector.load %arg10[%c0_253, %c0_254] : memref<1x64xf32, #tpu.memory_space<vmem>>, vector<1x64xf32>
      %371 = vector.broadcast %370 : vector<1x64xf32> to vector<32x64xf32>
      %372 = arith.addf %369, %371 : vector<32x64xf32>
      %c0_255 = arith.constant 0 : index
      %c0_256 = arith.constant 0 : index
      %c0_257 = arith.constant 0 : index
      %373 = vector.load %arg11[%c0_255, %c0_256, %c0_257] : memref<1x32x64xf32, #tpu.memory_space<vmem>>, vector<1x32x64xf32>
      %374 = vector.shape_cast %373 : vector<1x32x64xf32> to vector<32x64xf32>
      %375 = vector.shape_cast %372 : vector<32x64xf32> to vector<1x32x64xf32>
      tpu.vector_store %arg11[%c0_255, %c0_256, %c0_257], %375 {strides = array<i32>} : memref<1x32x64xf32, #tpu.memory_space<vmem>>, vector<1x32x64xf32>,
    } else {
    }
    return
  }
  func.func @transform_0(%arg0: i32, %arg1: i32, %arg2: i32) -> (i32, i32, i32) {
    %c0_i32 = arith.constant 0 : i32
    %c0_i32_0 = arith.constant 0 : i32
    return %arg0, %arg1, %c0_i32 : i32, i32, i32
  }
  func.func @transform_1(%arg0: i32, %arg1: i32, %arg2: i32) -> (i32, i32, i32) {
    %c0_i32 = arith.constant 0 : i32
    %c0_i32_0 = arith.constant 0 : i32
    return %arg0, %arg2, %c0_i32 : i32, i32, i32
  }
  func.func @transform_2(%arg0: i32, %arg1: i32, %arg2: i32) -> (i32, i32) {
    %c0_i32 = arith.constant 0 : i32
    %c0_i32_0 = arith.constant 0 : i32
    %c0_i32_1 = arith.constant 0 : i32
    return %c0_i32, %c0_i32_0 : i32, i32
  }
  func.func @transform_3(%arg0: i32, %arg1: i32, %arg2: i32) -> (i32, i32) {
    %c0_i32 = arith.constant 0 : i32
    %c0_i32_0 = arith.constant 0 : i32
    %c0_i32_1 = arith.constant 0 : i32
    return %c0_i32, %c0_i32_0 : i32, i32
  }
  func.func @transform_4(%arg0: i32, %arg1: i32, %arg2: i32) -> (i32, i32) {
    %c0_i32 = arith.constant 0 : i32
    %c0_i32_0 = arith.constant 0 : i32
    %c0_i32_1 = arith.constant 0 : i32
    return %c0_i32, %c0_i32_0 : i32, i32
  }
  func.func @transform_5(%arg0: i32, %arg1: i32, %arg2: i32) -> (i32, i32) {
    %c0_i32 = arith.constant 0 : i32
    %c0_i32_0 = arith.constant 0 : i32
    %c0_i32_1 = arith.constant 0 : i32
    return %c0_i32, %c0_i32_0 : i32, i32
  }
  func.func @transform_6(%arg0: i32, %arg1: i32, %arg2: i32) -> (i32, i32) {
    %c0_i32 = arith.constant 0 : i32
    %c0_i32_0 = arith.constant 0 : i32
    %c0_i32_1 = arith.constant 0 : i32
    return %c0_i32, %c0_i32_0 : i32, i32
  }
  func.func @transform_7(%arg0: i32, %arg1: i32, %arg2: i32) -> (i32, i32) {
    %c0_i32 = arith.constant 0 : i32
    %c0_i32_0 = arith.constant 0 : i32
    %c0_i32_1 = arith.constant 0 : i32
    return %c0_i32, %c0_i32_0 : i32, i32
  }
  func.func @transform_8(%arg0: i32, %arg1: i32, %arg2: i32) -> (i32, i32, i32) {
    %c0_i32 = arith.constant 0 : i32
    %c0_i32_0 = arith.constant 0 : i32
    return %arg0, %arg1, %c0_i32 : i32, i32, i32
  }
}

</mosaic_0001>

<llo_original>
// kernel: attention_forward.1
$region0: #{attention_forward.1}
  #allocation0 [shape = 'u32[]', space=smem, size = 0x4, offset = 0x4, fixed_abs, tag = 'smem constant byte address 0x4 - core index']
  #allocation1 [shape = 'u32[72,128]{1,0:T(1,128)}', space=vmem, size = 0x9000, scoped, tag = 'internal scratch']
  #allocation2 [shape = 'bf16[8,32,8]{2,1,0:T(8,128)(2,1)}', space=vmem, size = 0x10000, scoped, tag = 'scratch operand']
  #allocation3 [shape = 'f32[8,32,1]{2,1,0:T(8,128)}', space=vmem, size = 0x20000, scoped, tag = 'scratch operand']
  #allocation4 [shape = 'f32[8,32,1]{2,1,0:T(8,128)}', space=vmem, size = 0x20000, scoped, tag = 'scratch operand']
  #allocation5 [shape = 'f32[8,32,8]{2,1,0:T(8,128)}', space=vmem, size = 0x20000, scoped, tag = 'scratch operand']
  %s0 = inlined_call_operand.vmem [shape: bf16[2,64,64], index: 0, kind: input, shape index: {}, may-alias: {0,1}]
  %s1 = inlined_call_operand.vmem [shape: bf16[2,64,64], index: 1, kind: input, shape index: {}, may-alias: {0,1}]
  %s2 = inlined_call_operand.vmem [shape: bf16[64,64], index: 2, kind: input, shape index: {}]
  %s3 = inlined_call_operand.vmem [shape: f32[1,64], index: 3, kind: input, shape index: {}]
  %s4 = inlined_call_operand.vmem [shape: bf16[64,128], index: 4, kind: input, shape index: {}]
  %s5 = inlined_call_operand.vmem [shape: f32[1,128], index: 5, kind: input, shape index: {}]
  %s6 = inlined_call_operand.vmem [shape: bf16[64,64], index: 6, kind: input, shape index: {}]
  %s7 = inlined_call_operand.vmem [shape: f32[1,64], index: 7, kind: input, shape index: {}]
  %s8 = inlined_call_operand.hbm [shape: f32[2,64,64], index: 8, kind: output, shape index: {}]
  %s9 = sld [smem:[#allocation0]]
  $region73: #{attention_forward.1} parent=0
    _
  %s11 = ssub.s32 1, %s9
  %s12 = scalar_select 0, %s11, %s9
  $region1: #{attention_forward.1} parent=0
    #allocation6 [shape = 'u8[32768]{0}', space=vmem, size = 0x8000, scoped, tag = 'output window, operand 0']
    #allocation7 [shape = 's32[2]{0}', space=sflag, size = 0x8, scoped, tag = 'scoped memory for attention_forward.1']
    %13 = vsyncpa [#allocation7], 0
    %s14 = scalar_lea.sflag [#allocation7], 1
    %15 = vsyncpa %s14, 0
    loop: start=0, step=1, limit=6
    $region2: #{attention_forward.1} parent=1 // loop_pre_header
      _
    $region3: #{attention_forward.1} parent=1 // loop_header
      %s17 = sphi 0, %s21
      %p18 = scmp.ge.s32.totalorder %s17, 6
      %s24 = sphi 0, %s43
      %s25 = sphi 0, %s39
      %s26 = sphi 0, %s35
      %s27 = sphi 0, %s24
      %s28 = sphi 0, %s25
      %s29 = sphi 0, %s26
      %s30 = sphi 0, %s27
      %s31 = sphi 0, %s28
      %s32 = sphi 0, %s29
      %s48 = sphi 0, %s50
      %s51 = sphi 0, %s48
      %s52 = sphi 0, %s51
      %s68 = sphi 0, %s52
      %s76 = sphi 0, %s78
      %s79 = sphi 0, %s76
      %s80 = sphi 0, %s79
      %s96 = sphi 0, %s80
      %s100 = sphi 0, %s100
      %s102 = sphi 0, %s100
      %s103 = sphi 0, %s102
      %s117 = sphi 0, %s103
      %s121 = sphi 0, %s121
      %s123 = sphi 0, %s121
      %s124 = sphi 0, %s123
      %s138 = sphi 0, %s124
      %s142 = sphi 0, %s142
      %s144 = sphi 0, %s142
      %s145 = sphi 0, %s144
      %s159 = sphi 0, %s145
      %s163 = sphi 0, %s163
      %s165 = sphi 0, %s163
      %s166 = sphi 0, %s165
      %s180 = sphi 0, %s166
      %s184 = sphi 0, %s184
      %s186 = sphi 0, %s184
      %s187 = sphi 0, %s186
      %s201 = sphi 0, %s187
      %s205 = sphi 0, %s205
      %s207 = sphi 0, %s205
      %s208 = sphi 0, %s207
      %s222 = sphi 0, %s208
      %s230 = sphi 0, %s232
      %s233 = sphi 0, %s230
      %s234 = sphi 0, %s233
      %s250 = sphi 0, %s234
    $region4: #{attention_forward.1} parent=1 // loop_header_branch
      %20 = sbr.rel (%p18) target = $region8
    $region5: #{attention_forward.1} parent=1 // loop_body
      %s22 = ssub.s32 %s17, 1
      %s23 = ssub.s32 %s17, 2
      %s33 = sadd.s32 1, %s26
      %p34 = scmp.ge.s32.totalorder %s33, 1
      %s35 = scalar_select %p34, 0, %s33
      %s36 = sadd.s32 1, %s25
      %s37 = scalar_select %p34, %s36, %s25
      %p38 = scmp.ge.s32.totalorder %s37, 2
      %s39 = scalar_select %p38, 0, %s37
      %s40 = sadd.s32 1, %s24
      %s41 = scalar_select %p38, %s40, %s24
      %p42 = scmp.ge.s32.totalorder %s41, 2
      %s43 = scalar_select %p42, 0, %s41
      %s44 = ssub.s32 %s24, %s43
      %s45 = ssub.s32 %s25, %s39
      %s46 = sor.u32 %s44, %s45
      %p47 = scmp.eq.s32.totalorder %s46, 0
      %s49 = sadd.s32 %s48, 1
      %s50 = scalar_select %p47, %s48, %s49
      %p53 = pneg %p47
      %p54 = scmp.eq.s32.totalorder %s17, 3
      %p55 = por %p53, %p54
      %p56 = scmp.ne.s32.totalorder %s48, %s51
      %p57 = scmp.eq.s32.totalorder %s17, 0
      %p58 = por %p56, %p57
      %p59 = scmp.ne.s32.totalorder %s48, %s51
      %p60 = scmp.eq.s32.totalorder %s22, 3
      %p61 = por %p59, %p60
      %p62 = scmp.ne.s32.totalorder %s51, %s52
      %p63 = scmp.eq.s32.totalorder %s22, 0
      %p64 = por %p62, %p63
      %p65 = scmp.ne.s32.totalorder %s51, %s52
      %p66 = scmp.eq.s32.totalorder %s23, 3
      %p67 = por %p65, %p66
      %p69 = scmp.ne.s32.totalorder %s52, %s68
      %p70 = scmp.eq.s32.totalorder %s23, 0
      %p71 = por %p69, %p70
      %s72 = ssub.s32 %s24, %s43
      %s73 = ssub.s32 %s26, %s35
      %s74 = sor.u32 %s72, %s73
      %p75 = scmp.eq.s32.totalorder %s74, 0
      %s77 = sadd.s32 %s76, 1
      %s78 = scalar_select %p75, %s76, %s77
      %p81 = pneg %p75
      %p82 = scmp.eq.s32.totalorder %s17, 3
      %p83 = por %p81, %p82
      %p84 = scmp.ne.s32.totalorder %s76, %s79
      %p85 = scmp.eq.s32.totalorder %s17, 0
      %p86 = por %p84, %p85
      %p87 = scmp.ne.s32.totalorder %s76, %s79
      %p88 = scmp.eq.s32.totalorder %s22, 3
      %p89 = por %p87, %p88
      %p90 = scmp.ne.s32.totalorder %s79, %s80
      %p91 = scmp.eq.s32.totalorder %s22, 0
      %p92 = por %p90, %p91
      %p93 = scmp.ne.s32.totalorder %s79, %s80
      %p94 = scmp.eq.s32.totalorder %s23, 3
      %p95 = por %p93, %p94
      %p97 = scmp.ne.s32.totalorder %s80, %s96
      %p98 = scmp.eq.s32.totalorder %s23, 0
      %p99 = por %p97, %p98
      %s101 = sadd.s32 %s100, 1
      %p104 = scmp.eq.s32.totalorder %s17, 3
      %p105 = scmp.ne.s32.totalorder %s100, %s102
      %p106 = scmp.eq.s32.totalorder %s17, 0
      %p107 = por %p105, %p106
      %p108 = scmp.ne.s32.totalorder %s100, %s102
      %p109 = scmp.eq.s32.totalorder %s22, 3
      %p110 = por %p108, %p109
      %p111 = scmp.ne.s32.totalorder %s102, %s103
      %p112 = scmp.eq.s32.totalorder %s22, 0
      %p113 = por %p111, %p112
      %p114 = scmp.ne.s32.totalorder %s102, %s103
      %p115 = scmp.eq.s32.totalorder %s23, 3
      %p116 = por %p114, %p115
      %p118 = scmp.ne.s32.totalorder %s103, %s117
      %p119 = scmp.eq.s32.totalorder %s23, 0
      %p120 = por %p118, %p119
      %s122 = sadd.s32 %s121, 1
      %p125 = scmp.eq.s32.totalorder %s17, 3
      %p126 = scmp.ne.s32.totalorder %s121, %s123
      %p127 = scmp.eq.s32.totalorder %s17, 0
      %p128 = por %p126, %p127
      %p129 = scmp.ne.s32.totalorder %s121, %s123
      %p130 = scmp.eq.s32.totalorder %s22, 3
      %p131 = por %p129, %p130
      %p132 = scmp.ne.s32.totalorder %s123, %s124
      %p133 = scmp.eq.s32.totalorder %s22, 0
      %p134 = por %p132, %p133
      %p135 = scmp.ne.s32.totalorder %s123, %s124
      %p136 = scmp.eq.s32.totalorder %s23, 3
      %p137 = por %p135, %p136
      %p139 = scmp.ne.s32.totalorder %s124, %s138
      %p140 = scmp.eq.s32.totalorder %s23, 0
      %p141 = por %p139, %p140
      %s143 = sadd.s32 %s142, 1
      %p146 = scmp.eq.s32.totalorder %s17, 3
      %p147 = scmp.ne.s32.totalorder %s142, %s144
      %p148 = scmp.eq.s32.totalorder %s17, 0
      %p149 = por %p147, %p148
      %p150 = scmp.ne.s32.totalorder %s142, %s144
      %p151 = scmp.eq.s32.totalorder %s22, 3
      %p152 = por %p150, %p151
      %p153 = scmp.ne.s32.totalorder %s144, %s145
      %p154 = scmp.eq.s32.totalorder %s22, 0
      %p155 = por %p153, %p154
      %p156 = scmp.ne.s32.totalorder %s144, %s145
      %p157 = scmp.eq.s32.totalorder %s23, 3
      %p158 = por %p156, %p157
      %p160 = scmp.ne.s32.totalorder %s145, %s159
      %p161 = scmp.eq.s32.totalorder %s23, 0
      %p162 = por %p160, %p161
      %s164 = sadd.s32 %s163, 1
      %p167 = scmp.eq.s32.totalorder %s17, 3
      %p168 = scmp.ne.s32.totalorder %s163, %s165
      %p169 = scmp.eq.s32.totalorder %s17, 0
      %p170 = por %p168, %p169
      %p171 = scmp.ne.s32.totalorder %s163, %s165
      %p172 = scmp.eq.s32.totalorder %s22, 3
      %p173 = por %p171, %p172
      %p174 = scmp.ne.s32.totalorder %s165, %s166
      %p175 = scmp.eq.s32.totalorder %s22, 0
      %p176 = por %p174, %p175
      %p177 = scmp.ne.s32.totalorder %s165, %s166
      %p178 = scmp.eq.s32.totalorder %s23, 3
      %p179 = por %p177, %p178
      %p181 = scmp.ne.s32.totalorder %s166, %s180
      %p182 = scmp.eq.s32.totalorder %s23, 0
      %p183 = por %p181, %p182
      %s185 = sadd.s32 %s184, 1
      %p188 = scmp.eq.s32.totalorder %s17, 3
      %p189 = scmp.ne.s32.totalorder %s184, %s186
      %p190 = scmp.eq.s32.totalorder %s17, 0
      %p191 = por %p189, %p190
      %p192 = scmp.ne.s32.totalorder %s184, %s186
      %p193 = scmp.eq.s32.totalorder %s22, 3
      %p194 = por %p192, %p193
      %p195 = scmp.ne.s32.totalorder %s186, %s187
      %p196 = scmp.eq.s32.totalorder %s22, 0
      %p197 = por %p195, %p196
      %p198 = scmp.ne.s32.totalorder %s186, %s187
      %p199 = scmp.eq.s32.totalorder %s23, 3
      %p200 = por %p198, %p199
      %p202 = scmp.ne.s32.totalorder %s187, %s201
      %p203 = scmp.eq.s32.totalorder %s23, 0
      %p204 = por %p202, %p203
      %s206 = sadd.s32 %s205, 1
      %p209 = scmp.eq.s32.totalorder %s17, 3
      %p210 = scmp.ne.s32.totalorder %s205, %s207
      %p211 = scmp.eq.s32.totalorder %s17, 0
      %p212 = por %p210, %p211
      %p213 = scmp.ne.s32.totalorder %s205, %s207
      %p214 = scmp.eq.s32.totalorder %s22, 3
      %p215 = por %p213, %p214
      %p216 = scmp.ne.s32.totalorder %s207, %s208
      %p217 = scmp.eq.s32.totalorder %s22, 0
      %p218 = por %p216, %p217
      %p219 = scmp.ne.s32.totalorder %s207, %s208
      %p220 = scmp.eq.s32.totalorder %s23, 3
      %p221 = por %p219, %p220
      %p223 = scmp.ne.s32.totalorder %s208, %s222
      %p224 = scmp.eq.s32.totalorder %s23, 0
      %p225 = por %p223, %p224
      %s226 = ssub.s32 %s24, %s43
      %s227 = ssub.s32 %s25, %s39
      %s228 = sor.u32 %s226, %s227
      %p229 = scmp.eq.s32.totalorder %s228, 0
      %s231 = sadd.s32 %s230, 1
      %s232 = scalar_select %p229, %s230, %s231
      %p235 = pneg %p229
      %p236 = scmp.eq.s32.totalorder %s17, 3
      %p237 = por %p235, %p236
      %p238 = scmp.ne.s32.totalorder %s230, %s233
      %p239 = scmp.eq.s32.totalorder %s17, 0
      %p240 = por %p238, %p239
      %p241 = scmp.ne.s32.totalorder %s230, %s233
      %p242 = scmp.eq.s32.totalorder %s22, 3
      %p243 = por %p241, %p242
      %p244 = scmp.ne.s32.totalorder %s233, %s234
      %p245 = scmp.eq.s32.totalorder %s22, 0
      %p246 = por %p244, %p245
      %p247 = scmp.ne.s32.totalorder %s233, %s234
      %p248 = scmp.eq.s32.totalorder %s23, 3
      %p249 = por %p247, %p248
      %p251 = scmp.ne.s32.totalorder %s234, %s250
      %p252 = scmp.eq.s32.totalorder %s23, 0
      %p253 = por %p251, %p252
      %p254 = scmp.le.s32.totalorder 1, %s17
      %p255 = scmp.lt.s32.totalorder %s17, 5
      %p256 = pnand %p254, %p255
      %p257 = pneg %p256
      // Predicated region
      $region9: #{attention_forward.1} parent=5 // pred_check
        _
      $region10: #{attention_forward.1} parent=5 // pred_check_branch
        %259 = sbr.rel (%p256) target = $region12
      $region11: #{attention_forward.1} parent=5 // pred_region
        %s260 = ssub.s32 %s17, 1
        // Predicated region
        $region13: #{attention_forward.1} parent=11 // pred_check
          %p261 = pneg %p113
        $region14: #{attention_forward.1} parent=11 // pred_check_branch
          %263 = sbr.rel (%p261) target = $region16
        $region15: #{attention_forward.1} parent=11 // pred_region
          _
        $region16: #{attention_forward.1} parent=11 // pred_fallthru
          _
        // Predicated region
        $region17: #{attention_forward.1} parent=11 // pred_check
          %p264 = pneg %p134
        $region18: #{attention_forward.1} parent=11 // pred_check_branch
          %266 = sbr.rel (%p264) target = $region20
        $region19: #{attention_forward.1} parent=11 // pred_region
          _
        $region20: #{attention_forward.1} parent=11 // pred_fallthru
          _
        // Predicated region
        $region21: #{attention_forward.1} parent=11 // pred_check
          %p267 = pneg %p155
        $region22: #{attention_forward.1} parent=11 // pred_check_branch
          %269 = sbr.rel (%p267) target = $region24
        $region23: #{attention_forward.1} parent=11 // pred_region
          _
        $region24: #{attention_forward.1} parent=11 // pred_fallthru
          _
        // Predicated region
        $region25: #{attention_forward.1} parent=11 // pred_check
          %p270 = pneg %p176
        $region26: #{attention_forward.1} parent=11 // pred_check_branch
          %272 = sbr.rel (%p270) target = $region28
        $region27: #{attention_forward.1} parent=11 // pred_region
          _
        $region28: #{attention_forward.1} parent=11 // pred_fallthru
          _
        // Predicated region
        $region29: #{attention_forward.1} parent=11 // pred_check
          %p273 = pneg %p197
        $region30: #{attention_forward.1} parent=11 // pred_check_branch
          %275 = sbr.rel (%p273) target = $region32
        $region31: #{attention_forward.1} parent=11 // pred_region
          _
        $region32: #{attention_forward.1} parent=11 // pred_fallthru
          _
        // Predicated region
        $region33: #{attention_forward.1} parent=11 // pred_check
          %p276 = pneg %p218
        $region34: #{attention_forward.1} parent=11 // pred_check_branch
          %278 = sbr.rel (%p276) target = $region36
        $region35: #{attention_forward.1} parent=11 // pred_region
          _
        $region36: #{attention_forward.1} parent=11 // pred_fallthru
          _
      $region12: #{attention_forward.1} parent=5 // pred_fallthru
        _
      %p279 = scmp.lt.s32.totalorder %s17, 4
      // Predicated region
      $region37: #{attention_forward.1} parent=5 // pred_check
        %p280 = pneg %p279
      $region38: #{attention_forward.1} parent=5 // pred_check_branch
        %282 = sbr.rel (%p280) target = $region40
      $region39: #{attention_forward.1} parent=5 // pred_region
        // Predicated region
        $region41: #{attention_forward.1} parent=39 // pred_check
          %p283 = pneg %p58
        $region42: #{attention_forward.1} parent=39 // pred_check_branch
          %285 = sbr.rel (%p283) target = $region44
        $region43: #{attention_forward.1} parent=39 // pred_region
          %s286 = smul.u32 4, %s25
          %p287 = scmp.lt.s32.totalorder %s24, 1
          %s288 = scalar_select %p287, %s24, 1
          %p289 = scmp.lt.s32.totalorder %s286, 7
          %s290 = scalar_select %p289, %s286, 7
          %s291 = smul.addr %s288, 8
          %s292 = sadd.s32 %s290, %s291
          %s293 = smul.addr %s292, 4
          %s294 = scalar_lea.vmem %s0, %s293
          %s295 = smul.u32 4, %s25
        $region44: #{attention_forward.1} parent=39 // pred_fallthru
          _
        // Predicated region
        $region45: #{attention_forward.1} parent=39 // pred_check
          %p296 = pneg %p86
        $region46: #{attention_forward.1} parent=39 // pred_check_branch
          %298 = sbr.rel (%p296) target = $region48
        $region47: #{attention_forward.1} parent=39 // pred_region
          %s299 = smul.u32 8, %s26
          %p300 = scmp.lt.s32.totalorder %s24, 1
          %s301 = scalar_select %p300, %s24, 1
          %p302 = scmp.lt.s32.totalorder %s299, 7
          %s303 = scalar_select %p302, %s299, 7
          %s304 = smul.addr %s301, 8
          %s305 = sadd.s32 %s303, %s304
          %s306 = smul.addr %s305, 4
          %s307 = scalar_lea.vmem %s1, %s306
          %s308 = smul.u32 8, %s26
        $region48: #{attention_forward.1} parent=39 // pred_fallthru
          _
      $region40: #{attention_forward.1} parent=5 // pred_fallthru
        _
      %p309 = scmp.le.s32.totalorder 1, %s17
      %p310 = scmp.lt.s32.totalorder %s17, 5
      %p311 = pnand %p309, %p310
      %p312 = pneg %p311
      // Predicated region
      $region49: #{attention_forward.1} parent=5 // pred_check
        _
      $region50: #{attention_forward.1} parent=5 // pred_check_branch
        %314 = sbr.rel (%p311) target = $region52
      $region51: #{attention_forward.1} parent=5 // pred_region
        %s315 = ssub.s32 %s17, 1
        %s316 = smul.u32 4, %s28
        %p317 = scmp.lt.s32.totalorder %s27, 1
        %s318 = scalar_select %p317, %s27, 1
        %p319 = scmp.lt.s32.totalorder %s316, 7
        %s320 = scalar_select %p319, %s316, 7
        %s321 = smul.addr %s318, 8
        %s322 = sadd.s32 %s320, %s321
        %s323 = smul.addr %s322, 4
        %s324 = scalar_lea.vmem %s0, %s323
        %p325 = pneg %p64
        %p326 = pneg %p61
        %s327 = smul.u32 8, %s29
        %p328 = scmp.lt.s32.totalorder %s27, 1
        %s329 = scalar_select %p328, %s27, 1
        %p330 = scmp.lt.s32.totalorder %s327, 7
        %s331 = scalar_select %p330, %s327, 7
        %s332 = smul.addr %s329, 8
        %s333 = sadd.s32 %s331, %s332
        %s334 = smul.addr %s333, 4
        %s335 = scalar_lea.vmem %s1, %s334
        %p336 = pneg %p92
        %p337 = pneg %p89
        %p338 = pneg %p113
        %p339 = pneg %p110
        %p340 = pneg %p134
        %p341 = pneg %p131
        %p342 = pneg %p155
        %p343 = pneg %p152
        %p344 = pneg %p176
        %p345 = pneg %p173
        %p346 = pneg %p197
        %p347 = pneg %p194
        %p348 = pneg %p218
        %p349 = pneg %p215
        %p350 = pneg %p246
        %p351 = pneg %p243
        %s352 = sand.u32 %s233, 1
        %s353 = scalar_lea.sflag [#allocation7], %s352
        %s354 = sand.u32 %s233, 1
        %s355 = smul.addr %s354, 32
        %s356 = scalar_lea.vmem [#allocation6], %s355
        %s357 = smul.u32 4, %s28
        %p358 = scmp.lt.s32.totalorder %s27, 1
        %s359 = scalar_select %p358, %s27, 1
        %p360 = scmp.lt.s32.totalorder %s357, 7
        %s361 = scalar_select %p360, %s357, 7
        %s362 = smul.addr %s359, 8
        %s363 = sadd.s32 %s361, %s362
        %s364 = smul.addr %s363, 4
        %s365 = scalar_lea.vmem %s0, %s364
        %s366 = smul.u32 4, %s28
        %s367 = smul.u32 8, %s29
        %p368 = scmp.lt.s32.totalorder %s27, 1
        %s369 = scalar_select %p368, %s27, 1
        %p370 = scmp.lt.s32.totalorder %s367, 7
        %s371 = scalar_select %p370, %s367, 7
        %s372 = smul.addr %s369, 8
        %s373 = sadd.s32 %s371, %s372
        %s374 = smul.addr %s373, 4
        %s375 = scalar_lea.vmem %s1, %s374
        %s376 = smul.u32 8, %s29
        %s377 = smul.u32 4, %s28
        %p379 = scmp.eq.s32.totalorder %s29, 0
        // Predicated region
        $region53: #{attention_forward.1} parent=51 // pred_check
          %p380 = pneg %p379
        $region54: #{attention_forward.1} parent=51 // pred_check_branch
          %382 = sbr.rel (%p380) target = $region56
        $region55: #{attention_forward.1} parent=51 // pred_region
          %v383 = vld [vmem:[%s365] sm:$0xf]
          %v384 = vld [vmem:[%s365 + $0x4] sm:$0xf]
          %v385 = vld [vmem:[%s365 + $0x8] sm:$0xf]
          %v386 = vld [vmem:[%s365 + $0xc] sm:$0xf]
          %v387 = vld [vmem:[%s2] sm:$0xf]
          %v388 = vld [vmem:[%s2 + $0x4] sm:$0xf]
          %v389 = vld [vmem:[%s2 + $0x8] sm:$0xf]
          %v390 = vld [vmem:[%s2 + $0xc] sm:$0xf]
          %v391 = vld [vmem:[%s2 + $0x10] sm:$0xf]
          %v392 = vld [vmem:[%s2 + $0x14] sm:$0xf]
          %v393 = vld [vmem:[%s2 + $0x18] sm:$0xf]
          %v394 = vld [vmem:[%s2 + $0x1c] sm:$0xf]
          %v395 = vld [vmem:[%s3] sm:$0x1]
          %v397 = vperm.slane %v395, 0
          %v403 = vunpack.c.l.b16 %v383
          %v404 = vunpack.c.l.b16 %v384
          %v405 = vunpack.c.l.b16 %v385
          %v406 = vunpack.c.l.b16 %v386
          %v407 = vpack.c.b16 %v404, %v403
          %v408 = vpack.c.b16 %v406, %v405
          %v417 = vunpack.c.l.b16 %v387
          %v418 = vunpack.c.l.b16 %v388
          %v419 = vunpack.c.l.b16 %v389
          %v420 = vunpack.c.l.b16 %v390
          %v421 = vunpack.c.l.b16 %v391
          %v422 = vunpack.c.l.b16 %v392
          %v423 = vunpack.c.l.b16 %v393
          %v424 = vunpack.c.l.b16 %v394
          %v425 = vpack.c.b16 %v418, %v417
          %v426 = vpack.c.b16 %v420, %v419
          %v427 = vpack.c.b16 %v422, %v421
          %v428 = vpack.c.b16 %v424, %v423
          %vm433 = vcmask 523264
          %v435 = vsel %vm433, %v407, 0
          %v438 = vsel %vm433, %v408, 0
          %440 = vmatpush.bf16.msra.mxu0 0
          %441 = vmatpush.bf16.msra.mxu0 0
          %442 = vmatpush.bf16.msra.mxu0 0
          %443 = vmatpush.bf16.msra.mxu0 0
          %444 = vmatpush.bf16.msra.mxu0 %v428
          %445 = vmatpush.bf16.msra.mxu0 %v427
          %446 = vmatpush.bf16.msra.mxu0 %v426
          %447 = vmatpush.bf16.msra.mxu0 %v425
          %448 = vmatmul.bf16.gmra.mxu0 %v435
          %v449 = vpop.f32.mrf.mxu0
          %v450 = vadd.f32 %v397, %v449
          %v451 = vpop.f32.mrf.mxu0
          %v452 = vadd.f32 %v397, %v451
          %453 = vmatmul.bf16.gmra.mxu0 %v438
          %v454 = vpop.f32.mrf.mxu0
          %v455 = vadd.f32 %v397, %v454
          %v456 = vpop.f32.mrf.mxu0
          %v457 = vadd.f32 %v397, %v456
          %458 = vdwg.mxu0
          %v459 = vpack.c.bf16 %v450, %v450
          %v460 = vpack.c.bf16 %v452, %v452
          %v461 = vpack.c.bf16 %v455, %v455
          %v462 = vpack.c.bf16 %v457, %v457
          %vm463 = vcmask 60416
          %464 = vst.msk [vmem:[#allocation2] sm:$0xf] %vm463, %v459
          %465 = vst.msk [vmem:[#allocation2 + $0x4] sm:$0xf] %vm463, %v460
          %466 = vst.msk [vmem:[#allocation2 + $0x8] sm:$0xf] %vm463, %v461
          %467 = vst.msk [vmem:[#allocation2 + $0xc] sm:$0xf] %vm463, %v462
          %472 = vrot.lane.b32.xlu0 %v459, 120
          %v473 = vpop.permute.xlu0 %472
          %474 = vrot.lane.b32.xlu0 %v460, 120
          %v475 = vpop.permute.xlu0 %474
          %476 = vrot.lane.b32.xlu0 %v461, 120
          %v477 = vpop.permute.xlu0 %476
          %478 = vrot.lane.b32.xlu0 %v462, 120
          %v479 = vpop.permute.xlu0 %478
          %s484 = scalar_lea.vmem [#allocation2], 16
          %485 = vst.msk [vmem:[%s484] sm:$0xf] %vm463, %v473
          %486 = vst.msk [vmem:[%s484 + $0x4] sm:$0xf] %vm463, %v475
          %487 = vst.msk [vmem:[%s484 + $0x8] sm:$0xf] %vm463, %v477
          %488 = vst.msk [vmem:[%s484 + $0xc] sm:$0xf] %vm463, %v479
          %489 = vrot.lane.b32.xlu0 %v459, 112
          %v490 = vpop.permute.xlu0 %489
          %491 = vrot.lane.b32.xlu0 %v460, 112
          %v492 = vpop.permute.xlu0 %491
          %493 = vrot.lane.b32.xlu0 %v461, 112
          %v494 = vpop.permute.xlu0 %493
          %495 = vrot.lane.b32.xlu0 %v462, 112
          %v496 = vpop.permute.xlu0 %495
          %s501 = scalar_lea.vmem [#allocation2], 32
          %502 = vst.msk [vmem:[%s501] sm:$0xf] %vm463, %v490
          %503 = vst.msk [vmem:[%s501 + $0x4] sm:$0xf] %vm463, %v492
          %504 = vst.msk [vmem:[%s501 + $0x8] sm:$0xf] %vm463, %v494
          %505 = vst.msk [vmem:[%s501 + $0xc] sm:$0xf] %vm463, %v496
          %506 = vrot.lane.b32.xlu0 %v459, 104
          %v507 = vpop.permute.xlu0 %506
          %508 = vrot.lane.b32.xlu0 %v460, 104
          %v509 = vpop.permute.xlu0 %508
          %510 = vrot.lane.b32.xlu0 %v461, 104
          %v511 = vpop.permute.xlu0 %510
          %512 = vrot.lane.b32.xlu0 %v462, 104
          %v513 = vpop.permute.xlu0 %512
          %s518 = scalar_lea.vmem [#allocation2], 48
          %519 = vst.msk [vmem:[%s518] sm:$0xf] %vm463, %v507
          %520 = vst.msk [vmem:[%s518 + $0x4] sm:$0xf] %vm463, %v509
          %521 = vst.msk [vmem:[%s518 + $0x8] sm:$0xf] %vm463, %v511
          %522 = vst.msk [vmem:[%s518 + $0xc] sm:$0xf] %vm463, %v513
          %523 = vrot.lane.b32.xlu0 %v459, 96
          %v524 = vpop.permute.xlu0 %523
          %525 = vrot.lane.b32.xlu0 %v460, 96
          %v526 = vpop.permute.xlu0 %525
          %527 = vrot.lane.b32.xlu0 %v461, 96
          %v528 = vpop.permute.xlu0 %527
          %529 = vrot.lane.b32.xlu0 %v462, 96
          %v530 = vpop.permute.xlu0 %529
          %s535 = scalar_lea.vmem [#allocation2], 64
          %536 = vst.msk [vmem:[%s535] sm:$0xf] %vm463, %v524
          %537 = vst.msk [vmem:[%s535 + $0x4] sm:$0xf] %vm463, %v526
          %538 = vst.msk [vmem:[%s535 + $0x8] sm:$0xf] %vm463, %v528
          %539 = vst.msk [vmem:[%s535 + $0xc] sm:$0xf] %vm463, %v530
          %540 = vrot.lane.b32.xlu0 %v459, 88
          %v541 = vpop.permute.xlu0 %540
          %542 = vrot.lane.b32.xlu0 %v460, 88
          %v543 = vpop.permute.xlu0 %542
          %544 = vrot.lane.b32.xlu0 %v461, 88
          %v545 = vpop.permute.xlu0 %544
          %546 = vrot.lane.b32.xlu0 %v462, 88
          %v547 = vpop.permute.xlu0 %546
          %s552 = scalar_lea.vmem [#allocation2], 80
          %553 = vst.msk [vmem:[%s552] sm:$0xf] %vm463, %v541
          %554 = vst.msk [vmem:[%s552 + $0x4] sm:$0xf] %vm463, %v543
          %555 = vst.msk [vmem:[%s552 + $0x8] sm:$0xf] %vm463, %v545
          %556 = vst.msk [vmem:[%s552 + $0xc] sm:$0xf] %vm463, %v547
          %557 = vrot.lane.b32.xlu0 %v459, 80
          %v558 = vpop.permute.xlu0 %557
          %559 = vrot.lane.b32.xlu0 %v460, 80
          %v560 = vpop.permute.xlu0 %559
          %561 = vrot.lane.b32.xlu0 %v461, 80
          %v562 = vpop.permute.xlu0 %561
          %563 = vrot.lane.b32.xlu0 %v462, 80
          %v564 = vpop.permute.xlu0 %563
          %s569 = scalar_lea.vmem [#allocation2], 96
          %570 = vst.msk [vmem:[%s569] sm:$0xf] %vm463, %v558
          %571 = vst.msk [vmem:[%s569 + $0x4] sm:$0xf] %vm463, %v560
          %572 = vst.msk [vmem:[%s569 + $0x8] sm:$0xf] %vm463, %v562
          %573 = vst.msk [vmem:[%s569 + $0xc] sm:$0xf] %vm463, %v564
          %574 = vrot.lane.b32.xlu0 %v459, 72
          %v575 = vpop.permute.xlu0 %574
          %576 = vrot.lane.b32.xlu0 %v460, 72
          %v577 = vpop.permute.xlu0 %576
          %578 = vrot.lane.b32.xlu0 %v461, 72
          %v579 = vpop.permute.xlu0 %578
          %580 = vrot.lane.b32.xlu0 %v462, 72
          %v581 = vpop.permute.xlu0 %580
          %s586 = scalar_lea.vmem [#allocation2], 112
          %587 = vst.msk [vmem:[%s586] sm:$0xf] %vm463, %v575
          %588 = vst.msk [vmem:[%s586 + $0x4] sm:$0xf] %vm463, %v577
          %589 = vst.msk [vmem:[%s586 + $0x8] sm:$0xf] %vm463, %v579
          %590 = vst.msk [vmem:[%s586 + $0xc] sm:$0xf] %vm463, %v581
          %vm591 = vcmask 7168
          %592 = vst.msk [vmem:[#allocation3] sm:$0xff] %vm591, -inf
          %593 = vst.msk [vmem:[#allocation3 + $0x8] sm:$0xff] %vm591, -inf
          %594 = vst.msk [vmem:[#allocation3 + $0x10] sm:$0xff] %vm591, -inf
          %595 = vst.msk [vmem:[#allocation3 + $0x18] sm:$0xff] %vm591, -inf
          %596 = vst.msk [vmem:[#allocation3 + $0x20] sm:$0xff] %vm591, -inf
          %597 = vst.msk [vmem:[#allocation3 + $0x28] sm:$0xff] %vm591, -inf
          %598 = vst.msk [vmem:[#allocation3 + $0x30] sm:$0xff] %vm591, -inf
          %599 = vst.msk [vmem:[#allocation3 + $0x38] sm:$0xff] %vm591, -inf
          %600 = vst.msk [vmem:[#allocation3 + $0x40] sm:$0xff] %vm591, -inf
          %601 = vst.msk [vmem:[#allocation3 + $0x48] sm:$0xff] %vm591, -inf
          %602 = vst.msk [vmem:[#allocation3 + $0x50] sm:$0xff] %vm591, -inf
          %603 = vst.msk [vmem:[#allocation3 + $0x58] sm:$0xff] %vm591, -inf
          %604 = vst.msk [vmem:[#allocation3 + $0x60] sm:$0xff] %vm591, -inf
          %605 = vst.msk [vmem:[#allocation3 + $0x68] sm:$0xff] %vm591, -inf
          %606 = vst.msk [vmem:[#allocation3 + $0x70] sm:$0xff] %vm591, -inf
          %607 = vst.msk [vmem:[#allocation3 + $0x78] sm:$0xff] %vm591, -inf
          %608 = vst.msk [vmem:[#allocation3 + $0x80] sm:$0xff] %vm591, -inf
          %609 = vst.msk [vmem:[#allocation3 + $0x88] sm:$0xff] %vm591, -inf
          %610 = vst.msk [vmem:[#allocation3 + $0x90] sm:$0xff] %vm591, -inf
          %611 = vst.msk [vmem:[#allocation3 + $0x98] sm:$0xff] %vm591, -inf
          %612 = vst.msk [vmem:[#allocation3 + $0xa0] sm:$0xff] %vm591, -inf
          %613 = vst.msk [vmem:[#allocation3 + $0xa8] sm:$0xff] %vm591, -inf
          %614 = vst.msk [vmem:[#allocation3 + $0xb0] sm:$0xff] %vm591, -inf
          %615 = vst.msk [vmem:[#allocation3 + $0xb8] sm:$0xff] %vm591, -inf
          %616 = vst.msk [vmem:[#allocation3 + $0xc0] sm:$0xff] %vm591, -inf
          %617 = vst.msk [vmem:[#allocation3 + $0xc8] sm:$0xff] %vm591, -inf
          %618 = vst.msk [vmem:[#allocation3 + $0xd0] sm:$0xff] %vm591, -inf
          %619 = vst.msk [vmem:[#allocation3 + $0xd8] sm:$0xff] %vm591, -inf
          %620 = vst.msk [vmem:[#allocation3 + $0xe0] sm:$0xff] %vm591, -inf
          %621 = vst.msk [vmem:[#allocation3 + $0xe8] sm:$0xff] %vm591, -inf
          %622 = vst.msk [vmem:[#allocation3 + $0xf0] sm:$0xff] %vm591, -inf
          %623 = vst.msk [vmem:[#allocation3 + $0xf8] sm:$0xff] %vm591, -inf
          %624 = vst.msk [vmem:[#allocation4] sm:$0xff] %vm591, 0.0
          %625 = vst.msk [vmem:[#allocation4 + $0x8] sm:$0xff] %vm591, 0.0
          %626 = vst.msk [vmem:[#allocation4 + $0x10] sm:$0xff] %vm591, 0.0
          %627 = vst.msk [vmem:[#allocation4 + $0x18] sm:$0xff] %vm591, 0.0
          %628 = vst.msk [vmem:[#allocation4 + $0x20] sm:$0xff] %vm591, 0.0
          %629 = vst.msk [vmem:[#allocation4 + $0x28] sm:$0xff] %vm591, 0.0
          %630 = vst.msk [vmem:[#allocation4 + $0x30] sm:$0xff] %vm591, 0.0
          %631 = vst.msk [vmem:[#allocation4 + $0x38] sm:$0xff] %vm591, 0.0
          %632 = vst.msk [vmem:[#allocation4 + $0x40] sm:$0xff] %vm591, 0.0
          %633 = vst.msk [vmem:[#allocation4 + $0x48] sm:$0xff] %vm591, 0.0
          %634 = vst.msk [vmem:[#allocation4 + $0x50] sm:$0xff] %vm591, 0.0
          %635 = vst.msk [vmem:[#allocation4 + $0x58] sm:$0xff] %vm591, 0.0
          %636 = vst.msk [vmem:[#allocation4 + $0x60] sm:$0xff] %vm591, 0.0
          %637 = vst.msk [vmem:[#allocation4 + $0x68] sm:$0xff] %vm591, 0.0
          %638 = vst.msk [vmem:[#allocation4 + $0x70] sm:$0xff] %vm591, 0.0
          %639 = vst.msk [vmem:[#allocation4 + $0x78] sm:$0xff] %vm591, 0.0
          %640 = vst.msk [vmem:[#allocation4 + $0x80] sm:$0xff] %vm591, 0.0
          %641 = vst.msk [vmem:[#allocation4 + $0x88] sm:$0xff] %vm591, 0.0
          %642 = vst.msk [vmem:[#allocation4 + $0x90] sm:$0xff] %vm591, 0.0
          %643 = vst.msk [vmem:[#allocation4 + $0x98] sm:$0xff] %vm591, 0.0
          %644 = vst.msk [vmem:[#allocation4 + $0xa0] sm:$0xff] %vm591, 0.0
          %645 = vst.msk [vmem:[#allocation4 + $0xa8] sm:$0xff] %vm591, 0.0
          %646 = vst.msk [vmem:[#allocation4 + $0xb0] sm:$0xff] %vm591, 0.0
          %647 = vst.msk [vmem:[#allocation4 + $0xb8] sm:$0xff] %vm591, 0.0
          %648 = vst.msk [vmem:[#allocation4 + $0xc0] sm:$0xff] %vm591, 0.0
          %649 = vst.msk [vmem:[#allocation4 + $0xc8] sm:$0xff] %vm591, 0.0
          %650 = vst.msk [vmem:[#allocation4 + $0xd0] sm:$0xff] %vm591, 0.0
          %651 = vst.msk [vmem:[#allocation4 + $0xd8] sm:$0xff] %vm591, 0.0
          %652 = vst.msk [vmem:[#allocation4 + $0xe0] sm:$0xff] %vm591, 0.0
          %653 = vst.msk [vmem:[#allocation4 + $0xe8] sm:$0xff] %vm591, 0.0
          %654 = vst.msk [vmem:[#allocation4 + $0xf0] sm:$0xff] %vm591, 0.0
          %655 = vst.msk [vmem:[#allocation4 + $0xf8] sm:$0xff] %vm591, 0.0
          %vm656 = vcmask 64512
          %657 = vst.msk [vmem:[#allocation5] sm:$0xff] %vm656, 0.0
          %658 = vst.msk [vmem:[#allocation5 + $0x8] sm:$0xff] %vm656, 0.0
          %659 = vst.msk [vmem:[#allocation5 + $0x10] sm:$0xff] %vm656, 0.0
          %660 = vst.msk [vmem:[#allocation5 + $0x18] sm:$0xff] %vm656, 0.0
          %661 = vst.msk [vmem:[#allocation5 + $0x20] sm:$0xff] %vm656, 0.0
          %662 = vst.msk [vmem:[#allocation5 + $0x28] sm:$0xff] %vm656, 0.0
          %663 = vst.msk [vmem:[#allocation5 + $0x30] sm:$0xff] %vm656, 0.0
          %664 = vst.msk [vmem:[#allocation5 + $0x38] sm:$0xff] %vm656, 0.0
          %665 = vst.msk [vmem:[#allocation5 + $0x40] sm:$0xff] %vm656, 0.0
          %666 = vst.msk [vmem:[#allocation5 + $0x48] sm:$0xff] %vm656, 0.0
          %667 = vst.msk [vmem:[#allocation5 + $0x50] sm:$0xff] %vm656, 0.0
          %668 = vst.msk [vmem:[#allocation5 + $0x58] sm:$0xff] %vm656, 0.0
          %669 = vst.msk [vmem:[#allocation5 + $0x60] sm:$0xff] %vm656, 0.0
          %670 = vst.msk [vmem:[#allocation5 + $0x68] sm:$0xff] %vm656, 0.0
          %671 = vst.msk [vmem:[#allocation5 + $0x70] sm:$0xff] %vm656, 0.0
          %672 = vst.msk [vmem:[#allocation5 + $0x78] sm:$0xff] %vm656, 0.0
          %673 = vst.msk [vmem:[#allocation5 + $0x80] sm:$0xff] %vm656, 0.0
          %674 = vst.msk [vmem:[#allocation5 + $0x88] sm:$0xff] %vm656, 0.0
          %675 = vst.msk [vmem:[#allocation5 + $0x90] sm:$0xff] %vm656, 0.0
          %676 = vst.msk [vmem:[#allocation5 + $0x98] sm:$0xff] %vm656, 0.0
          %677 = vst.msk [vmem:[#allocation5 + $0xa0] sm:$0xff] %vm656, 0.0
          %678 = vst.msk [vmem:[#allocation5 + $0xa8] sm:$0xff] %vm656, 0.0
          %679 = vst.msk [vmem:[#allocation5 + $0xb0] sm:$0xff] %vm656, 0.0
          %680 = vst.msk [vmem:[#allocation5 + $0xb8] sm:$0xff] %vm656, 0.0
          %681 = vst.msk [vmem:[#allocation5 + $0xc0] sm:$0xff] %vm656, 0.0
          %682 = vst.msk [vmem:[#allocation5 + $0xc8] sm:$0xff] %vm656, 0.0
          %683 = vst.msk [vmem:[#allocation5 + $0xd0] sm:$0xff] %vm656, 0.0
          %684 = vst.msk [vmem:[#allocation5 + $0xd8] sm:$0xff] %vm656, 0.0
          %685 = vst.msk [vmem:[#allocation5 + $0xe0] sm:$0xff] %vm656, 0.0
          %686 = vst.msk [vmem:[#allocation5 + $0xe8] sm:$0xff] %vm656, 0.0
          %687 = vst.msk [vmem:[#allocation5 + $0xf0] sm:$0xff] %vm656, 0.0
          %688 = vst.msk [vmem:[#allocation5 + $0xf8] sm:$0xff] %vm656, 0.0
        $region56: #{attention_forward.1} parent=51 // pred_fallthru
          _
        %v689 = vld [vmem:[%s375] sm:$0xf]
        %v690 = vld [vmem:[%s375 + $0x4] sm:$0xf]
        %v691 = vld [vmem:[%s375 + $0x8] sm:$0xf]
        %v692 = vld [vmem:[%s375 + $0xc] sm:$0xf]
        %v693 = vld [vmem:[%s375 + $0x10] sm:$0xf]
        %v694 = vld [vmem:[%s375 + $0x14] sm:$0xf]
        %v695 = vld [vmem:[%s375 + $0x18] sm:$0xf]
        %v696 = vld [vmem:[%s375 + $0x1c] sm:$0xf]
        %v697 = vld [vmem:[%s4] sm:$0xf]
        %v698 = vld [vmem:[%s4 + $0x4] sm:$0xf]
        %v699 = vld [vmem:[%s4 + $0x8] sm:$0xf]
        %v700 = vld [vmem:[%s4 + $0xc] sm:$0xf]
        %v701 = vld [vmem:[%s4 + $0x10] sm:$0xf]
        %v702 = vld [vmem:[%s4 + $0x14] sm:$0xf]
        %v703 = vld [vmem:[%s4 + $0x18] sm:$0xf]
        %v704 = vld [vmem:[%s4 + $0x1c] sm:$0xf]
        %v705 = vld [vmem:[%s5] sm:$0x1]
        %v707 = vperm.slane %v705, 0
        %v717 = vunpack.c.l.b16 %v689
        %v718 = vunpack.c.l.b16 %v690
        %v719 = vunpack.c.l.b16 %v691
        %v720 = vunpack.c.l.b16 %v692
        %v721 = vunpack.c.l.b16 %v693
        %v722 = vunpack.c.l.b16 %v694
        %v723 = vunpack.c.l.b16 %v695
        %v724 = vunpack.c.l.b16 %v696
        %v725 = vpack.c.b16 %v718, %v717
        %v726 = vpack.c.b16 %v720, %v719
        %v727 = vpack.c.b16 %v722, %v721
        %v728 = vpack.c.b16 %v724, %v723
        %v737 = vunpack.c.l.b16 %v697
        %v738 = vunpack.c.l.b16 %v698
        %v739 = vunpack.c.l.b16 %v699
        %v740 = vunpack.c.l.b16 %v700
        %v741 = vunpack.c.l.b16 %v701
        %v742 = vunpack.c.l.b16 %v702
        %v743 = vunpack.c.l.b16 %v703
        %v744 = vunpack.c.l.b16 %v704
        %v745 = vpack.c.b16 %v738, %v737
        %v746 = vpack.c.b16 %v740, %v739
        %v747 = vpack.c.b16 %v742, %v741
        %v748 = vpack.c.b16 %v744, %v743
        %vm753 = vcmask 523264
        %v755 = vsel %vm753, %v725, 0
        %v758 = vsel %vm753, %v726, 0
        %v761 = vsel %vm753, %v727, 0
        %v764 = vsel %vm753, %v728, 0
        %766 = vmatpush.bf16.msra.mxu0 0
        %767 = vmatpush.bf16.msra.mxu0 0
        %768 = vmatpush.bf16.msra.mxu0 0
        %769 = vmatpush.bf16.msra.mxu0 0
        %770 = vmatpush.bf16.msra.mxu0 %v748
        %771 = vmatpush.bf16.msra.mxu0 %v747
        %772 = vmatpush.bf16.msra.mxu0 %v746
        %773 = vmatpush.bf16.msra.mxu0 %v745
        %774 = vmatmul.bf16.gmra.mxu0 %v755
        %v775 = vpop.f32.mrf.mxu0
        %v776 = vadd.f32 %v707, %v775
        %v777 = vpop.f32.mrf.mxu0
        %v778 = vadd.f32 %v707, %v777
        %779 = vmatmul.bf16.gmra.mxu0 %v758
        %v780 = vpop.f32.mrf.mxu0
        %v781 = vadd.f32 %v707, %v780
        %v782 = vpop.f32.mrf.mxu0
        %v783 = vadd.f32 %v707, %v782
        %784 = vmatmul.bf16.gmra.mxu0 %v761
        %v785 = vpop.f32.mrf.mxu0
        %v786 = vadd.f32 %v707, %v785
        %v787 = vpop.f32.mrf.mxu0
        %v788 = vadd.f32 %v707, %v787
        %789 = vmatmul.bf16.gmra.mxu0 %v764
        %v790 = vpop.f32.mrf.mxu0
        %v791 = vadd.f32 %v707, %v790
        %v792 = vpop.f32.mrf.mxu0
        %v793 = vadd.f32 %v707, %v792
        %794 = vdwg.mxu0
        %v795 = vpack.c.bf16 %v776, %v776
        %v796 = vpack.c.bf16 %v778, %v778
        %v797 = vpack.c.bf16 %v781, %v781
        %v798 = vpack.c.bf16 %v783, %v783
        %v799 = vpack.c.bf16 %v786, %v786
        %v800 = vpack.c.bf16 %v788, %v788
        %v801 = vpack.c.bf16 %v791, %v791
        %v802 = vpack.c.bf16 %v793, %v793
        %v803 = vld [vmem:[#allocation2] sm:$0xf]
        %v804 = vld [vmem:[#allocation2 + $0x4] sm:$0xf]
        %v805 = vld [vmem:[#allocation2 + $0x8] sm:$0xf]
        %v806 = vld [vmem:[#allocation2 + $0xc] sm:$0xf]
        %v811 = vunpack.c.l.b16 %v803
        %v812 = vunpack.c.l.b16 %v804
        %v813 = vunpack.c.l.b16 %v805
        %v814 = vunpack.c.l.b16 %v806
        %v815 = vpack.c.b16 %v812, %v811
        %v816 = vpack.c.b16 %v814, %v813
        %v825 = vunpack.c.l.b16 %v795
        %v826 = vunpack.c.l.b16 %v796
        %v827 = vunpack.c.l.b16 %v797
        %v828 = vunpack.c.l.b16 %v798
        %v829 = vunpack.c.l.b16 %v799
        %v830 = vunpack.c.l.b16 %v800
        %v831 = vunpack.c.l.b16 %v801
        %v832 = vunpack.c.l.b16 %v802
        %v833 = vpack.c.b16 %v826, %v825
        %v834 = vpack.c.b16 %v828, %v827
        %v835 = vpack.c.b16 %v830, %v829
        %v836 = vpack.c.b16 %v832, %v831
        %vm837 = vcmask 64512
        %v839 = vsel %vm837, %v815, 0
        %v842 = vsel %vm837, %v816, 0
        %v845 = vsel %vm837, %v833, 0
        %v848 = vsel %vm837, %v834, 0
        %v851 = vsel %vm837, %v835, 0
        %v854 = vsel %vm837, %v836, 0
        %856 = vmatpush.bf16.xpose.msra.mxu0 0
        %857 = vmatpush.bf16.xpose.msra.mxu0 0
        %858 = vmatpush.bf16.xpose.msra.mxu0 0
        %859 = vmatpush.bf16.xpose.msra.mxu0 0
        %860 = vmatpush.bf16.xpose.msra.mxu0 %v854
        %861 = vmatpush.bf16.xpose.msra.mxu0 %v851
        %862 = vmatpush.bf16.xpose.msra.mxu0 %v848
        %863 = vmatpush.bf16.xpose.msra.mxu0 %v845
        %864 = vmatmul.bf16.gmra.mxu0 %v839
        %v865 = vpop.f32.mrf.mxu0
        %v866 = vadd.f32 0.0, %v865
        %v867 = vpop.f32.mrf.mxu0
        %v868 = vadd.f32 0.0, %v867
        %869 = vmatmul.bf16.gmra.mxu0 %v842
        %v870 = vpop.f32.mrf.mxu0
        %v871 = vadd.f32 0.0, %v870
        %v872 = vpop.f32.mrf.mxu0
        %v873 = vadd.f32 0.0, %v872
        %874 = vdwg.mxu0
        %v875 = vld [vmem:[#allocation3] sm:$0xff]
        %v876 = vld [vmem:[#allocation3 + $0x8] sm:$0xff]
        %v877 = vld [vmem:[#allocation3 + $0x10] sm:$0xff]
        %v878 = vld [vmem:[#allocation3 + $0x18] sm:$0xff]
        %v879 = vsel %vm753, %v866, -inf
        %880 = vmax.xlane.f32.xlu0 %v879
        %v881 = vpop.xlane.xlu0 %880
        %v882 = vsel %vm753, %v868, -inf
        %883 = vmax.xlane.f32.xlu0 %v882
        %v884 = vpop.xlane.xlu0 %883
        %v885 = vsel %vm753, %v871, -inf
        %886 = vmax.xlane.f32.xlu0 %v885
        %v887 = vpop.xlane.xlu0 %886
        %v888 = vsel %vm753, %v873, -inf
        %889 = vmax.xlane.f32.xlu0 %v888
        %v890 = vpop.xlane.xlu0 %889
        %v891 = vmax.f32 %v875, %v881
        %v892 = vmax.f32 %v876, %v884
        %v893 = vmax.f32 %v877, %v887
        %v894 = vmax.f32 %v878, %v890
        %v895 = vsub.f32 %v875, %v891
        %v896 = vsub.f32 %v876, %v892
        %v897 = vsub.f32 %v877, %v893
        %v898 = vsub.f32 %v878, %v894
        %v899 = vmul.f32 %v895, 1.442695
        %v900 = vpow.pop %v899
        %v901 = vmul.f32 %v896, 1.442695
        %v902 = vpow.pop %v901
        %v903 = vmul.f32 %v897, 1.442695
        %v904 = vpow.pop %v903
        %v905 = vmul.f32 %v898, 1.442695
        %v906 = vpow.pop %v905
        %908 = vset.pattern.permute.xlu0 0
        %909 = vperm.xlu0 %908, %v891
        %v910 = vpop.permute.xlu0 %909
        %913 = vset.pattern.permute.xlu0 0
        %914 = vperm.xlu0 %913, %v892
        %v915 = vpop.permute.xlu0 %914
        %918 = vset.pattern.permute.xlu0 0
        %919 = vperm.xlu0 %918, %v893
        %v920 = vpop.permute.xlu0 %919
        %923 = vset.pattern.permute.xlu0 0
        %924 = vperm.xlu0 %923, %v894
        %v925 = vpop.permute.xlu0 %924
        %v927 = vsub.f32 %v866, %v910
        %v928 = vsub.f32 %v868, %v915
        %v929 = vsub.f32 %v871, %v920
        %v930 = vsub.f32 %v873, %v925
        %v931 = vmul.f32 %v927, 1.442695
        %v932 = vpow.pop %v931
        %v933 = vmul.f32 %v928, 1.442695
        %v934 = vpow.pop %v933
        %v935 = vmul.f32 %v929, 1.442695
        %v936 = vpow.pop %v935
        %v937 = vmul.f32 %v930, 1.442695
        %v938 = vpow.pop %v937
        %v939 = vld [vmem:[#allocation4] sm:$0xff]
        %v940 = vld [vmem:[#allocation4 + $0x8] sm:$0xff]
        %v941 = vld [vmem:[#allocation4 + $0x10] sm:$0xff]
        %v942 = vld [vmem:[#allocation4 + $0x18] sm:$0xff]
        %v943 = vmul.f32 %v900, %v939
        %v944 = vmul.f32 %v902, %v940
        %v945 = vmul.f32 %v904, %v941
        %v946 = vmul.f32 %v906, %v942
        %v947 = vsel %vm753, %v932, 0.0
        %948 = vadd.xlane.f32.xlu0 %v947
        %v949 = vpop.xlane.xlu0 %948
        %v950 = vsel %vm753, %v934, 0.0
        %951 = vadd.xlane.f32.xlu0 %v950
        %v952 = vpop.xlane.xlu0 %951
        %v953 = vsel %vm753, %v936, 0.0
        %954 = vadd.xlane.f32.xlu0 %v953
        %v955 = vpop.xlane.xlu0 %954
        %v956 = vsel %vm753, %v938, 0.0
        %957 = vadd.xlane.f32.xlu0 %v956
        %v958 = vpop.xlane.xlu0 %957
        %v959 = vadd.f32 %v943, %v949
        %v960 = vadd.f32 %v944, %v952
        %v961 = vadd.f32 %v945, %v955
        %v962 = vadd.f32 %v946, %v958
        %vm963 = vcmask 7168
        %964 = vst.msk [vmem:[#allocation4] sm:$0xff] %vm963, %v959
        %965 = vst.msk [vmem:[#allocation4 + $0x8] sm:$0xff] %vm963, %v960
        %966 = vst.msk [vmem:[#allocation4 + $0x10] sm:$0xff] %vm963, %v961
        %967 = vst.msk [vmem:[#allocation4 + $0x18] sm:$0xff] %vm963, %v962
        %v968 = vld [vmem:[#allocation5] sm:$0xff]
        %v969 = vld [vmem:[#allocation5 + $0x8] sm:$0xff]
        %v970 = vld [vmem:[#allocation5 + $0x10] sm:$0xff]
        %v971 = vld [vmem:[#allocation5 + $0x18] sm:$0xff]
        %973 = vset.pattern.permute.xlu0 0
        %974 = vperm.xlu0 %973, %v900
        %v975 = vpop.permute.xlu0 %974
        %978 = vset.pattern.permute.xlu0 0
        %979 = vperm.xlu0 %978, %v902
        %v980 = vpop.permute.xlu0 %979
        %983 = vset.pattern.permute.xlu0 0
        %984 = vperm.xlu0 %983, %v904
        %v985 = vpop.permute.xlu0 %984
        %988 = vset.pattern.permute.xlu0 0
        %989 = vperm.xlu0 %988, %v906
        %v990 = vpop.permute.xlu0 %989
        %v992 = vmul.f32 %v975, %v968
        %v993 = vmul.f32 %v980, %v969
        %v994 = vmul.f32 %v985, %v970
        %v995 = vmul.f32 %v990, %v971
        %v996 = vpack.c.bf16 %v934, %v932
        %v997 = vpack.c.bf16 %v938, %v936
        %998 = vrot.lane.b32.xlu0 %v833, 64
        %v999 = vpop.permute.xlu0 %998
        %1000 = vrot.lane.b32.xlu0 %v834, 64
        %v1001 = vpop.permute.xlu0 %1000
        %1002 = vrot.lane.b32.xlu0 %v835, 64
        %v1003 = vpop.permute.xlu0 %1002
        %1004 = vrot.lane.b32.xlu0 %v836, 64
        %v1005 = vpop.permute.xlu0 %1004
        %v1011 = vsel %vm753, %v996, 0
        %v1014 = vsel %vm753, %v997, 0
        %1016 = vmatpush.bf16.msra.mxu0 0
        %1017 = vmatpush.bf16.msra.mxu0 0
        %1018 = vmatpush.bf16.msra.mxu0 0
        %1019 = vmatpush.bf16.msra.mxu0 0
        %1020 = vmatpush.bf16.msra.mxu0 %v1005
        %1021 = vmatpush.bf16.msra.mxu0 %v1003
        %1022 = vmatpush.bf16.msra.mxu0 %v1001
        %1023 = vmatpush.bf16.msra.mxu0 %v999
        %1024 = vmatmul.bf16.gmra.mxu0 %v1011
        %v1025 = vpop.f32.mrf.mxu0
        %v1026 = vadd.f32 0.0, %v1025
        %v1027 = vpop.f32.mrf.mxu0
        %v1028 = vadd.f32 0.0, %v1027
        %1029 = vmatmul.bf16.gmra.mxu0 %v1014
        %v1030 = vpop.f32.mrf.mxu0
        %v1031 = vadd.f32 0.0, %v1030
        %v1032 = vpop.f32.mrf.mxu0
        %v1033 = vadd.f32 0.0, %v1032
        %1034 = vdwg.mxu0
        %v1035 = vadd.f32 %v992, %v1026
        %v1036 = vadd.f32 %v993, %v1028
        %v1037 = vadd.f32 %v994, %v1031
        %v1038 = vadd.f32 %v995, %v1033
        %1039 = vst.msk [vmem:[#allocation5] sm:$0xff] %vm837, %v1035
        %1040 = vst.msk [vmem:[#allocation5 + $0x8] sm:$0xff] %vm837, %v1036
        %1041 = vst.msk [vmem:[#allocation5 + $0x10] sm:$0xff] %vm837, %v1037
        %1042 = vst.msk [vmem:[#allocation5 + $0x18] sm:$0xff] %vm837, %v1038
        %1043 = vst.msk [vmem:[#allocation3] sm:$0xff] %vm963, %v891
        %1044 = vst.msk [vmem:[#allocation3 + $0x8] sm:$0xff] %vm963, %v892
        %1045 = vst.msk [vmem:[#allocation3 + $0x10] sm:$0xff] %vm963, %v893
        %1046 = vst.msk [vmem:[#allocation3 + $0x18] sm:$0xff] %vm963, %v894
        %s1047 = scalar_lea.vmem [#allocation2], 16
        %v1048 = vld [vmem:[%s1047] sm:$0xf]
        %v1049 = vld [vmem:[%s1047 + $0x4] sm:$0xf]
        %v1050 = vld [vmem:[%s1047 + $0x8] sm:$0xf]
        %v1051 = vld [vmem:[%s1047 + $0xc] sm:$0xf]
        %v1056 = vunpack.c.l.b16 %v1048
        %v1057 = vunpack.c.l.b16 %v1049
        %v1058 = vunpack.c.l.b16 %v1050
        %v1059 = vunpack.c.l.b16 %v1051
        %v1060 = vpack.c.b16 %v1057, %v1056
        %v1061 = vpack.c.b16 %v1059, %v1058
        %1062 = vrot.lane.b32.xlu0 %v833, 120
        %v1063 = vpop.permute.xlu0 %1062
        %1064 = vrot.lane.b32.xlu0 %v834, 120
        %v1065 = vpop.permute.xlu0 %1064
        %1066 = vrot.lane.b32.xlu0 %v835, 120
        %v1067 = vpop.permute.xlu0 %1066
        %1068 = vrot.lane.b32.xlu0 %v836, 120
        %v1069 = vpop.permute.xlu0 %1068
        %v1071 = vsel %vm837, %v1060, 0
        %v1074 = vsel %vm837, %v1061, 0
        %v1077 = vsel %vm837, %v1063, 0
        %v1080 = vsel %vm837, %v1065, 0
        %v1083 = vsel %vm837, %v1067, 0
        %v1086 = vsel %vm837, %v1069, 0
        %1088 = vmatpush.bf16.xpose.msra.mxu0 0
        %1089 = vmatpush.bf16.xpose.msra.mxu0 0
        %1090 = vmatpush.bf16.xpose.msra.mxu0 0
        %1091 = vmatpush.bf16.xpose.msra.mxu0 0
        %1092 = vmatpush.bf16.xpose.msra.mxu0 %v1086
        %1093 = vmatpush.bf16.xpose.msra.mxu0 %v1083
        %1094 = vmatpush.bf16.xpose.msra.mxu0 %v1080
        %1095 = vmatpush.bf16.xpose.msra.mxu0 %v1077
        %1096 = vmatmul.bf16.gmra.mxu0 %v1071
        %v1097 = vpop.f32.mrf.mxu0
        %v1098 = vadd.f32 0.0, %v1097
        %v1099 = vpop.f32.mrf.mxu0
        %v1100 = vadd.f32 0.0, %v1099
        %1101 = vmatmul.bf16.gmra.mxu0 %v1074
        %v1102 = vpop.f32.mrf.mxu0
        %v1103 = vadd.f32 0.0, %v1102
        %v1104 = vpop.f32.mrf.mxu0
        %v1105 = vadd.f32 0.0, %v1104
        %1106 = vdwg.mxu0
        %s1107 = scalar_lea.vmem [#allocation3], 32
        %v1108 = vld [vmem:[%s1107] sm:$0xff]
        %v1109 = vld [vmem:[%s1107 + $0x8] sm:$0xff]
        %v1110 = vld [vmem:[%s1107 + $0x10] sm:$0xff]
        %v1111 = vld [vmem:[%s1107 + $0x18] sm:$0xff]
        %v1112 = vsel %vm753, %v1098, -inf
        %1113 = vmax.xlane.f32.xlu0 %v1112
        %v1114 = vpop.xlane.xlu0 %1113
        %v1115 = vsel %vm753, %v1100, -inf
        %1116 = vmax.xlane.f32.xlu0 %v1115
        %v1117 = vpop.xlane.xlu0 %1116
        %v1118 = vsel %vm753, %v1103, -inf
        %1119 = vmax.xlane.f32.xlu0 %v1118
        %v1120 = vpop.xlane.xlu0 %1119
        %v1121 = vsel %vm753, %v1105, -inf
        %1122 = vmax.xlane.f32.xlu0 %v1121
        %v1123 = vpop.xlane.xlu0 %1122
        %v1124 = vmax.f32 %v1108, %v1114
        %v1125 = vmax.f32 %v1109, %v1117
        %v1126 = vmax.f32 %v1110, %v1120
        %v1127 = vmax.f32 %v1111, %v1123
        %v1128 = vsub.f32 %v1108, %v1124
        %v1129 = vsub.f32 %v1109, %v1125
        %v1130 = vsub.f32 %v1110, %v1126
        %v1131 = vsub.f32 %v1111, %v1127
        %v1132 = vmul.f32 %v1128, 1.442695
        %v1133 = vpow.pop %v1132
        %v1134 = vmul.f32 %v1129, 1.442695
        %v1135 = vpow.pop %v1134
        %v1136 = vmul.f32 %v1130, 1.442695
        %v1137 = vpow.pop %v1136
        %v1138 = vmul.f32 %v1131, 1.442695
        %v1139 = vpow.pop %v1138
        %1141 = vset.pattern.permute.xlu0 0
        %1142 = vperm.xlu0 %1141, %v1124
        %v1143 = vpop.permute.xlu0 %1142
        %1146 = vset.pattern.permute.xlu0 0
        %1147 = vperm.xlu0 %1146, %v1125
        %v1148 = vpop.permute.xlu0 %1147
        %1151 = vset.pattern.permute.xlu0 0
        %1152 = vperm.xlu0 %1151, %v1126
        %v1153 = vpop.permute.xlu0 %1152
        %1156 = vset.pattern.permute.xlu0 0
        %1157 = vperm.xlu0 %1156, %v1127
        %v1158 = vpop.permute.xlu0 %1157
        %v1160 = vsub.f32 %v1098, %v1143
        %v1161 = vsub.f32 %v1100, %v1148
        %v1162 = vsub.f32 %v1103, %v1153
        %v1163 = vsub.f32 %v1105, %v1158
        %v1164 = vmul.f32 %v1160, 1.442695
        %v1165 = vpow.pop %v1164
        %v1166 = vmul.f32 %v1161, 1.442695
        %v1167 = vpow.pop %v1166
        %v1168 = vmul.f32 %v1162, 1.442695
        %v1169 = vpow.pop %v1168
        %v1170 = vmul.f32 %v1163, 1.442695
        %v1171 = vpow.pop %v1170
        %s1172 = scalar_lea.vmem [#allocation4], 32
        %v1173 = vld [vmem:[%s1172] sm:$0xff]
        %v1174 = vld [vmem:[%s1172 + $0x8] sm:$0xff]
        %v1175 = vld [vmem:[%s1172 + $0x10] sm:$0xff]
        %v1176 = vld [vmem:[%s1172 + $0x18] sm:$0xff]
        %v1177 = vmul.f32 %v1133, %v1173
        %v1178 = vmul.f32 %v1135, %v1174
        %v1179 = vmul.f32 %v1137, %v1175
        %v1180 = vmul.f32 %v1139, %v1176
        %v1181 = vsel %vm753, %v1165, 0.0
        %1182 = vadd.xlane.f32.xlu0 %v1181
        %v1183 = vpop.xlane.xlu0 %1182
        %v1184 = vsel %vm753, %v1167, 0.0
        %1185 = vadd.xlane.f32.xlu0 %v1184
        %v1186 = vpop.xlane.xlu0 %1185
        %v1187 = vsel %vm753, %v1169, 0.0
        %1188 = vadd.xlane.f32.xlu0 %v1187
        %v1189 = vpop.xlane.xlu0 %1188
        %v1190 = vsel %vm753, %v1171, 0.0
        %1191 = vadd.xlane.f32.xlu0 %v1190
        %v1192 = vpop.xlane.xlu0 %1191
        %v1193 = vadd.f32 %v1177, %v1183
        %v1194 = vadd.f32 %v1178, %v1186
        %v1195 = vadd.f32 %v1179, %v1189
        %v1196 = vadd.f32 %v1180, %v1192
        %1197 = vst.msk [vmem:[%s1172] sm:$0xff] %vm963, %v1193
        %1198 = vst.msk [vmem:[%s1172 + $0x8] sm:$0xff] %vm963, %v1194
        %1199 = vst.msk [vmem:[%s1172 + $0x10] sm:$0xff] %vm963, %v1195
        %1200 = vst.msk [vmem:[%s1172 + $0x18] sm:$0xff] %vm963, %v1196
        %s1201 = scalar_lea.vmem [#allocation5], 32
        %v1202 = vld [vmem:[%s1201] sm:$0xff]
        %v1203 = vld [vmem:[%s1201 + $0x8] sm:$0xff]
        %v1204 = vld [vmem:[%s1201 + $0x10] sm:$0xff]
        %v1205 = vld [vmem:[%s1201 + $0x18] sm:$0xff]
        %1207 = vset.pattern.permute.xlu0 0
        %1208 = vperm.xlu0 %1207, %v1133
        %v1209 = vpop.permute.xlu0 %1208
        %1212 = vset.pattern.permute.xlu0 0
        %1213 = vperm.xlu0 %1212, %v1135
        %v1214 = vpop.permute.xlu0 %1213
        %1217 = vset.pattern.permute.xlu0 0
        %1218 = vperm.xlu0 %1217, %v1137
        %v1219 = vpop.permute.xlu0 %1218
        %1222 = vset.pattern.permute.xlu0 0
        %1223 = vperm.xlu0 %1222, %v1139
        %v1224 = vpop.permute.xlu0 %1223
        %v1226 = vmul.f32 %v1209, %v1202
        %v1227 = vmul.f32 %v1214, %v1203
        %v1228 = vmul.f32 %v1219, %v1204
        %v1229 = vmul.f32 %v1224, %v1205
        %v1230 = vpack.c.bf16 %v1167, %v1165
        %v1231 = vpack.c.bf16 %v1171, %v1169
        %1232 = vrot.lane.b32.xlu0 %v833, 56
        %v1233 = vpop.permute.xlu0 %1232
        %1234 = vrot.lane.b32.xlu0 %v834, 56
        %v1235 = vpop.permute.xlu0 %1234
        %1236 = vrot.lane.b32.xlu0 %v835, 56
        %v1237 = vpop.permute.xlu0 %1236
        %1238 = vrot.lane.b32.xlu0 %v836, 56
        %v1239 = vpop.permute.xlu0 %1238
        %v1245 = vsel %vm753, %v1230, 0
        %v1248 = vsel %vm753, %v1231, 0
        %1250 = vmatpush.bf16.msra.mxu0 0
        %1251 = vmatpush.bf16.msra.mxu0 0
        %1252 = vmatpush.bf16.msra.mxu0 0
        %1253 = vmatpush.bf16.msra.mxu0 0
        %1254 = vmatpush.bf16.msra.mxu0 %v1239
        %1255 = vmatpush.bf16.msra.mxu0 %v1237
        %1256 = vmatpush.bf16.msra.mxu0 %v1235
        %1257 = vmatpush.bf16.msra.mxu0 %v1233
        %1258 = vmatmul.bf16.gmra.mxu0 %v1245
        %v1259 = vpop.f32.mrf.mxu0
        %v1260 = vadd.f32 0.0, %v1259
        %v1261 = vpop.f32.mrf.mxu0
        %v1262 = vadd.f32 0.0, %v1261
        %1263 = vmatmul.bf16.gmra.mxu0 %v1248
        %v1264 = vpop.f32.mrf.mxu0
        %v1265 = vadd.f32 0.0, %v1264
        %v1266 = vpop.f32.mrf.mxu0
        %v1267 = vadd.f32 0.0, %v1266
        %1268 = vdwg.mxu0
        %v1269 = vadd.f32 %v1226, %v1260
        %v1270 = vadd.f32 %v1227, %v1262
        %v1271 = vadd.f32 %v1228, %v1265
        %v1272 = vadd.f32 %v1229, %v1267
        %1273 = vst.msk [vmem:[%s1201] sm:$0xff] %vm837, %v1269
        %1274 = vst.msk [vmem:[%s1201 + $0x8] sm:$0xff] %vm837, %v1270
        %1275 = vst.msk [vmem:[%s1201 + $0x10] sm:$0xff] %vm837, %v1271
        %1276 = vst.msk [vmem:[%s1201 + $0x18] sm:$0xff] %vm837, %v1272
        %1277 = vst.msk [vmem:[%s1107] sm:$0xff] %vm963, %v1124
        %1278 = vst.msk [vmem:[%s1107 + $0x8] sm:$0xff] %vm963, %v1125
        %1279 = vst.msk [vmem:[%s1107 + $0x10] sm:$0xff] %vm963, %v1126
        %1280 = vst.msk [vmem:[%s1107 + $0x18] sm:$0xff] %vm963, %v1127
        %s1281 = scalar_lea.vmem [#allocation2], 32
        %v1282 = vld [vmem:[%s1281] sm:$0xf]
        %v1283 = vld [vmem:[%s1281 + $0x4] sm:$0xf]
        %v1284 = vld [vmem:[%s1281 + $0x8] sm:$0xf]
        %v1285 = vld [vmem:[%s1281 + $0xc] sm:$0xf]
        %v1290 = vunpack.c.l.b16 %v1282
        %v1291 = vunpack.c.l.b16 %v1283
        %v1292 = vunpack.c.l.b16 %v1284
        %v1293 = vunpack.c.l.b16 %v1285
        %v1294 = vpack.c.b16 %v1291, %v1290
        %v1295 = vpack.c.b16 %v1293, %v1292
        %1296 = vrot.lane.b32.xlu0 %v833, 112
        %v1297 = vpop.permute.xlu0 %1296
        %1298 = vrot.lane.b32.xlu0 %v834, 112
        %v1299 = vpop.permute.xlu0 %1298
        %1300 = vrot.lane.b32.xlu0 %v835, 112
        %v1301 = vpop.permute.xlu0 %1300
        %1302 = vrot.lane.b32.xlu0 %v836, 112
        %v1303 = vpop.permute.xlu0 %1302
        %v1305 = vsel %vm837, %v1294, 0
        %v1308 = vsel %vm837, %v1295, 0
        %v1311 = vsel %vm837, %v1297, 0
        %v1314 = vsel %vm837, %v1299, 0
        %v1317 = vsel %vm837, %v1301, 0
        %v1320 = vsel %vm837, %v1303, 0
        %1322 = vmatpush.bf16.xpose.msra.mxu0 0
        %1323 = vmatpush.bf16.xpose.msra.mxu0 0
        %1324 = vmatpush.bf16.xpose.msra.mxu0 0
        %1325 = vmatpush.bf16.xpose.msra.mxu0 0
        %1326 = vmatpush.bf16.xpose.msra.mxu0 %v1320
        %1327 = vmatpush.bf16.xpose.msra.mxu0 %v1317
        %1328 = vmatpush.bf16.xpose.msra.mxu0 %v1314
        %1329 = vmatpush.bf16.xpose.msra.mxu0 %v1311
        %1330 = vmatmul.bf16.gmra.mxu0 %v1305
        %v1331 = vpop.f32.mrf.mxu0
        %v1332 = vadd.f32 0.0, %v1331
        %v1333 = vpop.f32.mrf.mxu0
        %v1334 = vadd.f32 0.0, %v1333
        %1335 = vmatmul.bf16.gmra.mxu0 %v1308
        %v1336 = vpop.f32.mrf.mxu0
        %v1337 = vadd.f32 0.0, %v1336
        %v1338 = vpop.f32.mrf.mxu0
        %v1339 = vadd.f32 0.0, %v1338
        %1340 = vdwg.mxu0
        %s1341 = scalar_lea.vmem [#allocation3], 64
        %v1342 = vld [vmem:[%s1341] sm:$0xff]
        %v1343 = vld [vmem:[%s1341 + $0x8] sm:$0xff]
        %v1344 = vld [vmem:[%s1341 + $0x10] sm:$0xff]
        %v1345 = vld [vmem:[%s1341 + $0x18] sm:$0xff]
        %v1346 = vsel %vm753, %v1332, -inf
        %1347 = vmax.xlane.f32.xlu0 %v1346
        %v1348 = vpop.xlane.xlu0 %1347
        %v1349 = vsel %vm753, %v1334, -inf
        %1350 = vmax.xlane.f32.xlu0 %v1349
        %v1351 = vpop.xlane.xlu0 %1350
        %v1352 = vsel %vm753, %v1337, -inf
        %1353 = vmax.xlane.f32.xlu0 %v1352
        %v1354 = vpop.xlane.xlu0 %1353
        %v1355 = vsel %vm753, %v1339, -inf
        %1356 = vmax.xlane.f32.xlu0 %v1355
        %v1357 = vpop.xlane.xlu0 %1356
        %v1358 = vmax.f32 %v1342, %v1348
        %v1359 = vmax.f32 %v1343, %v1351
        %v1360 = vmax.f32 %v1344, %v1354
        %v1361 = vmax.f32 %v1345, %v1357
        %v1362 = vsub.f32 %v1342, %v1358
        %v1363 = vsub.f32 %v1343, %v1359
        %v1364 = vsub.f32 %v1344, %v1360
        %v1365 = vsub.f32 %v1345, %v1361
        %v1366 = vmul.f32 %v1362, 1.442695
        %v1367 = vpow.pop %v1366
        %v1368 = vmul.f32 %v1363, 1.442695
        %v1369 = vpow.pop %v1368
        %v1370 = vmul.f32 %v1364, 1.442695
        %v1371 = vpow.pop %v1370
        %v1372 = vmul.f32 %v1365, 1.442695
        %v1373 = vpow.pop %v1372
        %1375 = vset.pattern.permute.xlu0 0
        %1376 = vperm.xlu0 %1375, %v1358
        %v1377 = vpop.permute.xlu0 %1376
        %1380 = vset.pattern.permute.xlu0 0
        %1381 = vperm.xlu0 %1380, %v1359
        %v1382 = vpop.permute.xlu0 %1381
        %1385 = vset.pattern.permute.xlu0 0
        %1386 = vperm.xlu0 %1385, %v1360
        %v1387 = vpop.permute.xlu0 %1386
        %1390 = vset.pattern.permute.xlu0 0
        %1391 = vperm.xlu0 %1390, %v1361
        %v1392 = vpop.permute.xlu0 %1391
        %v1394 = vsub.f32 %v1332, %v1377
        %v1395 = vsub.f32 %v1334, %v1382
        %v1396 = vsub.f32 %v1337, %v1387
        %v1397 = vsub.f32 %v1339, %v1392
        %v1398 = vmul.f32 %v1394, 1.442695
        %v1399 = vpow.pop %v1398
        %v1400 = vmul.f32 %v1395, 1.442695
        %v1401 = vpow.pop %v1400
        %v1402 = vmul.f32 %v1396, 1.442695
        %v1403 = vpow.pop %v1402
        %v1404 = vmul.f32 %v1397, 1.442695
        %v1405 = vpow.pop %v1404
        %s1406 = scalar_lea.vmem [#allocation4], 64
        %v1407 = vld [vmem:[%s1406] sm:$0xff]
        %v1408 = vld [vmem:[%s1406 + $0x8] sm:$0xff]
        %v1409 = vld [vmem:[%s1406 + $0x10] sm:$0xff]
        %v1410 = vld [vmem:[%s1406 + $0x18] sm:$0xff]
        %v1411 = vmul.f32 %v1367, %v1407
        %v1412 = vmul.f32 %v1369, %v1408
        %v1413 = vmul.f32 %v1371, %v1409
        %v1414 = vmul.f32 %v1373, %v1410
        %v1415 = vsel %vm753, %v1399, 0.0
        %1416 = vadd.xlane.f32.xlu0 %v1415
        %v1417 = vpop.xlane.xlu0 %1416
        %v1418 = vsel %vm753, %v1401, 0.0
        %1419 = vadd.xlane.f32.xlu0 %v1418
        %v1420 = vpop.xlane.xlu0 %1419
        %v1421 = vsel %vm753, %v1403, 0.0
        %1422 = vadd.xlane.f32.xlu0 %v1421
        %v1423 = vpop.xlane.xlu0 %1422
        %v1424 = vsel %vm753, %v1405, 0.0
        %1425 = vadd.xlane.f32.xlu0 %v1424
        %v1426 = vpop.xlane.xlu0 %1425
        %v1427 = vadd.f32 %v1411, %v1417
        %v1428 = vadd.f32 %v1412, %v1420
        %v1429 = vadd.f32 %v1413, %v1423
        %v1430 = vadd.f32 %v1414, %v1426
        %1431 = vst.msk [vmem:[%s1406] sm:$0xff] %vm963, %v1427
        %1432 = vst.msk [vmem:[%s1406 + $0x8] sm:$0xff] %vm963, %v1428
        %1433 = vst.msk [vmem:[%s1406 + $0x10] sm:$0xff] %vm963, %v1429
        %1434 = vst.msk [vmem:[%s1406 + $0x18] sm:$0xff] %vm963, %v1430
        %s1435 = scalar_lea.vmem [#allocation5], 64
        %v1436 = vld [vmem:[%s1435] sm:$0xff]
        %v1437 = vld [vmem:[%s1435 + $0x8] sm:$0xff]
        %v1438 = vld [vmem:[%s1435 + $0x10] sm:$0xff]
        %v1439 = vld [vmem:[%s1435 + $0x18] sm:$0xff]
        %1441 = vset.pattern.permute.xlu0 0
        %1442 = vperm.xlu0 %1441, %v1367
        %v1443 = vpop.permute.xlu0 %1442
        %1446 = vset.pattern.permute.xlu0 0
        %1447 = vperm.xlu0 %1446, %v1369
        %v1448 = vpop.permute.xlu0 %1447
        %1451 = vset.pattern.permute.xlu0 0
        %1452 = vperm.xlu0 %1451, %v1371
        %v1453 = vpop.permute.xlu0 %1452
        %1456 = vset.pattern.permute.xlu0 0
        %1457 = vperm.xlu0 %1456, %v1373
        %v1458 = vpop.permute.xlu0 %1457
        %v1460 = vmul.f32 %v1443, %v1436
        %v1461 = vmul.f32 %v1448, %v1437
        %v1462 = vmul.f32 %v1453, %v1438
        %v1463 = vmul.f32 %v1458, %v1439
        %v1464 = vpack.c.bf16 %v1401, %v1399
        %v1465 = vpack.c.bf16 %v1405, %v1403
        %1466 = vrot.lane.b32.xlu0 %v833, 48
        %v1467 = vpop.permute.xlu0 %1466
        %1468 = vrot.lane.b32.xlu0 %v834, 48
        %v1469 = vpop.permute.xlu0 %1468
        %1470 = vrot.lane.b32.xlu0 %v835, 48
        %v1471 = vpop.permute.xlu0 %1470
        %1472 = vrot.lane.b32.xlu0 %v836, 48
        %v1473 = vpop.permute.xlu0 %1472
        %v1479 = vsel %vm753, %v1464, 0
        %v1482 = vsel %vm753, %v1465, 0
        %1484 = vmatpush.bf16.msra.mxu0 0
        %1485 = vmatpush.bf16.msra.mxu0 0
        %1486 = vmatpush.bf16.msra.mxu0 0
        %1487 = vmatpush.bf16.msra.mxu0 0
        %1488 = vmatpush.bf16.msra.mxu0 %v1473
        %1489 = vmatpush.bf16.msra.mxu0 %v1471
        %1490 = vmatpush.bf16.msra.mxu0 %v1469
        %1491 = vmatpush.bf16.msra.mxu0 %v1467
        %1492 = vmatmul.bf16.gmra.mxu0 %v1479
        %v1493 = vpop.f32.mrf.mxu0
        %v1494 = vadd.f32 0.0, %v1493
        %v1495 = vpop.f32.mrf.mxu0
        %v1496 = vadd.f32 0.0, %v1495
        %1497 = vmatmul.bf16.gmra.mxu0 %v1482
        %v1498 = vpop.f32.mrf.mxu0
        %v1499 = vadd.f32 0.0, %v1498
        %v1500 = vpop.f32.mrf.mxu0
        %v1501 = vadd.f32 0.0, %v1500
        %1502 = vdwg.mxu0
        %v1503 = vadd.f32 %v1460, %v1494
        %v1504 = vadd.f32 %v1461, %v1496
        %v1505 = vadd.f32 %v1462, %v1499
        %v1506 = vadd.f32 %v1463, %v1501
        %1507 = vst.msk [vmem:[%s1435] sm:$0xff] %vm837, %v1503
        %1508 = vst.msk [vmem:[%s1435 + $0x8] sm:$0xff] %vm837, %v1504
        %1509 = vst.msk [vmem:[%s1435 + $0x10] sm:$0xff] %vm837, %v1505
        %1510 = vst.msk [vmem:[%s1435 + $0x18] sm:$0xff] %vm837, %v1506
        %1511 = vst.msk [vmem:[%s1341] sm:$0xff] %vm963, %v1358
        %1512 = vst.msk [vmem:[%s1341 + $0x8] sm:$0xff] %vm963, %v1359
        %1513 = vst.msk [vmem:[%s1341 + $0x10] sm:$0xff] %vm963, %v1360
        %1514 = vst.msk [vmem:[%s1341 + $0x18] sm:$0xff] %vm963, %v1361
        %s1515 = scalar_lea.vmem [#allocation2], 48
        %v1516 = vld [vmem:[%s1515] sm:$0xf]
        %v1517 = vld [vmem:[%s1515 + $0x4] sm:$0xf]
        %v1518 = vld [vmem:[%s1515 + $0x8] sm:$0xf]
        %v1519 = vld [vmem:[%s1515 + $0xc] sm:$0xf]
        %v1524 = vunpack.c.l.b16 %v1516
        %v1525 = vunpack.c.l.b16 %v1517
        %v1526 = vunpack.c.l.b16 %v1518
        %v1527 = vunpack.c.l.b16 %v1519
        %v1528 = vpack.c.b16 %v1525, %v1524
        %v1529 = vpack.c.b16 %v1527, %v1526
        %1530 = vrot.lane.b32.xlu0 %v833, 104
        %v1531 = vpop.permute.xlu0 %1530
        %1532 = vrot.lane.b32.xlu0 %v834, 104
        %v1533 = vpop.permute.xlu0 %1532
        %1534 = vrot.lane.b32.xlu0 %v835, 104
        %v1535 = vpop.permute.xlu0 %1534
        %1536 = vrot.lane.b32.xlu0 %v836, 104
        %v1537 = vpop.permute.xlu0 %1536
        %v1539 = vsel %vm837, %v1528, 0
        %v1542 = vsel %vm837, %v1529, 0
        %v1545 = vsel %vm837, %v1531, 0
        %v1548 = vsel %vm837, %v1533, 0
        %v1551 = vsel %vm837, %v1535, 0
        %v1554 = vsel %vm837, %v1537, 0
        %1556 = vmatpush.bf16.xpose.msra.mxu0 0
        %1557 = vmatpush.bf16.xpose.msra.mxu0 0
        %1558 = vmatpush.bf16.xpose.msra.mxu0 0
        %1559 = vmatpush.bf16.xpose.msra.mxu0 0
        %1560 = vmatpush.bf16.xpose.msra.mxu0 %v1554
        %1561 = vmatpush.bf16.xpose.msra.mxu0 %v1551
        %1562 = vmatpush.bf16.xpose.msra.mxu0 %v1548
        %1563 = vmatpush.bf16.xpose.msra.mxu0 %v1545
        %1564 = vmatmul.bf16.gmra.mxu0 %v1539
        %v1565 = vpop.f32.mrf.mxu0
        %v1566 = vadd.f32 0.0, %v1565
        %v1567 = vpop.f32.mrf.mxu0
        %v1568 = vadd.f32 0.0, %v1567
        %1569 = vmatmul.bf16.gmra.mxu0 %v1542
        %v1570 = vpop.f32.mrf.mxu0
        %v1571 = vadd.f32 0.0, %v1570
        %v1572 = vpop.f32.mrf.mxu0
        %v1573 = vadd.f32 0.0, %v1572
        %1574 = vdwg.mxu0
        %s1575 = scalar_lea.vmem [#allocation3], 96
        %v1576 = vld [vmem:[%s1575] sm:$0xff]
        %v1577 = vld [vmem:[%s1575 + $0x8] sm:$0xff]
        %v1578 = vld [vmem:[%s1575 + $0x10] sm:$0xff]
        %v1579 = vld [vmem:[%s1575 + $0x18] sm:$0xff]
        %v1580 = vsel %vm753, %v1566, -inf
        %1581 = vmax.xlane.f32.xlu0 %v1580
        %v1582 = vpop.xlane.xlu0 %1581
        %v1583 = vsel %vm753, %v1568, -inf
        %1584 = vmax.xlane.f32.xlu0 %v1583
        %v1585 = vpop.xlane.xlu0 %1584
        %v1586 = vsel %vm753, %v1571, -inf
        %1587 = vmax.xlane.f32.xlu0 %v1586
        %v1588 = vpop.xlane.xlu0 %1587
        %v1589 = vsel %vm753, %v1573, -inf
        %1590 = vmax.xlane.f32.xlu0 %v1589
        %v1591 = vpop.xlane.xlu0 %1590
        %v1592 = vmax.f32 %v1576, %v1582
        %v1593 = vmax.f32 %v1577, %v1585
        %v1594 = vmax.f32 %v1578, %v1588
        %v1595 = vmax.f32 %v1579, %v1591
        %v1596 = vsub.f32 %v1576, %v1592
        %v1597 = vsub.f32 %v1577, %v1593
        %v1598 = vsub.f32 %v1578, %v1594
        %v1599 = vsub.f32 %v1579, %v1595
        %v1600 = vmul.f32 %v1596, 1.442695
        %v1601 = vpow.pop %v1600
        %v1602 = vmul.f32 %v1597, 1.442695
        %v1603 = vpow.pop %v1602
        %v1604 = vmul.f32 %v1598, 1.442695
        %v1605 = vpow.pop %v1604
        %v1606 = vmul.f32 %v1599, 1.442695
        %v1607 = vpow.pop %v1606
        %1609 = vset.pattern.permute.xlu0 0
        %1610 = vperm.xlu0 %1609, %v1592
        %v1611 = vpop.permute.xlu0 %1610
        %1614 = vset.pattern.permute.xlu0 0
        %1615 = vperm.xlu0 %1614, %v1593
        %v1616 = vpop.permute.xlu0 %1615
        %1619 = vset.pattern.permute.xlu0 0
        %1620 = vperm.xlu0 %1619, %v1594
        %v1621 = vpop.permute.xlu0 %1620
        %1624 = vset.pattern.permute.xlu0 0
        %1625 = vperm.xlu0 %1624, %v1595
        %v1626 = vpop.permute.xlu0 %1625
        %v1628 = vsub.f32 %v1566, %v1611
        %v1629 = vsub.f32 %v1568, %v1616
        %v1630 = vsub.f32 %v1571, %v1621
        %v1631 = vsub.f32 %v1573, %v1626
        %v1632 = vmul.f32 %v1628, 1.442695
        %v1633 = vpow.pop %v1632
        %v1634 = vmul.f32 %v1629, 1.442695
        %v1635 = vpow.pop %v1634
        %v1636 = vmul.f32 %v1630, 1.442695
        %v1637 = vpow.pop %v1636
        %v1638 = vmul.f32 %v1631, 1.442695
        %v1639 = vpow.pop %v1638
        %s1640 = scalar_lea.vmem [#allocation4], 96
        %v1641 = vld [vmem:[%s1640] sm:$0xff]
        %v1642 = vld [vmem:[%s1640 + $0x8] sm:$0xff]
        %v1643 = vld [vmem:[%s1640 + $0x10] sm:$0xff]
        %v1644 = vld [vmem:[%s1640 + $0x18] sm:$0xff]
        %v1645 = vmul.f32 %v1601, %v1641
        %v1646 = vmul.f32 %v1603, %v1642
        %v1647 = vmul.f32 %v1605, %v1643
        %v1648 = vmul.f32 %v1607, %v1644
        %v1649 = vsel %vm753, %v1633, 0.0
        %1650 = vadd.xlane.f32.xlu0 %v1649
        %v1651 = vpop.xlane.xlu0 %1650
        %v1652 = vsel %vm753, %v1635, 0.0
        %1653 = vadd.xlane.f32.xlu0 %v1652
        %v1654 = vpop.xlane.xlu0 %1653
        %v1655 = vsel %vm753, %v1637, 0.0
        %1656 = vadd.xlane.f32.xlu0 %v1655
        %v1657 = vpop.xlane.xlu0 %1656
        %v1658 = vsel %vm753, %v1639, 0.0
        %1659 = vadd.xlane.f32.xlu0 %v1658
        %v1660 = vpop.xlane.xlu0 %1659
        %v1661 = vadd.f32 %v1645, %v1651
        %v1662 = vadd.f32 %v1646, %v1654
        %v1663 = vadd.f32 %v1647, %v1657
        %v1664 = vadd.f32 %v1648, %v1660
        %1665 = vst.msk [vmem:[%s1640] sm:$0xff] %vm963, %v1661
        %1666 = vst.msk [vmem:[%s1640 + $0x8] sm:$0xff] %vm963, %v1662
        %1667 = vst.msk [vmem:[%s1640 + $0x10] sm:$0xff] %vm963, %v1663
        %1668 = vst.msk [vmem:[%s1640 + $0x18] sm:$0xff] %vm963, %v1664
        %s1669 = scalar_lea.vmem [#allocation5], 96
        %v1670 = vld [vmem:[%s1669] sm:$0xff]
        %v1671 = vld [vmem:[%s1669 + $0x8] sm:$0xff]
        %v1672 = vld [vmem:[%s1669 + $0x10] sm:$0xff]
        %v1673 = vld [vmem:[%s1669 + $0x18] sm:$0xff]
        %1675 = vset.pattern.permute.xlu0 0
        %1676 = vperm.xlu0 %1675, %v1601
        %v1677 = vpop.permute.xlu0 %1676
        %1680 = vset.pattern.permute.xlu0 0
        %1681 = vperm.xlu0 %1680, %v1603
        %v1682 = vpop.permute.xlu0 %1681
        %1685 = vset.pattern.permute.xlu0 0
        %1686 = vperm.xlu0 %1685, %v1605
        %v1687 = vpop.permute.xlu0 %1686
        %1690 = vset.pattern.permute.xlu0 0
        %1691 = vperm.xlu0 %1690, %v1607
        %v1692 = vpop.permute.xlu0 %1691
        %v1694 = vmul.f32 %v1677, %v1670
        %v1695 = vmul.f32 %v1682, %v1671
        %v1696 = vmul.f32 %v1687, %v1672
        %v1697 = vmul.f32 %v1692, %v1673
        %v1698 = vpack.c.bf16 %v1635, %v1633
        %v1699 = vpack.c.bf16 %v1639, %v1637
        %1700 = vrot.lane.b32.xlu0 %v833, 40
        %v1701 = vpop.permute.xlu0 %1700
        %1702 = vrot.lane.b32.xlu0 %v834, 40
        %v1703 = vpop.permute.xlu0 %1702
        %1704 = vrot.lane.b32.xlu0 %v835, 40
        %v1705 = vpop.permute.xlu0 %1704
        %1706 = vrot.lane.b32.xlu0 %v836, 40
        %v1707 = vpop.permute.xlu0 %1706
        %v1713 = vsel %vm753, %v1698, 0
        %v1716 = vsel %vm753, %v1699, 0
        %1718 = vmatpush.bf16.msra.mxu0 0
        %1719 = vmatpush.bf16.msra.mxu0 0
        %1720 = vmatpush.bf16.msra.mxu0 0
        %1721 = vmatpush.bf16.msra.mxu0 0
        %1722 = vmatpush.bf16.msra.mxu0 %v1707
        %1723 = vmatpush.bf16.msra.mxu0 %v1705
        %1724 = vmatpush.bf16.msra.mxu0 %v1703
        %1725 = vmatpush.bf16.msra.mxu0 %v1701
        %1726 = vmatmul.bf16.gmra.mxu0 %v1713
        %v1727 = vpop.f32.mrf.mxu0
        %v1728 = vadd.f32 0.0, %v1727
        %v1729 = vpop.f32.mrf.mxu0
        %v1730 = vadd.f32 0.0, %v1729
        %1731 = vmatmul.bf16.gmra.mxu0 %v1716
        %v1732 = vpop.f32.mrf.mxu0
        %v1733 = vadd.f32 0.0, %v1732
        %v1734 = vpop.f32.mrf.mxu0
        %v1735 = vadd.f32 0.0, %v1734
        %1736 = vdwg.mxu0
        %v1737 = vadd.f32 %v1694, %v1728
        %v1738 = vadd.f32 %v1695, %v1730
        %v1739 = vadd.f32 %v1696, %v1733
        %v1740 = vadd.f32 %v1697, %v1735
        %1741 = vst.msk [vmem:[%s1669] sm:$0xff] %vm837, %v1737
        %1742 = vst.msk [vmem:[%s1669 + $0x8] sm:$0xff] %vm837, %v1738
        %1743 = vst.msk [vmem:[%s1669 + $0x10] sm:$0xff] %vm837, %v1739
        %1744 = vst.msk [vmem:[%s1669 + $0x18] sm:$0xff] %vm837, %v1740
        %1745 = vst.msk [vmem:[%s1575] sm:$0xff] %vm963, %v1592
        %1746 = vst.msk [vmem:[%s1575 + $0x8] sm:$0xff] %vm963, %v1593
        %1747 = vst.msk [vmem:[%s1575 + $0x10] sm:$0xff] %vm963, %v1594
        %1748 = vst.msk [vmem:[%s1575 + $0x18] sm:$0xff] %vm963, %v1595
        %s1749 = scalar_lea.vmem [#allocation2], 64
        %v1750 = vld [vmem:[%s1749] sm:$0xf]
        %v1751 = vld [vmem:[%s1749 + $0x4] sm:$0xf]
        %v1752 = vld [vmem:[%s1749 + $0x8] sm:$0xf]
        %v1753 = vld [vmem:[%s1749 + $0xc] sm:$0xf]
        %v1758 = vunpack.c.l.b16 %v1750
        %v1759 = vunpack.c.l.b16 %v1751
        %v1760 = vunpack.c.l.b16 %v1752
        %v1761 = vunpack.c.l.b16 %v1753
        %v1762 = vpack.c.b16 %v1759, %v1758
        %v1763 = vpack.c.b16 %v1761, %v1760
        %1764 = vrot.lane.b32.xlu0 %v833, 96
        %v1765 = vpop.permute.xlu0 %1764
        %1766 = vrot.lane.b32.xlu0 %v834, 96
        %v1767 = vpop.permute.xlu0 %1766
        %1768 = vrot.lane.b32.xlu0 %v835, 96
        %v1769 = vpop.permute.xlu0 %1768
        %1770 = vrot.lane.b32.xlu0 %v836, 96
        %v1771 = vpop.permute.xlu0 %1770
        %v1773 = vsel %vm837, %v1762, 0
        %v1776 = vsel %vm837, %v1763, 0
        %v1779 = vsel %vm837, %v1765, 0
        %v1782 = vsel %vm837, %v1767, 0
        %v1785 = vsel %vm837, %v1769, 0
        %v1788 = vsel %vm837, %v1771, 0
        %1790 = vmatpush.bf16.xpose.msra.mxu0 0
        %1791 = vmatpush.bf16.xpose.msra.mxu0 0
        %1792 = vmatpush.bf16.xpose.msra.mxu0 0
        %1793 = vmatpush.bf16.xpose.msra.mxu0 0
        %1794 = vmatpush.bf16.xpose.msra.mxu0 %v1788
        %1795 = vmatpush.bf16.xpose.msra.mxu0 %v1785
        %1796 = vmatpush.bf16.xpose.msra.mxu0 %v1782
        %1797 = vmatpush.bf16.xpose.msra.mxu0 %v1779
        %1798 = vmatmul.bf16.gmra.mxu0 %v1773
        %v1799 = vpop.f32.mrf.mxu0
        %v1800 = vadd.f32 0.0, %v1799
        %v1801 = vpop.f32.mrf.mxu0
        %v1802 = vadd.f32 0.0, %v1801
        %1803 = vmatmul.bf16.gmra.mxu0 %v1776
        %v1804 = vpop.f32.mrf.mxu0
        %v1805 = vadd.f32 0.0, %v1804
        %v1806 = vpop.f32.mrf.mxu0
        %v1807 = vadd.f32 0.0, %v1806
        %1808 = vdwg.mxu0
        %s1809 = scalar_lea.vmem [#allocation3], 128
        %v1810 = vld [vmem:[%s1809] sm:$0xff]
        %v1811 = vld [vmem:[%s1809 + $0x8] sm:$0xff]
        %v1812 = vld [vmem:[%s1809 + $0x10] sm:$0xff]
        %v1813 = vld [vmem:[%s1809 + $0x18] sm:$0xff]
        %v1814 = vsel %vm753, %v1800, -inf
        %1815 = vmax.xlane.f32.xlu0 %v1814
        %v1816 = vpop.xlane.xlu0 %1815
        %v1817 = vsel %vm753, %v1802, -inf
        %1818 = vmax.xlane.f32.xlu0 %v1817
        %v1819 = vpop.xlane.xlu0 %1818
        %v1820 = vsel %vm753, %v1805, -inf
        %1821 = vmax.xlane.f32.xlu0 %v1820
        %v1822 = vpop.xlane.xlu0 %1821
        %v1823 = vsel %vm753, %v1807, -inf
        %1824 = vmax.xlane.f32.xlu0 %v1823
        %v1825 = vpop.xlane.xlu0 %1824
        %v1826 = vmax.f32 %v1810, %v1816
        %v1827 = vmax.f32 %v1811, %v1819
        %v1828 = vmax.f32 %v1812, %v1822
        %v1829 = vmax.f32 %v1813, %v1825
        %v1830 = vsub.f32 %v1810, %v1826
        %v1831 = vsub.f32 %v1811, %v1827
        %v1832 = vsub.f32 %v1812, %v1828
        %v1833 = vsub.f32 %v1813, %v1829
        %v1834 = vmul.f32 %v1830, 1.442695
        %v1835 = vpow.pop %v1834
        %v1836 = vmul.f32 %v1831, 1.442695
        %v1837 = vpow.pop %v1836
        %v1838 = vmul.f32 %v1832, 1.442695
        %v1839 = vpow.pop %v1838
        %v1840 = vmul.f32 %v1833, 1.442695
        %v1841 = vpow.pop %v1840
        %1843 = vset.pattern.permute.xlu0 0
        %1844 = vperm.xlu0 %1843, %v1826
        %v1845 = vpop.permute.xlu0 %1844
        %1848 = vset.pattern.permute.xlu0 0
        %1849 = vperm.xlu0 %1848, %v1827
        %v1850 = vpop.permute.xlu0 %1849
        %1853 = vset.pattern.permute.xlu0 0
        %1854 = vperm.xlu0 %1853, %v1828
        %v1855 = vpop.permute.xlu0 %1854
        %1858 = vset.pattern.permute.xlu0 0
        %1859 = vperm.xlu0 %1858, %v1829
        %v1860 = vpop.permute.xlu0 %1859
        %v1862 = vsub.f32 %v1800, %v1845
        %v1863 = vsub.f32 %v1802, %v1850
        %v1864 = vsub.f32 %v1805, %v1855
        %v1865 = vsub.f32 %v1807, %v1860
        %v1866 = vmul.f32 %v1862, 1.442695
        %v1867 = vpow.pop %v1866
        %v1868 = vmul.f32 %v1863, 1.442695
        %v1869 = vpow.pop %v1868
        %v1870 = vmul.f32 %v1864, 1.442695
        %v1871 = vpow.pop %v1870
        %v1872 = vmul.f32 %v1865, 1.442695
        %v1873 = vpow.pop %v1872
        %s1874 = scalar_lea.vmem [#allocation4], 128
        %v1875 = vld [vmem:[%s1874] sm:$0xff]
        %v1876 = vld [vmem:[%s1874 + $0x8] sm:$0xff]
        %v1877 = vld [vmem:[%s1874 + $0x10] sm:$0xff]
        %v1878 = vld [vmem:[%s1874 + $0x18] sm:$0xff]
        %v1879 = vmul.f32 %v1835, %v1875
        %v1880 = vmul.f32 %v1837, %v1876
        %v1881 = vmul.f32 %v1839, %v1877
        %v1882 = vmul.f32 %v1841, %v1878
        %v1883 = vsel %vm753, %v1867, 0.0
        %1884 = vadd.xlane.f32.xlu0 %v1883
        %v1885 = vpop.xlane.xlu0 %1884
        %v1886 = vsel %vm753, %v1869, 0.0
        %1887 = vadd.xlane.f32.xlu0 %v1886
        %v1888 = vpop.xlane.xlu0 %1887
        %v1889 = vsel %vm753, %v1871, 0.0
        %1890 = vadd.xlane.f32.xlu0 %v1889
        %v1891 = vpop.xlane.xlu0 %1890
        %v1892 = vsel %vm753, %v1873, 0.0
        %1893 = vadd.xlane.f32.xlu0 %v1892
        %v1894 = vpop.xlane.xlu0 %1893
        %v1895 = vadd.f32 %v1879, %v1885
        %v1896 = vadd.f32 %v1880, %v1888
        %v1897 = vadd.f32 %v1881, %v1891
        %v1898 = vadd.f32 %v1882, %v1894
        %1899 = vst.msk [vmem:[%s1874] sm:$0xff] %vm963, %v1895
        %1900 = vst.msk [vmem:[%s1874 + $0x8] sm:$0xff] %vm963, %v1896
        %1901 = vst.msk [vmem:[%s1874 + $0x10] sm:$0xff] %vm963, %v1897
        %1902 = vst.msk [vmem:[%s1874 + $0x18] sm:$0xff] %vm963, %v1898
        %s1903 = scalar_lea.vmem [#allocation5], 128
        %v1904 = vld [vmem:[%s1903] sm:$0xff]
        %v1905 = vld [vmem:[%s1903 + $0x8] sm:$0xff]
        %v1906 = vld [vmem:[%s1903 + $0x10] sm:$0xff]
        %v1907 = vld [vmem:[%s1903 + $0x18] sm:$0xff]
        %1909 = vset.pattern.permute.xlu0 0
        %1910 = vperm.xlu0 %1909, %v1835
        %v1911 = vpop.permute.xlu0 %1910
        %1914 = vset.pattern.permute.xlu0 0
        %1915 = vperm.xlu0 %1914, %v1837
        %v1916 = vpop.permute.xlu0 %1915
        %1919 = vset.pattern.permute.xlu0 0
        %1920 = vperm.xlu0 %1919, %v1839
        %v1921 = vpop.permute.xlu0 %1920
        %1924 = vset.pattern.permute.xlu0 0
        %1925 = vperm.xlu0 %1924, %v1841
        %v1926 = vpop.permute.xlu0 %1925
        %v1928 = vmul.f32 %v1911, %v1904
        %v1929 = vmul.f32 %v1916, %v1905
        %v1930 = vmul.f32 %v1921, %v1906
        %v1931 = vmul.f32 %v1926, %v1907
        %v1932 = vpack.c.bf16 %v1869, %v1867
        %v1933 = vpack.c.bf16 %v1873, %v1871
        %1934 = vrot.lane.b32.xlu0 %v833, 32
        %v1935 = vpop.permute.xlu0 %1934
        %1936 = vrot.lane.b32.xlu0 %v834, 32
        %v1937 = vpop.permute.xlu0 %1936
        %1938 = vrot.lane.b32.xlu0 %v835, 32
        %v1939 = vpop.permute.xlu0 %1938
        %1940 = vrot.lane.b32.xlu0 %v836, 32
        %v1941 = vpop.permute.xlu0 %1940
        %v1947 = vsel %vm753, %v1932, 0
        %v1950 = vsel %vm753, %v1933, 0
        %1952 = vmatpush.bf16.msra.mxu0 0
        %1953 = vmatpush.bf16.msra.mxu0 0
        %1954 = vmatpush.bf16.msra.mxu0 0
        %1955 = vmatpush.bf16.msra.mxu0 0
        %1956 = vmatpush.bf16.msra.mxu0 %v1941
        %1957 = vmatpush.bf16.msra.mxu0 %v1939
        %1958 = vmatpush.bf16.msra.mxu0 %v1937
        %1959 = vmatpush.bf16.msra.mxu0 %v1935
        %1960 = vmatmul.bf16.gmra.mxu0 %v1947
        %v1961 = vpop.f32.mrf.mxu0
        %v1962 = vadd.f32 0.0, %v1961
        %v1963 = vpop.f32.mrf.mxu0
        %v1964 = vadd.f32 0.0, %v1963
        %1965 = vmatmul.bf16.gmra.mxu0 %v1950
        %v1966 = vpop.f32.mrf.mxu0
        %v1967 = vadd.f32 0.0, %v1966
        %v1968 = vpop.f32.mrf.mxu0
        %v1969 = vadd.f32 0.0, %v1968
        %1970 = vdwg.mxu0
        %v1971 = vadd.f32 %v1928, %v1962
        %v1972 = vadd.f32 %v1929, %v1964
        %v1973 = vadd.f32 %v1930, %v1967
        %v1974 = vadd.f32 %v1931, %v1969
        %1975 = vst.msk [vmem:[%s1903] sm:$0xff] %vm837, %v1971
        %1976 = vst.msk [vmem:[%s1903 + $0x8] sm:$0xff] %vm837, %v1972
        %1977 = vst.msk [vmem:[%s1903 + $0x10] sm:$0xff] %vm837, %v1973
        %1978 = vst.msk [vmem:[%s1903 + $0x18] sm:$0xff] %vm837, %v1974
        %1979 = vst.msk [vmem:[%s1809] sm:$0xff] %vm963, %v1826
        %1980 = vst.msk [vmem:[%s1809 + $0x8] sm:$0xff] %vm963, %v1827
        %1981 = vst.msk [vmem:[%s1809 + $0x10] sm:$0xff] %vm963, %v1828
        %1982 = vst.msk [vmem:[%s1809 + $0x18] sm:$0xff] %vm963, %v1829
        %s1983 = scalar_lea.vmem [#allocation2], 80
        %v1984 = vld [vmem:[%s1983] sm:$0xf]
        %v1985 = vld [vmem:[%s1983 + $0x4] sm:$0xf]
        %v1986 = vld [vmem:[%s1983 + $0x8] sm:$0xf]
        %v1987 = vld [vmem:[%s1983 + $0xc] sm:$0xf]
        %v1992 = vunpack.c.l.b16 %v1984
        %v1993 = vunpack.c.l.b16 %v1985
        %v1994 = vunpack.c.l.b16 %v1986
        %v1995 = vunpack.c.l.b16 %v1987
        %v1996 = vpack.c.b16 %v1993, %v1992
        %v1997 = vpack.c.b16 %v1995, %v1994
        %1998 = vrot.lane.b32.xlu0 %v833, 88
        %v1999 = vpop.permute.xlu0 %1998
        %2000 = vrot.lane.b32.xlu0 %v834, 88
        %v2001 = vpop.permute.xlu0 %2000
        %2002 = vrot.lane.b32.xlu0 %v835, 88
        %v2003 = vpop.permute.xlu0 %2002
        %2004 = vrot.lane.b32.xlu0 %v836, 88
        %v2005 = vpop.permute.xlu0 %2004
        %v2007 = vsel %vm837, %v1996, 0
        %v2010 = vsel %vm837, %v1997, 0
        %v2013 = vsel %vm837, %v1999, 0
        %v2016 = vsel %vm837, %v2001, 0
        %v2019 = vsel %vm837, %v2003, 0
        %v2022 = vsel %vm837, %v2005, 0
        %2024 = vmatpush.bf16.xpose.msra.mxu0 0
        %2025 = vmatpush.bf16.xpose.msra.mxu0 0
        %2026 = vmatpush.bf16.xpose.msra.mxu0 0
        %2027 = vmatpush.bf16.xpose.msra.mxu0 0
        %2028 = vmatpush.bf16.xpose.msra.mxu0 %v2022
        %2029 = vmatpush.bf16.xpose.msra.mxu0 %v2019
        %2030 = vmatpush.bf16.xpose.msra.mxu0 %v2016
        %2031 = vmatpush.bf16.xpose.msra.mxu0 %v2013
        %2032 = vmatmul.bf16.gmra.mxu0 %v2007
        %v2033 = vpop.f32.mrf.mxu0
        %v2034 = vadd.f32 0.0, %v2033
        %v2035 = vpop.f32.mrf.mxu0
        %v2036 = vadd.f32 0.0, %v2035
        %2037 = vmatmul.bf16.gmra.mxu0 %v2010
        %v2038 = vpop.f32.mrf.mxu0
        %v2039 = vadd.f32 0.0, %v2038
        %v2040 = vpop.f32.mrf.mxu0
        %v2041 = vadd.f32 0.0, %v2040
        %2042 = vdwg.mxu0
        %s2043 = scalar_lea.vmem [#allocation3], 160
        %v2044 = vld [vmem:[%s2043] sm:$0xff]
        %v2045 = vld [vmem:[%s2043 + $0x8] sm:$0xff]
        %v2046 = vld [vmem:[%s2043 + $0x10] sm:$0xff]
        %v2047 = vld [vmem:[%s2043 + $0x18] sm:$0xff]
        %v2048 = vsel %vm753, %v2034, -inf
        %2049 = vmax.xlane.f32.xlu0 %v2048
        %v2050 = vpop.xlane.xlu0 %2049
        %v2051 = vsel %vm753, %v2036, -inf
        %2052 = vmax.xlane.f32.xlu0 %v2051
        %v2053 = vpop.xlane.xlu0 %2052
        %v2054 = vsel %vm753, %v2039, -inf
        %2055 = vmax.xlane.f32.xlu0 %v2054
        %v2056 = vpop.xlane.xlu0 %2055
        %v2057 = vsel %vm753, %v2041, -inf
        %2058 = vmax.xlane.f32.xlu0 %v2057
        %v2059 = vpop.xlane.xlu0 %2058
        %v2060 = vmax.f32 %v2044, %v2050
        %v2061 = vmax.f32 %v2045, %v2053
        %v2062 = vmax.f32 %v2046, %v2056
        %v2063 = vmax.f32 %v2047, %v2059
        %v2064 = vsub.f32 %v2044, %v2060
        %v2065 = vsub.f32 %v2045, %v2061
        %v2066 = vsub.f32 %v2046, %v2062
        %v2067 = vsub.f32 %v2047, %v2063
        %v2068 = vmul.f32 %v2064, 1.442695
        %v2069 = vpow.pop %v2068
        %v2070 = vmul.f32 %v2065, 1.442695
        %v2071 = vpow.pop %v2070
        %v2072 = vmul.f32 %v2066, 1.442695
        %v2073 = vpow.pop %v2072
        %v2074 = vmul.f32 %v2067, 1.442695
        %v2075 = vpow.pop %v2074
        %2077 = vset.pattern.permute.xlu0 0
        %2078 = vperm.xlu0 %2077, %v2060
        %v2079 = vpop.permute.xlu0 %2078
        %2082 = vset.pattern.permute.xlu0 0
        %2083 = vperm.xlu0 %2082, %v2061
        %v2084 = vpop.permute.xlu0 %2083
        %2087 = vset.pattern.permute.xlu0 0
        %2088 = vperm.xlu0 %2087, %v2062
        %v2089 = vpop.permute.xlu0 %2088
        %2092 = vset.pattern.permute.xlu0 0
        %2093 = vperm.xlu0 %2092, %v2063
        %v2094 = vpop.permute.xlu0 %2093
        %v2096 = vsub.f32 %v2034, %v2079
        %v2097 = vsub.f32 %v2036, %v2084
        %v2098 = vsub.f32 %v2039, %v2089
        %v2099 = vsub.f32 %v2041, %v2094
        %v2100 = vmul.f32 %v2096, 1.442695
        %v2101 = vpow.pop %v2100
        %v2102 = vmul.f32 %v2097, 1.442695
        %v2103 = vpow.pop %v2102
        %v2104 = vmul.f32 %v2098, 1.442695
        %v2105 = vpow.pop %v2104
        %v2106 = vmul.f32 %v2099, 1.442695
        %v2107 = vpow.pop %v2106
        %s2108 = scalar_lea.vmem [#allocation4], 160
        %v2109 = vld [vmem:[%s2108] sm:$0xff]
        %v2110 = vld [vmem:[%s2108 + $0x8] sm:$0xff]
        %v2111 = vld [vmem:[%s2108 + $0x10] sm:$0xff]
        %v2112 = vld [vmem:[%s2108 + $0x18] sm:$0xff]
        %v2113 = vmul.f32 %v2069, %v2109
        %v2114 = vmul.f32 %v2071, %v2110
        %v2115 = vmul.f32 %v2073, %v2111
        %v2116 = vmul.f32 %v2075, %v2112
        %v2117 = vsel %vm753, %v2101, 0.0
        %2118 = vadd.xlane.f32.xlu0 %v2117
        %v2119 = vpop.xlane.xlu0 %2118
        %v2120 = vsel %vm753, %v2103, 0.0
        %2121 = vadd.xlane.f32.xlu0 %v2120
        %v2122 = vpop.xlane.xlu0 %2121
        %v2123 = vsel %vm753, %v2105, 0.0
        %2124 = vadd.xlane.f32.xlu0 %v2123
        %v2125 = vpop.xlane.xlu0 %2124
        %v2126 = vsel %vm753, %v2107, 0.0
        %2127 = vadd.xlane.f32.xlu0 %v2126
        %v2128 = vpop.xlane.xlu0 %2127
        %v2129 = vadd.f32 %v2113, %v2119
        %v2130 = vadd.f32 %v2114, %v2122
        %v2131 = vadd.f32 %v2115, %v2125
        %v2132 = vadd.f32 %v2116, %v2128
        %2133 = vst.msk [vmem:[%s2108] sm:$0xff] %vm963, %v2129
        %2134 = vst.msk [vmem:[%s2108 + $0x8] sm:$0xff] %vm963, %v2130
        %2135 = vst.msk [vmem:[%s2108 + $0x10] sm:$0xff] %vm963, %v2131
        %2136 = vst.msk [vmem:[%s2108 + $0x18] sm:$0xff] %vm963, %v2132
        %s2137 = scalar_lea.vmem [#allocation5], 160
        %v2138 = vld [vmem:[%s2137] sm:$0xff]
        %v2139 = vld [vmem:[%s2137 + $0x8] sm:$0xff]
        %v2140 = vld [vmem:[%s2137 + $0x10] sm:$0xff]
        %v2141 = vld [vmem:[%s2137 + $0x18] sm:$0xff]
        %2143 = vset.pattern.permute.xlu0 0
        %2144 = vperm.xlu0 %2143, %v2069
        %v2145 = vpop.permute.xlu0 %2144
        %2148 = vset.pattern.permute.xlu0 0
        %2149 = vperm.xlu0 %2148, %v2071
        %v2150 = vpop.permute.xlu0 %2149
        %2153 = vset.pattern.permute.xlu0 0
        %2154 = vperm.xlu0 %2153, %v2073
        %v2155 = vpop.permute.xlu0 %2154
        %2158 = vset.pattern.permute.xlu0 0
        %2159 = vperm.xlu0 %2158, %v2075
        %v2160 = vpop.permute.xlu0 %2159
        %v2162 = vmul.f32 %v2145, %v2138
        %v2163 = vmul.f32 %v2150, %v2139
        %v2164 = vmul.f32 %v2155, %v2140
        %v2165 = vmul.f32 %v2160, %v2141
        %v2166 = vpack.c.bf16 %v2103, %v2101
        %v2167 = vpack.c.bf16 %v2107, %v2105
        %2168 = vrot.lane.b32.xlu0 %v833, 24
        %v2169 = vpop.permute.xlu0 %2168
        %2170 = vrot.lane.b32.xlu0 %v834, 24
        %v2171 = vpop.permute.xlu0 %2170
        %2172 = vrot.lane.b32.xlu0 %v835, 24
        %v2173 = vpop.permute.xlu0 %2172
        %2174 = vrot.lane.b32.xlu0 %v836, 24
        %v2175 = vpop.permute.xlu0 %2174
        %v2181 = vsel %vm753, %v2166, 0
        %v2184 = vsel %vm753, %v2167, 0
        %2186 = vmatpush.bf16.msra.mxu0 0
        %2187 = vmatpush.bf16.msra.mxu0 0
        %2188 = vmatpush.bf16.msra.mxu0 0
        %2189 = vmatpush.bf16.msra.mxu0 0
        %2190 = vmatpush.bf16.msra.mxu0 %v2175
        %2191 = vmatpush.bf16.msra.mxu0 %v2173
        %2192 = vmatpush.bf16.msra.mxu0 %v2171
        %2193 = vmatpush.bf16.msra.mxu0 %v2169
        %2194 = vmatmul.bf16.gmra.mxu0 %v2181
        %v2195 = vpop.f32.mrf.mxu0
        %v2196 = vadd.f32 0.0, %v2195
        %v2197 = vpop.f32.mrf.mxu0
        %v2198 = vadd.f32 0.0, %v2197
        %2199 = vmatmul.bf16.gmra.mxu0 %v2184
        %v2200 = vpop.f32.mrf.mxu0
        %v2201 = vadd.f32 0.0, %v2200
        %v2202 = vpop.f32.mrf.mxu0
        %v2203 = vadd.f32 0.0, %v2202
        %2204 = vdwg.mxu0
        %v2205 = vadd.f32 %v2162, %v2196
        %v2206 = vadd.f32 %v2163, %v2198
        %v2207 = vadd.f32 %v2164, %v2201
        %v2208 = vadd.f32 %v2165, %v2203
        %2209 = vst.msk [vmem:[%s2137] sm:$0xff] %vm837, %v2205
        %2210 = vst.msk [vmem:[%s2137 + $0x8] sm:$0xff] %vm837, %v2206
        %2211 = vst.msk [vmem:[%s2137 + $0x10] sm:$0xff] %vm837, %v2207
        %2212 = vst.msk [vmem:[%s2137 + $0x18] sm:$0xff] %vm837, %v2208
        %2213 = vst.msk [vmem:[%s2043] sm:$0xff] %vm963, %v2060
        %2214 = vst.msk [vmem:[%s2043 + $0x8] sm:$0xff] %vm963, %v2061
        %2215 = vst.msk [vmem:[%s2043 + $0x10] sm:$0xff] %vm963, %v2062
        %2216 = vst.msk [vmem:[%s2043 + $0x18] sm:$0xff] %vm963, %v2063
        %s2217 = scalar_lea.vmem [#allocation2], 96
        %v2218 = vld [vmem:[%s2217] sm:$0xf]
        %v2219 = vld [vmem:[%s2217 + $0x4] sm:$0xf]
        %v2220 = vld [vmem:[%s2217 + $0x8] sm:$0xf]
        %v2221 = vld [vmem:[%s2217 + $0xc] sm:$0xf]
        %v2226 = vunpack.c.l.b16 %v2218
        %v2227 = vunpack.c.l.b16 %v2219
        %v2228 = vunpack.c.l.b16 %v2220
        %v2229 = vunpack.c.l.b16 %v2221
        %v2230 = vpack.c.b16 %v2227, %v2226
        %v2231 = vpack.c.b16 %v2229, %v2228
        %2232 = vrot.lane.b32.xlu0 %v833, 80
        %v2233 = vpop.permute.xlu0 %2232
        %2234 = vrot.lane.b32.xlu0 %v834, 80
        %v2235 = vpop.permute.xlu0 %2234
        %2236 = vrot.lane.b32.xlu0 %v835, 80
        %v2237 = vpop.permute.xlu0 %2236
        %2238 = vrot.lane.b32.xlu0 %v836, 80
        %v2239 = vpop.permute.xlu0 %2238
        %v2241 = vsel %vm837, %v2230, 0
        %v2244 = vsel %vm837, %v2231, 0
        %v2247 = vsel %vm837, %v2233, 0
        %v2250 = vsel %vm837, %v2235, 0
        %v2253 = vsel %vm837, %v2237, 0
        %v2256 = vsel %vm837, %v2239, 0
        %2258 = vmatpush.bf16.xpose.msra.mxu0 0
        %2259 = vmatpush.bf16.xpose.msra.mxu0 0
        %2260 = vmatpush.bf16.xpose.msra.mxu0 0
        %2261 = vmatpush.bf16.xpose.msra.mxu0 0
        %2262 = vmatpush.bf16.xpose.msra.mxu0 %v2256
        %2263 = vmatpush.bf16.xpose.msra.mxu0 %v2253
        %2264 = vmatpush.bf16.xpose.msra.mxu0 %v2250
        %2265 = vmatpush.bf16.xpose.msra.mxu0 %v2247
        %2266 = vmatmul.bf16.gmra.mxu0 %v2241
        %v2267 = vpop.f32.mrf.mxu0
        %v2268 = vadd.f32 0.0, %v2267
        %v2269 = vpop.f32.mrf.mxu0
        %v2270 = vadd.f32 0.0, %v2269
        %2271 = vmatmul.bf16.gmra.mxu0 %v2244
        %v2272 = vpop.f32.mrf.mxu0
        %v2273 = vadd.f32 0.0, %v2272
        %v2274 = vpop.f32.mrf.mxu0
        %v2275 = vadd.f32 0.0, %v2274
        %2276 = vdwg.mxu0
        %s2277 = scalar_lea.vmem [#allocation3], 192
        %v2278 = vld [vmem:[%s2277] sm:$0xff]
        %v2279 = vld [vmem:[%s2277 + $0x8] sm:$0xff]
        %v2280 = vld [vmem:[%s2277 + $0x10] sm:$0xff]
        %v2281 = vld [vmem:[%s2277 + $0x18] sm:$0xff]
        %v2282 = vsel %vm753, %v2268, -inf
        %2283 = vmax.xlane.f32.xlu0 %v2282
        %v2284 = vpop.xlane.xlu0 %2283
        %v2285 = vsel %vm753, %v2270, -inf
        %2286 = vmax.xlane.f32.xlu0 %v2285
        %v2287 = vpop.xlane.xlu0 %2286
        %v2288 = vsel %vm753, %v2273, -inf
        %2289 = vmax.xlane.f32.xlu0 %v2288
        %v2290 = vpop.xlane.xlu0 %2289
        %v2291 = vsel %vm753, %v2275, -inf
        %2292 = vmax.xlane.f32.xlu0 %v2291
        %v2293 = vpop.xlane.xlu0 %2292
        %v2294 = vmax.f32 %v2278, %v2284
        %v2295 = vmax.f32 %v2279, %v2287
        %v2296 = vmax.f32 %v2280, %v2290
        %v2297 = vmax.f32 %v2281, %v2293
        %v2298 = vsub.f32 %v2278, %v2294
        %v2299 = vsub.f32 %v2279, %v2295
        %v2300 = vsub.f32 %v2280, %v2296
        %v2301 = vsub.f32 %v2281, %v2297
        %v2302 = vmul.f32 %v2298, 1.442695
        %v2303 = vpow.pop %v2302
        %v2304 = vmul.f32 %v2299, 1.442695
        %v2305 = vpow.pop %v2304
        %v2306 = vmul.f32 %v2300, 1.442695
        %v2307 = vpow.pop %v2306
        %v2308 = vmul.f32 %v2301, 1.442695
        %v2309 = vpow.pop %v2308
        %2311 = vset.pattern.permute.xlu0 0
        %2312 = vperm.xlu0 %2311, %v2294
        %v2313 = vpop.permute.xlu0 %2312
        %2316 = vset.pattern.permute.xlu0 0
        %2317 = vperm.xlu0 %2316, %v2295
        %v2318 = vpop.permute.xlu0 %2317
        %2321 = vset.pattern.permute.xlu0 0
        %2322 = vperm.xlu0 %2321, %v2296
        %v2323 = vpop.permute.xlu0 %2322
        %2326 = vset.pattern.permute.xlu0 0
        %2327 = vperm.xlu0 %2326, %v2297
        %v2328 = vpop.permute.xlu0 %2327
        %v2330 = vsub.f32 %v2268, %v2313
        %v2331 = vsub.f32 %v2270, %v2318
        %v2332 = vsub.f32 %v2273, %v2323
        %v2333 = vsub.f32 %v2275, %v2328
        %v2334 = vmul.f32 %v2330, 1.442695
        %v2335 = vpow.pop %v2334
        %v2336 = vmul.f32 %v2331, 1.442695
        %v2337 = vpow.pop %v2336
        %v2338 = vmul.f32 %v2332, 1.442695
        %v2339 = vpow.pop %v2338
        %v2340 = vmul.f32 %v2333, 1.442695
        %v2341 = vpow.pop %v2340
        %s2342 = scalar_lea.vmem [#allocation4], 192
        %v2343 = vld [vmem:[%s2342] sm:$0xff]
        %v2344 = vld [vmem:[%s2342 + $0x8] sm:$0xff]
        %v2345 = vld [vmem:[%s2342 + $0x10] sm:$0xff]
        %v2346 = vld [vmem:[%s2342 + $0x18] sm:$0xff]
        %v2347 = vmul.f32 %v2303, %v2343
        %v2348 = vmul.f32 %v2305, %v2344
        %v2349 = vmul.f32 %v2307, %v2345
        %v2350 = vmul.f32 %v2309, %v2346
        %v2351 = vsel %vm753, %v2335, 0.0
        %2352 = vadd.xlane.f32.xlu0 %v2351
        %v2353 = vpop.xlane.xlu0 %2352
        %v2354 = vsel %vm753, %v2337, 0.0
        %2355 = vadd.xlane.f32.xlu0 %v2354
        %v2356 = vpop.xlane.xlu0 %2355
        %v2357 = vsel %vm753, %v2339, 0.0
        %2358 = vadd.xlane.f32.xlu0 %v2357
        %v2359 = vpop.xlane.xlu0 %2358
        %v2360 = vsel %vm753, %v2341, 0.0
        %2361 = vadd.xlane.f32.xlu0 %v2360
        %v2362 = vpop.xlane.xlu0 %2361
        %v2363 = vadd.f32 %v2347, %v2353
        %v2364 = vadd.f32 %v2348, %v2356
        %v2365 = vadd.f32 %v2349, %v2359
        %v2366 = vadd.f32 %v2350, %v2362
        %2367 = vst.msk [vmem:[%s2342] sm:$0xff] %vm963, %v2363
        %2368 = vst.msk [vmem:[%s2342 + $0x8] sm:$0xff] %vm963, %v2364
        %2369 = vst.msk [vmem:[%s2342 + $0x10] sm:$0xff] %vm963, %v2365
        %2370 = vst.msk [vmem:[%s2342 + $0x18] sm:$0xff] %vm963, %v2366
        %s2371 = scalar_lea.vmem [#allocation5], 192
        %v2372 = vld [vmem:[%s2371] sm:$0xff]
        %v2373 = vld [vmem:[%s2371 + $0x8] sm:$0xff]
        %v2374 = vld [vmem:[%s2371 + $0x10] sm:$0xff]
        %v2375 = vld [vmem:[%s2371 + $0x18] sm:$0xff]
        %2377 = vset.pattern.permute.xlu0 0
        %2378 = vperm.xlu0 %2377, %v2303
        %v2379 = vpop.permute.xlu0 %2378
        %2382 = vset.pattern.permute.xlu0 0
        %2383 = vperm.xlu0 %2382, %v2305
        %v2384 = vpop.permute.xlu0 %2383
        %2387 = vset.pattern.permute.xlu0 0
        %2388 = vperm.xlu0 %2387, %v2307
        %v2389 = vpop.permute.xlu0 %2388
        %2392 = vset.pattern.permute.xlu0 0
        %2393 = vperm.xlu0 %2392, %v2309
        %v2394 = vpop.permute.xlu0 %2393
        %v2396 = vmul.f32 %v2379, %v2372
        %v2397 = vmul.f32 %v2384, %v2373
        %v2398 = vmul.f32 %v2389, %v2374
        %v2399 = vmul.f32 %v2394, %v2375
        %v2400 = vpack.c.bf16 %v2337, %v2335
        %v2401 = vpack.c.bf16 %v2341, %v2339
        %2402 = vrot.lane.b32.xlu0 %v833, 16
        %v2403 = vpop.permute.xlu0 %2402
        %2404 = vrot.lane.b32.xlu0 %v834, 16
        %v2405 = vpop.permute.xlu0 %2404
        %2406 = vrot.lane.b32.xlu0 %v835, 16
        %v2407 = vpop.permute.xlu0 %2406
        %2408 = vrot.lane.b32.xlu0 %v836, 16
        %v2409 = vpop.permute.xlu0 %2408
        %v2415 = vsel %vm753, %v2400, 0
        %v2418 = vsel %vm753, %v2401, 0
        %2420 = vmatpush.bf16.msra.mxu0 0
        %2421 = vmatpush.bf16.msra.mxu0 0
        %2422 = vmatpush.bf16.msra.mxu0 0
        %2423 = vmatpush.bf16.msra.mxu0 0
        %2424 = vmatpush.bf16.msra.mxu0 %v2409
        %2425 = vmatpush.bf16.msra.mxu0 %v2407
        %2426 = vmatpush.bf16.msra.mxu0 %v2405
        %2427 = vmatpush.bf16.msra.mxu0 %v2403
        %2428 = vmatmul.bf16.gmra.mxu0 %v2415
        %v2429 = vpop.f32.mrf.mxu0
        %v2430 = vadd.f32 0.0, %v2429
        %v2431 = vpop.f32.mrf.mxu0
        %v2432 = vadd.f32 0.0, %v2431
        %2433 = vmatmul.bf16.gmra.mxu0 %v2418
        %v2434 = vpop.f32.mrf.mxu0
        %v2435 = vadd.f32 0.0, %v2434
        %v2436 = vpop.f32.mrf.mxu0
        %v2437 = vadd.f32 0.0, %v2436
        %2438 = vdwg.mxu0
        %v2439 = vadd.f32 %v2396, %v2430
        %v2440 = vadd.f32 %v2397, %v2432
        %v2441 = vadd.f32 %v2398, %v2435
        %v2442 = vadd.f32 %v2399, %v2437
        %2443 = vst.msk [vmem:[%s2371] sm:$0xff] %vm837, %v2439
        %2444 = vst.msk [vmem:[%s2371 + $0x8] sm:$0xff] %vm837, %v2440
        %2445 = vst.msk [vmem:[%s2371 + $0x10] sm:$0xff] %vm837, %v2441
        %2446 = vst.msk [vmem:[%s2371 + $0x18] sm:$0xff] %vm837, %v2442
        %2447 = vst.msk [vmem:[%s2277] sm:$0xff] %vm963, %v2294
        %2448 = vst.msk [vmem:[%s2277 + $0x8] sm:$0xff] %vm963, %v2295
        %2449 = vst.msk [vmem:[%s2277 + $0x10] sm:$0xff] %vm963, %v2296
        %2450 = vst.msk [vmem:[%s2277 + $0x18] sm:$0xff] %vm963, %v2297
        %s2451 = scalar_lea.vmem [#allocation2], 112
        %v2452 = vld [vmem:[%s2451] sm:$0xf]
        %v2453 = vld [vmem:[%s2451 + $0x4] sm:$0xf]
        %v2454 = vld [vmem:[%s2451 + $0x8] sm:$0xf]
        %v2455 = vld [vmem:[%s2451 + $0xc] sm:$0xf]
        %v2460 = vunpack.c.l.b16 %v2452
        %v2461 = vunpack.c.l.b16 %v2453
        %v2462 = vunpack.c.l.b16 %v2454
        %v2463 = vunpack.c.l.b16 %v2455
        %v2464 = vpack.c.b16 %v2461, %v2460
        %v2465 = vpack.c.b16 %v2463, %v2462
        %2466 = vrot.lane.b32.xlu0 %v833, 72
        %v2467 = vpop.permute.xlu0 %2466
        %2468 = vrot.lane.b32.xlu0 %v834, 72
        %v2469 = vpop.permute.xlu0 %2468
        %2470 = vrot.lane.b32.xlu0 %v835, 72
        %v2471 = vpop.permute.xlu0 %2470
        %2472 = vrot.lane.b32.xlu0 %v836, 72
        %v2473 = vpop.permute.xlu0 %2472
        %v2475 = vsel %vm837, %v2464, 0
        %v2478 = vsel %vm837, %v2465, 0
        %v2481 = vsel %vm837, %v2467, 0
        %v2484 = vsel %vm837, %v2469, 0
        %v2487 = vsel %vm837, %v2471, 0
        %v2490 = vsel %vm837, %v2473, 0
        %2492 = vmatpush.bf16.xpose.msra.mxu0 0
        %2493 = vmatpush.bf16.xpose.msra.mxu0 0
        %2494 = vmatpush.bf16.xpose.msra.mxu0 0
        %2495 = vmatpush.bf16.xpose.msra.mxu0 0
        %2496 = vmatpush.bf16.xpose.msra.mxu0 %v2490
        %2497 = vmatpush.bf16.xpose.msra.mxu0 %v2487
        %2498 = vmatpush.bf16.xpose.msra.mxu0 %v2484
        %2499 = vmatpush.bf16.xpose.msra.mxu0 %v2481
        %2500 = vmatmul.bf16.gmra.mxu0 %v2475
        %v2501 = vpop.f32.mrf.mxu0
        %v2502 = vadd.f32 0.0, %v2501
        %v2503 = vpop.f32.mrf.mxu0
        %v2504 = vadd.f32 0.0, %v2503
        %2505 = vmatmul.bf16.gmra.mxu0 %v2478
        %v2506 = vpop.f32.mrf.mxu0
        %v2507 = vadd.f32 0.0, %v2506
        %v2508 = vpop.f32.mrf.mxu0
        %v2509 = vadd.f32 0.0, %v2508
        %2510 = vdwg.mxu0
        %s2511 = scalar_lea.vmem [#allocation3], 224
        %v2512 = vld [vmem:[%s2511] sm:$0xff]
        %v2513 = vld [vmem:[%s2511 + $0x8] sm:$0xff]
        %v2514 = vld [vmem:[%s2511 + $0x10] sm:$0xff]
        %v2515 = vld [vmem:[%s2511 + $0x18] sm:$0xff]
        %v2516 = vsel %vm753, %v2502, -inf
        %2517 = vmax.xlane.f32.xlu0 %v2516
        %v2518 = vpop.xlane.xlu0 %2517
        %v2519 = vsel %vm753, %v2504, -inf
        %2520 = vmax.xlane.f32.xlu0 %v2519
        %v2521 = vpop.xlane.xlu0 %2520
        %v2522 = vsel %vm753, %v2507, -inf
        %2523 = vmax.xlane.f32.xlu0 %v2522
        %v2524 = vpop.xlane.xlu0 %2523
        %v2525 = vsel %vm753, %v2509, -inf
        %2526 = vmax.xlane.f32.xlu0 %v2525
        %v2527 = vpop.xlane.xlu0 %2526
        %v2528 = vmax.f32 %v2512, %v2518
        %v2529 = vmax.f32 %v2513, %v2521
        %v2530 = vmax.f32 %v2514, %v2524
        %v2531 = vmax.f32 %v2515, %v2527
        %v2532 = vsub.f32 %v2512, %v2528
        %v2533 = vsub.f32 %v2513, %v2529
        %v2534 = vsub.f32 %v2514, %v2530
        %v2535 = vsub.f32 %v2515, %v2531
        %v2536 = vmul.f32 %v2532, 1.442695
        %v2537 = vpow.pop %v2536
        %v2538 = vmul.f32 %v2533, 1.442695
        %v2539 = vpow.pop %v2538
        %v2540 = vmul.f32 %v2534, 1.442695
        %v2541 = vpow.pop %v2540
        %v2542 = vmul.f32 %v2535, 1.442695
        %v2543 = vpow.pop %v2542
        %2545 = vset.pattern.permute.xlu0 0
        %2546 = vperm.xlu0 %2545, %v2528
        %v2547 = vpop.permute.xlu0 %2546
        %2550 = vset.pattern.permute.xlu0 0
        %2551 = vperm.xlu0 %2550, %v2529
        %v2552 = vpop.permute.xlu0 %2551
        %2555 = vset.pattern.permute.xlu0 0
        %2556 = vperm.xlu0 %2555, %v2530
        %v2557 = vpop.permute.xlu0 %2556
        %2560 = vset.pattern.permute.xlu0 0
        %2561 = vperm.xlu0 %2560, %v2531
        %v2562 = vpop.permute.xlu0 %2561
        %v2564 = vsub.f32 %v2502, %v2547
        %v2565 = vsub.f32 %v2504, %v2552
        %v2566 = vsub.f32 %v2507, %v2557
        %v2567 = vsub.f32 %v2509, %v2562
        %v2568 = vmul.f32 %v2564, 1.442695
        %v2569 = vpow.pop %v2568
        %v2570 = vmul.f32 %v2565, 1.442695
        %v2571 = vpow.pop %v2570
        %v2572 = vmul.f32 %v2566, 1.442695
        %v2573 = vpow.pop %v2572
        %v2574 = vmul.f32 %v2567, 1.442695
        %v2575 = vpow.pop %v2574
        %s2576 = scalar_lea.vmem [#allocation4], 224
        %v2577 = vld [vmem:[%s2576] sm:$0xff]
        %v2578 = vld [vmem:[%s2576 + $0x8] sm:$0xff]
        %v2579 = vld [vmem:[%s2576 + $0x10] sm:$0xff]
        %v2580 = vld [vmem:[%s2576 + $0x18] sm:$0xff]
        %v2581 = vmul.f32 %v2537, %v2577
        %v2582 = vmul.f32 %v2539, %v2578
        %v2583 = vmul.f32 %v2541, %v2579
        %v2584 = vmul.f32 %v2543, %v2580
        %v2585 = vsel %vm753, %v2569, 0.0
        %2586 = vadd.xlane.f32.xlu0 %v2585
        %v2587 = vpop.xlane.xlu0 %2586
        %v2588 = vsel %vm753, %v2571, 0.0
        %2589 = vadd.xlane.f32.xlu0 %v2588
        %v2590 = vpop.xlane.xlu0 %2589
        %v2591 = vsel %vm753, %v2573, 0.0
        %2592 = vadd.xlane.f32.xlu0 %v2591
        %v2593 = vpop.xlane.xlu0 %2592
        %v2594 = vsel %vm753, %v2575, 0.0
        %2595 = vadd.xlane.f32.xlu0 %v2594
        %v2596 = vpop.xlane.xlu0 %2595
        %v2597 = vadd.f32 %v2581, %v2587
        %v2598 = vadd.f32 %v2582, %v2590
        %v2599 = vadd.f32 %v2583, %v2593
        %v2600 = vadd.f32 %v2584, %v2596
        %2601 = vst.msk [vmem:[%s2576] sm:$0xff] %vm963, %v2597
        %2602 = vst.msk [vmem:[%s2576 + $0x8] sm:$0xff] %vm963, %v2598
        %2603 = vst.msk [vmem:[%s2576 + $0x10] sm:$0xff] %vm963, %v2599
        %2604 = vst.msk [vmem:[%s2576 + $0x18] sm:$0xff] %vm963, %v2600
        %s2605 = scalar_lea.vmem [#allocation5], 224
        %v2606 = vld [vmem:[%s2605] sm:$0xff]
        %v2607 = vld [vmem:[%s2605 + $0x8] sm:$0xff]
        %v2608 = vld [vmem:[%s2605 + $0x10] sm:$0xff]
        %v2609 = vld [vmem:[%s2605 + $0x18] sm:$0xff]
        %2611 = vset.pattern.permute.xlu0 0
        %2612 = vperm.xlu0 %2611, %v2537
        %v2613 = vpop.permute.xlu0 %2612
        %2616 = vset.pattern.permute.xlu0 0
        %2617 = vperm.xlu0 %2616, %v2539
        %v2618 = vpop.permute.xlu0 %2617
        %2621 = vset.pattern.permute.xlu0 0
        %2622 = vperm.xlu0 %2621, %v2541
        %v2623 = vpop.permute.xlu0 %2622
        %2626 = vset.pattern.permute.xlu0 0
        %2627 = vperm.xlu0 %2626, %v2543
        %v2628 = vpop.permute.xlu0 %2627
        %v2630 = vmul.f32 %v2613, %v2606
        %v2631 = vmul.f32 %v2618, %v2607
        %v2632 = vmul.f32 %v2623, %v2608
        %v2633 = vmul.f32 %v2628, %v2609
        %v2634 = vpack.c.bf16 %v2571, %v2569
        %v2635 = vpack.c.bf16 %v2575, %v2573
        %2636 = vrot.lane.b32.xlu0 %v833, 8
        %v2637 = vpop.permute.xlu0 %2636
        %2638 = vrot.lane.b32.xlu0 %v834, 8
        %v2639 = vpop.permute.xlu0 %2638
        %2640 = vrot.lane.b32.xlu0 %v835, 8
        %v2641 = vpop.permute.xlu0 %2640
        %2642 = vrot.lane.b32.xlu0 %v836, 8
        %v2643 = vpop.permute.xlu0 %2642
        %v2649 = vsel %vm753, %v2634, 0
        %v2652 = vsel %vm753, %v2635, 0
        %2654 = vmatpush.bf16.msra.mxu0 0
        %2655 = vmatpush.bf16.msra.mxu0 0
        %2656 = vmatpush.bf16.msra.mxu0 0
        %2657 = vmatpush.bf16.msra.mxu0 0
        %2658 = vmatpush.bf16.msra.mxu0 %v2643
        %2659 = vmatpush.bf16.msra.mxu0 %v2641
        %2660 = vmatpush.bf16.msra.mxu0 %v2639
        %2661 = vmatpush.bf16.msra.mxu0 %v2637
        %2662 = vmatmul.bf16.gmra.mxu0 %v2649
        %v2663 = vpop.f32.mrf.mxu0
        %v2664 = vadd.f32 0.0, %v2663
        %v2665 = vpop.f32.mrf.mxu0
        %v2666 = vadd.f32 0.0, %v2665
        %2667 = vmatmul.bf16.gmra.mxu0 %v2652
        %v2668 = vpop.f32.mrf.mxu0
        %v2669 = vadd.f32 0.0, %v2668
        %v2670 = vpop.f32.mrf.mxu0
        %v2671 = vadd.f32 0.0, %v2670
        %2672 = vdwg.mxu0
        %v2673 = vadd.f32 %v2630, %v2664
        %v2674 = vadd.f32 %v2631, %v2666
        %v2675 = vadd.f32 %v2632, %v2669
        %v2676 = vadd.f32 %v2633, %v2671
        %2677 = vst.msk [vmem:[%s2605] sm:$0xff] %vm837, %v2673
        %2678 = vst.msk [vmem:[%s2605 + $0x8] sm:$0xff] %vm837, %v2674
        %2679 = vst.msk [vmem:[%s2605 + $0x10] sm:$0xff] %vm837, %v2675
        %2680 = vst.msk [vmem:[%s2605 + $0x18] sm:$0xff] %vm837, %v2676
        %2681 = vst.msk [vmem:[%s2511] sm:$0xff] %vm963, %v2528
        %2682 = vst.msk [vmem:[%s2511 + $0x8] sm:$0xff] %vm963, %v2529
        %2683 = vst.msk [vmem:[%s2511 + $0x10] sm:$0xff] %vm963, %v2530
        %2684 = vst.msk [vmem:[%s2511 + $0x18] sm:$0xff] %vm963, %v2531
        // Predicated region
        $region57: #{attention_forward.1} parent=51 // pred_check
          %p2685 = pneg %p379
        $region58: #{attention_forward.1} parent=51 // pred_check_branch
          %2687 = sbr.rel (%p2685) target = $region60
        $region59: #{attention_forward.1} parent=51 // pred_region
          %v2688 = vld [vmem:[#allocation4] sm:$0xff]
          %v2689 = vld [vmem:[#allocation4 + $0x8] sm:$0xff]
          %v2690 = vld [vmem:[#allocation4 + $0x10] sm:$0xff]
          %v2691 = vld [vmem:[#allocation4 + $0x18] sm:$0xff]
          %v2692 = vrcp.pop %v2688
          %v2693 = vrcp.pop %v2689
          %v2694 = vrcp.pop %v2690
          %v2695 = vrcp.pop %v2691
          %v2696 = vld [vmem:[#allocation5] sm:$0xff]
          %v2697 = vld [vmem:[#allocation5 + $0x8] sm:$0xff]
          %v2698 = vld [vmem:[#allocation5 + $0x10] sm:$0xff]
          %v2699 = vld [vmem:[#allocation5 + $0x18] sm:$0xff]
          %2701 = vset.pattern.permute.xlu0 0
          %2702 = vperm.xlu0 %2701, %v2692
          %v2703 = vpop.permute.xlu0 %2702
          %2706 = vset.pattern.permute.xlu0 0
          %2707 = vperm.xlu0 %2706, %v2693
          %v2708 = vpop.permute.xlu0 %2707
          %2711 = vset.pattern.permute.xlu0 0
          %2712 = vperm.xlu0 %2711, %v2694
          %v2713 = vpop.permute.xlu0 %2712
          %2716 = vset.pattern.permute.xlu0 0
          %2717 = vperm.xlu0 %2716, %v2695
          %v2718 = vpop.permute.xlu0 %2717
          %v2720 = vmul.f32 %v2696, %v2703
          %v2721 = vmul.f32 %v2697, %v2708
          %v2722 = vmul.f32 %v2698, %v2713
          %v2723 = vmul.f32 %v2699, %v2718
          %v2724 = vld [vmem:[%s1172] sm:$0xff]
          %v2725 = vld [vmem:[%s1172 + $0x8] sm:$0xff]
          %v2726 = vld [vmem:[%s1172 + $0x10] sm:$0xff]
          %v2727 = vld [vmem:[%s1172 + $0x18] sm:$0xff]
          %v2728 = vrcp.pop %v2724
          %v2729 = vrcp.pop %v2725
          %v2730 = vrcp.pop %v2726
          %v2731 = vrcp.pop %v2727
          %v2732 = vld [vmem:[%s1201] sm:$0xff]
          %v2733 = vld [vmem:[%s1201 + $0x8] sm:$0xff]
          %v2734 = vld [vmem:[%s1201 + $0x10] sm:$0xff]
          %v2735 = vld [vmem:[%s1201 + $0x18] sm:$0xff]
          %2737 = vset.pattern.permute.xlu0 0
          %2738 = vperm.xlu0 %2737, %v2728
          %v2739 = vpop.permute.xlu0 %2738
          %2742 = vset.pattern.permute.xlu0 0
          %2743 = vperm.xlu0 %2742, %v2729
          %v2744 = vpop.permute.xlu0 %2743
          %2747 = vset.pattern.permute.xlu0 0
          %2748 = vperm.xlu0 %2747, %v2730
          %v2749 = vpop.permute.xlu0 %2748
          %2752 = vset.pattern.permute.xlu0 0
          %2753 = vperm.xlu0 %2752, %v2731
          %v2754 = vpop.permute.xlu0 %2753
          %v2756 = vmul.f32 %v2732, %v2739
          %v2757 = vmul.f32 %v2733, %v2744
          %v2758 = vmul.f32 %v2734, %v2749
          %v2759 = vmul.f32 %v2735, %v2754
          %v2760 = vld [vmem:[%s1406] sm:$0xff]
          %v2761 = vld [vmem:[%s1406 + $0x8] sm:$0xff]
          %v2762 = vld [vmem:[%s1406 + $0x10] sm:$0xff]
          %v2763 = vld [vmem:[%s1406 + $0x18] sm:$0xff]
          %v2764 = vrcp.pop %v2760
          %v2765 = vrcp.pop %v2761
          %v2766 = vrcp.pop %v2762
          %v2767 = vrcp.pop %v2763
          %v2768 = vld [vmem:[%s1435] sm:$0xff]
          %v2769 = vld [vmem:[%s1435 + $0x8] sm:$0xff]
          %v2770 = vld [vmem:[%s1435 + $0x10] sm:$0xff]
          %v2771 = vld [vmem:[%s1435 + $0x18] sm:$0xff]
          %2773 = vset.pattern.permute.xlu0 0
          %2774 = vperm.xlu0 %2773, %v2764
          %v2775 = vpop.permute.xlu0 %2774
          %2778 = vset.pattern.permute.xlu0 0
          %2779 = vperm.xlu0 %2778, %v2765
          %v2780 = vpop.permute.xlu0 %2779
          %2783 = vset.pattern.permute.xlu0 0
          %2784 = vperm.xlu0 %2783, %v2766
          %v2785 = vpop.permute.xlu0 %2784
          %2788 = vset.pattern.permute.xlu0 0
          %2789 = vperm.xlu0 %2788, %v2767
          %v2790 = vpop.permute.xlu0 %2789
          %v2792 = vmul.f32 %v2768, %v2775
          %v2793 = vmul.f32 %v2769, %v2780
          %v2794 = vmul.f32 %v2770, %v2785
          %v2795 = vmul.f32 %v2771, %v2790
          %v2796 = vld [vmem:[%s1640] sm:$0xff]
          %v2797 = vld [vmem:[%s1640 + $0x8] sm:$0xff]
          %v2798 = vld [vmem:[%s1640 + $0x10] sm:$0xff]
          %v2799 = vld [vmem:[%s1640 + $0x18] sm:$0xff]
          %v2800 = vrcp.pop %v2796
          %v2801 = vrcp.pop %v2797
          %v2802 = vrcp.pop %v2798
          %v2803 = vrcp.pop %v2799
          %v2804 = vld [vmem:[%s1669] sm:$0xff]
          %v2805 = vld [vmem:[%s1669 + $0x8] sm:$0xff]
          %v2806 = vld [vmem:[%s1669 + $0x10] sm:$0xff]
          %v2807 = vld [vmem:[%s1669 + $0x18] sm:$0xff]
          %2809 = vset.pattern.permute.xlu0 0
          %2810 = vperm.xlu0 %2809, %v2800
          %v2811 = vpop.permute.xlu0 %2810
          %2814 = vset.pattern.permute.xlu0 0
          %2815 = vperm.xlu0 %2814, %v2801
          %v2816 = vpop.permute.xlu0 %2815
          %2819 = vset.pattern.permute.xlu0 0
          %2820 = vperm.xlu0 %2819, %v2802
          %v2821 = vpop.permute.xlu0 %2820
          %2824 = vset.pattern.permute.xlu0 0
          %2825 = vperm.xlu0 %2824, %v2803
          %v2826 = vpop.permute.xlu0 %2825
          %v2828 = vmul.f32 %v2804, %v2811
          %v2829 = vmul.f32 %v2805, %v2816
          %v2830 = vmul.f32 %v2806, %v2821
          %v2831 = vmul.f32 %v2807, %v2826
          %v2832 = vld [vmem:[%s1874] sm:$0xff]
          %v2833 = vld [vmem:[%s1874 + $0x8] sm:$0xff]
          %v2834 = vld [vmem:[%s1874 + $0x10] sm:$0xff]
          %v2835 = vld [vmem:[%s1874 + $0x18] sm:$0xff]
          %v2836 = vrcp.pop %v2832
          %v2837 = vrcp.pop %v2833
          %v2838 = vrcp.pop %v2834
          %v2839 = vrcp.pop %v2835
          %v2840 = vld [vmem:[%s1903] sm:$0xff]
          %v2841 = vld [vmem:[%s1903 + $0x8] sm:$0xff]
          %v2842 = vld [vmem:[%s1903 + $0x10] sm:$0xff]
          %v2843 = vld [vmem:[%s1903 + $0x18] sm:$0xff]
          %2845 = vset.pattern.permute.xlu0 0
          %2846 = vperm.xlu0 %2845, %v2836
          %v2847 = vpop.permute.xlu0 %2846
          %2850 = vset.pattern.permute.xlu0 0
          %2851 = vperm.xlu0 %2850, %v2837
          %v2852 = vpop.permute.xlu0 %2851
          %2855 = vset.pattern.permute.xlu0 0
          %2856 = vperm.xlu0 %2855, %v2838
          %v2857 = vpop.permute.xlu0 %2856
          %2860 = vset.pattern.permute.xlu0 0
          %2861 = vperm.xlu0 %2860, %v2839
          %v2862 = vpop.permute.xlu0 %2861
          %v2864 = vmul.f32 %v2840, %v2847
          %v2865 = vmul.f32 %v2841, %v2852
          %v2866 = vmul.f32 %v2842, %v2857
          %v2867 = vmul.f32 %v2843, %v2862
          %v2868 = vld [vmem:[%s2108] sm:$0xff]
          %v2869 = vld [vmem:[%s2108 + $0x8] sm:$0xff]
          %v2870 = vld [vmem:[%s2108 + $0x10] sm:$0xff]
          %v2871 = vld [vmem:[%s2108 + $0x18] sm:$0xff]
          %v2872 = vrcp.pop %v2868
          %v2873 = vrcp.pop %v2869
          %v2874 = vrcp.pop %v2870
          %v2875 = vrcp.pop %v2871
          %v2876 = vld [vmem:[%s2137] sm:$0xff]
          %v2877 = vld [vmem:[%s2137 + $0x8] sm:$0xff]
          %v2878 = vld [vmem:[%s2137 + $0x10] sm:$0xff]
          %v2879 = vld [vmem:[%s2137 + $0x18] sm:$0xff]
          %2881 = vset.pattern.permute.xlu0 0
          %2882 = vperm.xlu0 %2881, %v2872
          %v2883 = vpop.permute.xlu0 %2882
          %2886 = vset.pattern.permute.xlu0 0
          %2887 = vperm.xlu0 %2886, %v2873
          %v2888 = vpop.permute.xlu0 %2887
          %2891 = vset.pattern.permute.xlu0 0
          %2892 = vperm.xlu0 %2891, %v2874
          %v2893 = vpop.permute.xlu0 %2892
          %2896 = vset.pattern.permute.xlu0 0
          %2897 = vperm.xlu0 %2896, %v2875
          %v2898 = vpop.permute.xlu0 %2897
          %v2900 = vmul.f32 %v2876, %v2883
          %v2901 = vmul.f32 %v2877, %v2888
          %v2902 = vmul.f32 %v2878, %v2893
          %v2903 = vmul.f32 %v2879, %v2898
          %v2904 = vld [vmem:[%s2342] sm:$0xff]
          %v2905 = vld [vmem:[%s2342 + $0x8] sm:$0xff]
          %v2906 = vld [vmem:[%s2342 + $0x10] sm:$0xff]
          %v2907 = vld [vmem:[%s2342 + $0x18] sm:$0xff]
          %v2908 = vrcp.pop %v2904
          %v2909 = vrcp.pop %v2905
          %v2910 = vrcp.pop %v2906
          %v2911 = vrcp.pop %v2907
          %v2912 = vld [vmem:[%s2371] sm:$0xff]
          %v2913 = vld [vmem:[%s2371 + $0x8] sm:$0xff]
          %v2914 = vld [vmem:[%s2371 + $0x10] sm:$0xff]
          %v2915 = vld [vmem:[%s2371 + $0x18] sm:$0xff]
          %2917 = vset.pattern.permute.xlu0 0
          %2918 = vperm.xlu0 %2917, %v2908
          %v2919 = vpop.permute.xlu0 %2918
          %2922 = vset.pattern.permute.xlu0 0
          %2923 = vperm.xlu0 %2922, %v2909
          %v2924 = vpop.permute.xlu0 %2923
          %2927 = vset.pattern.permute.xlu0 0
          %2928 = vperm.xlu0 %2927, %v2910
          %v2929 = vpop.permute.xlu0 %2928
          %2932 = vset.pattern.permute.xlu0 0
          %2933 = vperm.xlu0 %2932, %v2911
          %v2934 = vpop.permute.xlu0 %2933
          %v2936 = vmul.f32 %v2912, %v2919
          %v2937 = vmul.f32 %v2913, %v2924
          %v2938 = vmul.f32 %v2914, %v2929
          %v2939 = vmul.f32 %v2915, %v2934
          %v2940 = vld [vmem:[%s2576] sm:$0xff]
          %v2941 = vld [vmem:[%s2576 + $0x8] sm:$0xff]
          %v2942 = vld [vmem:[%s2576 + $0x10] sm:$0xff]
          %v2943 = vld [vmem:[%s2576 + $0x18] sm:$0xff]
          %v2944 = vrcp.pop %v2940
          %v2945 = vrcp.pop %v2941
          %v2946 = vrcp.pop %v2942
          %v2947 = vrcp.pop %v2943
          %v2948 = vld [vmem:[%s2605] sm:$0xff]
          %v2949 = vld [vmem:[%s2605 + $0x8] sm:$0xff]
          %v2950 = vld [vmem:[%s2605 + $0x10] sm:$0xff]
          %v2951 = vld [vmem:[%s2605 + $0x18] sm:$0xff]
          %2953 = vset.pattern.permute.xlu0 0
          %2954 = vperm.xlu0 %2953, %v2944
          %v2955 = vpop.permute.xlu0 %2954
          %2958 = vset.pattern.permute.xlu0 0
          %2959 = vperm.xlu0 %2958, %v2945
          %v2960 = vpop.permute.xlu0 %2959
          %2963 = vset.pattern.permute.xlu0 0
          %2964 = vperm.xlu0 %2963, %v2946
          %v2965 = vpop.permute.xlu0 %2964
          %2968 = vset.pattern.permute.xlu0 0
          %2969 = vperm.xlu0 %2968, %v2947
          %v2970 = vpop.permute.xlu0 %2969
          %v2972 = vmul.f32 %v2948, %v2955
          %v2973 = vmul.f32 %v2949, %v2960
          %v2974 = vmul.f32 %v2950, %v2965
          %v2975 = vmul.f32 %v2951, %v2970
          %2980 = vrot.lane.b32.xlu0 %v2756, 8
          %v2981 = vpop.permute.xlu0 %2980
          %2982 = vrot.lane.b32.xlu0 %v2757, 8
          %v2983 = vpop.permute.xlu0 %2982
          %2984 = vrot.lane.b32.xlu0 %v2758, 8
          %v2985 = vpop.permute.xlu0 %2984
          %2986 = vrot.lane.b32.xlu0 %v2759, 8
          %v2987 = vpop.permute.xlu0 %2986
          %2996 = vrot.lane.b32.xlu0 %v2792, 16
          %v2997 = vpop.permute.xlu0 %2996
          %2998 = vrot.lane.b32.xlu0 %v2793, 16
          %v2999 = vpop.permute.xlu0 %2998
          %3000 = vrot.lane.b32.xlu0 %v2794, 16
          %v3001 = vpop.permute.xlu0 %3000
          %3002 = vrot.lane.b32.xlu0 %v2795, 16
          %v3003 = vpop.permute.xlu0 %3002
          %3012 = vrot.lane.b32.xlu0 %v2828, 24
          %v3013 = vpop.permute.xlu0 %3012
          %3014 = vrot.lane.b32.xlu0 %v2829, 24
          %v3015 = vpop.permute.xlu0 %3014
          %3016 = vrot.lane.b32.xlu0 %v2830, 24
          %v3017 = vpop.permute.xlu0 %3016
          %3018 = vrot.lane.b32.xlu0 %v2831, 24
          %v3019 = vpop.permute.xlu0 %3018
          %3028 = vrot.lane.b32.xlu0 %v2864, 32
          %v3029 = vpop.permute.xlu0 %3028
          %3030 = vrot.lane.b32.xlu0 %v2865, 32
          %v3031 = vpop.permute.xlu0 %3030
          %3032 = vrot.lane.b32.xlu0 %v2866, 32
          %v3033 = vpop.permute.xlu0 %3032
          %3034 = vrot.lane.b32.xlu0 %v2867, 32
          %v3035 = vpop.permute.xlu0 %3034
          %3044 = vrot.lane.b32.xlu0 %v2900, 40
          %v3045 = vpop.permute.xlu0 %3044
          %3046 = vrot.lane.b32.xlu0 %v2901, 40
          %v3047 = vpop.permute.xlu0 %3046
          %3048 = vrot.lane.b32.xlu0 %v2902, 40
          %v3049 = vpop.permute.xlu0 %3048
          %3050 = vrot.lane.b32.xlu0 %v2903, 40
          %v3051 = vpop.permute.xlu0 %3050
          %3060 = vrot.lane.b32.xlu0 %v2936, 48
          %v3061 = vpop.permute.xlu0 %3060
          %3062 = vrot.lane.b32.xlu0 %v2937, 48
          %v3063 = vpop.permute.xlu0 %3062
          %3064 = vrot.lane.b32.xlu0 %v2938, 48
          %v3065 = vpop.permute.xlu0 %3064
          %3066 = vrot.lane.b32.xlu0 %v2939, 48
          %v3067 = vpop.permute.xlu0 %3066
          %3076 = vrot.lane.b32.xlu0 %v2972, 56
          %v3077 = vpop.permute.xlu0 %3076
          %3078 = vrot.lane.b32.xlu0 %v2973, 56
          %v3079 = vpop.permute.xlu0 %3078
          %3080 = vrot.lane.b32.xlu0 %v2974, 56
          %v3081 = vpop.permute.xlu0 %3080
          %3082 = vrot.lane.b32.xlu0 %v2975, 56
          %v3083 = vpop.permute.xlu0 %3082
          %v3088 = vsel %vm837, %v2720, %v2981
          %v3089 = vsel %vm837, %v2721, %v2983
          %v3090 = vsel %vm837, %v2722, %v2985
          %v3091 = vsel %vm837, %v2723, %v2987
          %vm3092 = vcmask 130048
          %v3093 = vsel %vm3092, %v3088, %v2997
          %v3094 = vsel %vm3092, %v3089, %v2999
          %v3095 = vsel %vm3092, %v3090, %v3001
          %v3096 = vsel %vm3092, %v3091, %v3003
          %vm3097 = vcmask 195584
          %v3098 = vsel %vm3097, %v3093, %v3013
          %v3099 = vsel %vm3097, %v3094, %v3015
          %v3100 = vsel %vm3097, %v3095, %v3017
          %v3101 = vsel %vm3097, %v3096, %v3019
          %vm3102 = vcmask 261120
          %v3103 = vsel %vm3102, %v3098, %v3029
          %v3104 = vsel %vm3102, %v3099, %v3031
          %v3105 = vsel %vm3102, %v3100, %v3033
          %v3106 = vsel %vm3102, %v3101, %v3035
          %vm3107 = vcmask 326656
          %v3108 = vsel %vm3107, %v3103, %v3045
          %v3109 = vsel %vm3107, %v3104, %v3047
          %v3110 = vsel %vm3107, %v3105, %v3049
          %v3111 = vsel %vm3107, %v3106, %v3051
          %vm3112 = vcmask 392192
          %v3113 = vsel %vm3112, %v3108, %v3061
          %v3114 = vsel %vm3112, %v3109, %v3063
          %v3115 = vsel %vm3112, %v3110, %v3065
          %v3116 = vsel %vm3112, %v3111, %v3067
          %vm3117 = vcmask 457728
          %v3118 = vsel %vm3117, %v3113, %v3077
          %v3119 = vsel %vm3117, %v3114, %v3079
          %v3120 = vsel %vm3117, %v3115, %v3081
          %v3121 = vsel %vm3117, %v3116, %v3083
          %v3122 = vpack.c.bf16 %v3119, %v3118
          %v3123 = vpack.c.bf16 %v3121, %v3120
          %v3124 = vld [vmem:[%s6] sm:$0xf]
          %v3125 = vld [vmem:[%s6 + $0x4] sm:$0xf]
          %v3126 = vld [vmem:[%s6 + $0x8] sm:$0xf]
          %v3127 = vld [vmem:[%s6 + $0xc] sm:$0xf]
          %v3128 = vld [vmem:[%s6 + $0x10] sm:$0xf]
          %v3129 = vld [vmem:[%s6 + $0x14] sm:$0xf]
          %v3130 = vld [vmem:[%s6 + $0x18] sm:$0xf]
          %v3131 = vld [vmem:[%s6 + $0x1c] sm:$0xf]
          %v3132 = vld [vmem:[%s7] sm:$0x1]
          %v3134 = vperm.slane %v3132, 0
          %v3144 = vunpack.c.l.b16 %v3124
          %v3145 = vunpack.c.l.b16 %v3125
          %v3146 = vunpack.c.l.b16 %v3126
          %v3147 = vunpack.c.l.b16 %v3127
          %v3148 = vunpack.c.l.b16 %v3128
          %v3149 = vunpack.c.l.b16 %v3129
          %v3150 = vunpack.c.l.b16 %v3130
          %v3151 = vunpack.c.l.b16 %v3131
          %v3152 = vpack.c.b16 %v3145, %v3144
          %v3153 = vpack.c.b16 %v3147, %v3146
          %v3154 = vpack.c.b16 %v3149, %v3148
          %v3155 = vpack.c.b16 %v3151, %v3150
          %v3161 = vsel %vm753, %v3122, 0
          %v3164 = vsel %vm753, %v3123, 0
          %3166 = vmatpush.bf16.msra.mxu0 0
          %3167 = vmatpush.bf16.msra.mxu0 0
          %3168 = vmatpush.bf16.msra.mxu0 0
          %3169 = vmatpush.bf16.msra.mxu0 0
          %3170 = vmatpush.bf16.msra.mxu0 %v3155
          %3171 = vmatpush.bf16.msra.mxu0 %v3154
          %3172 = vmatpush.bf16.msra.mxu0 %v3153
          %3173 = vmatpush.bf16.msra.mxu0 %v3152
          %3174 = vmatmul.bf16.gmra.mxu0 %v3161
          %v3175 = vpop.f32.mrf.mxu0
          %v3176 = vadd.f32 %v3134, %v3175
          %v3177 = vpop.f32.mrf.mxu0
          %v3178 = vadd.f32 %v3134, %v3177
          %3179 = vmatmul.bf16.gmra.mxu0 %v3164
          %v3180 = vpop.f32.mrf.mxu0
          %v3181 = vadd.f32 %v3134, %v3180
          %v3182 = vpop.f32.mrf.mxu0
          %v3183 = vadd.f32 %v3134, %v3182
          %3184 = vdwg.mxu0
          %3185 = vst.msk [vmem:[%s356] sm:$0xff] %vm753, %v3176
          %3186 = vst.msk [vmem:[%s356 + $0x8] sm:$0xff] %vm753, %v3178
          %3187 = vst.msk [vmem:[%s356 + $0x10] sm:$0xff] %vm753, %v3181
          %3188 = vst.msk [vmem:[%s356 + $0x18] sm:$0xff] %vm753, %v3183
        $region60: #{attention_forward.1} parent=51 // pred_fallthru
          _
        %s3189 = sand.u32 %s233, 1
        %s3190 = scalar_lea.sflag [#allocation7], %s3189
        %s3191 = sand.u32 %s233, 1
        %s3192 = smul.addr %s3191, 32
        %s3193 = scalar_lea.vmem [#allocation6], %s3192
        // Predicated region
        $region61: #{attention_forward.1} parent=51 // pred_check
          %p3194 = pneg %p243
        $region62: #{attention_forward.1} parent=51 // pred_check_branch
          %3196 = sbr.rel (%p3194) target = $region64
        $region63: #{attention_forward.1} parent=51 // pred_region
          %s3197 = smul.u32 4, %s28
          %3199 = vsyncadd %s3190, 0
          %s3200 = smul.addr %s27, 8
          %s3201 = sadd.s32 %s3197, %s3200
          %s3202 = smul.addr %s3201, 8
          %s3203 = scalar_lea.hbm %s8, %s3202
          %s3204 = sshll.u32 %s3193, 4
          %s3205 = int_to_ptr.vmem [resolvable:$true] %s3204
          %s3206 = sshll.u32 %s3203, 4
          %s3207 = int_to_ptr.hbm [resolvable:$true] %s3206
          %3212 = dma.vmem_to_hbm [thread:$0]  %s3205, 512, %s3207, %s3190, 128, 128, 8
        $region64: #{attention_forward.1} parent=51 // pred_fallthru
          _
      $region52: #{attention_forward.1} parent=5 // pred_fallthru
        _
      %p3213 = scmp.le.s32.totalorder 2, %s17
      // Predicated region
      $region65: #{attention_forward.1} parent=5 // pred_check
        %p3214 = pneg %p3213
      $region66: #{attention_forward.1} parent=5 // pred_check_branch
        %3216 = sbr.rel (%p3214) target = $region68
      $region67: #{attention_forward.1} parent=5 // pred_region
        %s3217 = ssub.s32 %s17, 2
        // Predicated region
        $region69: #{attention_forward.1} parent=67 // pred_check
          %p3218 = pneg %p249
        $region70: #{attention_forward.1} parent=67 // pred_check_branch
          %3220 = sbr.rel (%p3218) target = $region72
        $region71: #{attention_forward.1} parent=67 // pred_region
          %s3221 = sand.u32 %s234, 1
          %s3222 = scalar_lea.sflag [#allocation7], %s3221
          %s3223 = sand.u32 %s234, 1
          %s3224 = smul.addr %s3223, 32
          %s3225 = scalar_lea.vmem [#allocation6], %s3224
          %3227 = dma.done %s3222, 512
        $region72: #{attention_forward.1} parent=67 // pred_fallthru
          _
      $region68: #{attention_forward.1} parent=5 // pred_fallthru
        _
    $region6: #{attention_forward.1} parent=1 // loop_footer
      %s21 = sadd.s32 1, %s17
    $region7: #{attention_forward.1} parent=1 // loop_footer_branch
      %16 = sbr.rel target = $region3
    $region8: #{attention_forward.1} parent=1 // loop_exit
      _
    %3228 = vsyncpa [#allocation7], 1
    %s3229 = scalar_lea.sflag [#allocation7], 1
    %3230 = vsyncpa %s3229, 1

</llo_original>
